<compile_context>
chip_gen: v6e
topology: v6e:2x2x1
jax: 0.10.0
libtpu: 0.0.40
codegen_flags: <defaults>
</compile_context>

<pallas_src>
import math

import numpy as np
import jax
import jax.numpy as jnp
from jax.experimental import pallas as pl
from jax.experimental.pallas import tpu as pltpu

EPS = 1e-5          # BatchNorm2d default eps
NEG_SLOPE = 0.01    # F.leaky_relu default negative_slope
DP = 128            # lane width every activation / weight block is padded to

# (C_in, C_out, stride, pad) for conv1..conv4 (all 3x3 kernels)
LAYER_CFG = (
    (1, 8, 2, 1),
    (8, 16, 2, 1),
    (16, 32, 2, 1),
    (32, 32, 1, 0),
)


def _conv_out(size, k, s, p):
    return (size + 2 * p - k) // s + 1


def _tap_ranges(H_in, H_out, stride, pad):
    """For each kernel-row offset i: (first valid output row, count, first source row)."""
    taps = []
    for i in range(3):
        lo = max(0, math.ceil((pad - i) / stride))
        hi = min(H_out, (H_in - 1 - i + pad) // stride + 1)
        cnt = max(0, hi - lo)
        h0 = stride * lo + i - pad
        taps.append((lo, cnt, h0))
    return taps


def _make_plans(N, C0, H, W):
    plans = []
    c_in, h_in, w_in = C0, H, W
    for (cin, cout, s, p) in LAYER_CFG:
        assert cin == c_in
        h_out = _conv_out(h_in, 3, s, p)
        w_out = _conv_out(w_in, 3, s, p)
        d_in, d_out = w_in * cin, w_out * cout
        assert d_in <= DP and d_out <= DP, "toy-size kernel assumes W*C <= 128 per layer"
        plans.append(dict(C_in=cin, C_out=cout, stride=s, pad=p,
                          H_in=h_in, W_in=w_in, H_out=h_out, W_out=w_out,
                          D_in=d_in, D_out=d_out,
                          taps=_tap_ranges(h_in, h_out, s, p)))
        c_in, h_in, w_in = cout, h_out, w_out
    return plans


# ---------------------------------------------------------------------------
# Fused kernel (built per static shape plan)
# ---------------------------------------------------------------------------
def _make_kernel(N, plans):
    n_layers = len(plans)
    H4 = plans[-1]["H_out"]

    def kernel(*refs):
        # inputs: x, then per layer (Mcat, Pool, Bcast, gamma/beta), then H4 flatten perms
        x_ref = refs[0]
        layer_refs = refs[1:1 + 4 * n_layers]
        pf_refs = refs[1 + 4 * n_layers:1 + 4 * n_layers + H4]
        o_ref = refs[1 + 4 * n_layers + H4]
        scratch = refs[2 + 4 * n_layers + H4:]
        bcats = scratch[:n_layers]                    # K-stacked conv staging buffers
        acts = scratch[n_layers:2 * n_layers - 1]     # inter-layer activations (f32)
        a_out = scratch[2 * n_layers - 1]             # layer-4 output for flatten perm

        src = x_ref
        for l in range(n_layers):
            plan = plans[l]
            m_ref, pool_ref, bcast_ref, gb_ref = layer_refs[4 * l:4 * l + 4]
            bcat = bcats[l]
            H_in, H_out, s = plan["H_in"], plan["H_out"], plan["stride"]

            # --- stage B_cat: 3 H-tap row slices at 128-aligned column blocks ---
            if any(cnt < H_out for (_lo, cnt, _h0) in plan["taps"]):
                bcat[...] = jnp.zeros_like(bcat)      # rows hitting H zero-padding
            for i, (ho_lo, cnt, h0) in enumerate(plan["taps"]):
                if cnt <= 0:
                    continue
                for n in range(N):                    # static unroll (toy batch)
                    start = n * H_in + h0
                    if s == 1:
                        rows = src[start:start + cnt, :]
                    else:
                        rows = src[pl.ds(start, cnt, stride=s), :]
                    dst = n * H_out + ho_lo
                    bcat[dst:dst + cnt, i * DP:(i + 1) * DP] = rows

            # --- conv: ONE K-stacked bf16 MXU matmul (K = 3*128), f32 accumulate ---
            y = jnp.dot(bcat[...].astype(jnp.bfloat16), m_ref[...],
                        preferred_element_type=jnp.float32)      # (R_out, 128) f32

            # --- training-mode BatchNorm (conv bias cancelled) + LeakyReLU, f32 ---
            col_mean = jnp.mean(y, axis=0, keepdims=True)        # (1, 128)
            col_msq = jnp.mean(y * y, axis=0, keepdims=True)     # (1, 128)
            chan = jnp.dot(jnp.concatenate([col_mean, col_msq], axis=0),
                           pool_ref[...], preferred_element_type=jnp.float32)  # (2, C)
            mean_c = chan[0:1, :]
            var_c = jnp.maximum(chan[1:2, :] - mean_c * mean_c, 0.0)  # biased batch var
            gb = gb_ref[...]
            scale_c = gb[0:1, :] * jax.lax.rsqrt(var_c + EPS)
            shift_c = gb[1:2, :] - mean_c * scale_c
            ss = jnp.dot(jnp.concatenate([scale_c, shift_c], axis=0),
                         bcast_ref[...], preferred_element_type=jnp.float32)   # (2, 128)
            z = y * ss[0:1, :] + ss[1:2, :]
            z = jnp.where(z >= 0, z, NEG_SLOPE * z)

            if l + 1 < n_layers:
                acts[l][...] = z
                src = acts[l]
            else:
                a_out[...] = z

        # --- fold PyTorch NCHW Flatten: lane-dense (N, C4*H4*W4) output ---
        out = None
        for h in range(H4):
            rows = a_out[...] if H4 == 1 else a_out[pl.ds(h, N, stride=H4), :]
            t = jnp.dot(rows, pf_refs[h][...], preferred_element_type=jnp.float32)
            out = t if out is None else out + t
        o_ref[...] = out

    return kernel


# ---------------------------------------------------------------------------
# Host-side constant builders
# ---------------------------------------------------------------------------
def _build_mcat(w, plan):
    """K-stacked row-Toeplitz conv weights: (3*128, 128) bf16.

    Block i handles kernel row i; folds the 3 kernel COLUMN offsets, W-stride
    and W-padding.  Each block is zero-padded from (D_in, D_out) to (128, 128)."""
    C_out, C_in, KH, KW = w.shape
    W_in, W_out = plan["W_in"], plan["W_out"]
    s, pad = plan["stride"], plan["pad"]
    D_in, D_out = plan["D_in"], plan["D_out"]
    wi = np.arange(W_in)[:, None, None, None]
    ci = np.arange(C_in)[None, :, None, None]
    wo = np.arange(W_out)[None, None, :, None]
    co = np.arange(C_out)[None, None, None, :]
    j = wi - s * wo + pad                                       # kernel column index
    valid = ((j >= 0) & (j < KW)).astype(np.float32)            # OOB -> W zero-padding
    jc = np.clip(j, 0, KW - 1)
    blocks = []
    for i in range(KH):
        vals = w[co, ci, i, jc] * valid                         # (W_in, C_in, W_out, C_out)
        m = vals.reshape(D_in, D_out)
        blocks.append(jnp.pad(m, ((0, DP - D_in), (0, DP - D_out))))
    return jnp.concatenate(blocks, axis=0).astype(jnp.bfloat16)  # (KH*128, 128)


def _pool_mat(W_out, C_out):
    """(128, C_out) f32: per-channel average of the real (w,c) columns."""
    m = np.zeros((DP, C_out), np.float32)
    for wo in range(W_out):
        m[wo * C_out:(wo + 1) * C_out, :] = np.eye(C_out, dtype=np.float32) / W_out
    return m


def _bcast_mat(W_out, C_out):
    """(C_out, 128) f32: broadcast per-channel values back to the (w,c) columns."""
    m = np.zeros((C_out, DP), np.float32)
    for wo in range(W_out):
        m[:, wo * C_out:(wo + 1) * C_out] = np.eye(C_out, dtype=np.float32)
    return m


def _flatten_perm_mats(H4, W4, C4):
    """Pf_h: (128, C4*H4*W4) 0/1 matrices mapping layer-4 (w,c) cols to NCHW flatten order."""
    n_cols = C4 * H4 * W4
    mats = []
    for h in range(H4):
        m = np.zeros((DP, n_cols), np.float32)
        for wv in range(W4):
            for c in range(C4):
                m[wv * C4 + c, c * H4 * W4 + h * W4 + wv] = 1.0
        mats.append(m)
    return mats


# ---------------------------------------------------------------------------
# Wrapper
# ---------------------------------------------------------------------------
@jax.jit
def encoder_forward(x, params):
    N, C0, H, W = x.shape
    plans = _make_plans(N, C0, H, W)
    last = plans[-1]
    H4, W4, C4 = last["H_out"], last["W_out"], last["C_out"]
    out_cols = C4 * H4 * W4

    operands = []
    for idx, plan in enumerate(plans):
        w, _b, gamma, beta = params[f"l{idx + 1}"]   # conv bias unused: cancelled by training-mode BN
        operands.append(_build_mcat(w, plan))
        operands.append(jnp.asarray(_pool_mat(plan["W_out"], plan["C_out"]), jnp.float32))
        operands.append(jnp.asarray(_bcast_mat(plan["W_out"], plan["C_out"]), jnp.float32))
        operands.append(jnp.stack([gamma, beta]).astype(jnp.float32))
    operands += [jnp.asarray(m, jnp.float32) for m in _flatten_perm_mats(H4, W4, C4)]

    # NCHW -> channels-last 2-D activation: rows=(n,h), cols=(w,c), lane-padded to 128
    a0 = x.transpose(0, 2, 3, 1).reshape(N * H, W * C0)
    a0 = jnp.pad(a0, ((0, 0), (0, DP - W * C0))).astype(jnp.float32)

    scratch = [pltpu.VMEM((N * plan["H_out"], 3 * DP), jnp.float32) for plan in plans]   # bcat
    scratch += [pltpu.VMEM((N * plan["H_out"], DP), jnp.float32) for plan in plans[:-1]]  # acts
    scratch += [pltpu.VMEM((N * H4, DP), jnp.float32)]                                    # layer-4 out

    kernel = _make_kernel(N, plans)
    return pl.pallas_call(
        kernel,
        out_shape=jax.ShapeDtypeStruct((N, out_cols), jnp.float32),
        in_specs=[pl.BlockSpec(memory_space=pltpu.MemorySpace.VMEM)] * (1 + len(operands)),
        out_specs=pl.BlockSpec(memory_space=pltpu.MemorySpace.VMEM),
        scratch_shapes=scratch,
    )(a0, *operands)


# ---------------------------------------------------------------------------
# Parameters + references
# ---------------------------------------------------------------------------
def init_params(key):
    """PyTorch-style uniform conv init; BN weight=1, bias=0."""
    def conv_init(k, cout, cin, kh, kw):
        kw_, kb_ = jax.random.split(k)
        bound = 1.0 / (cin * kh * kw) ** 0.5
        w = jax.random.uniform(kw_, (cout, cin, kh, kw), jnp.float32, -bound, bound)
        b = jax.random.uniform(kb_, (cout,), jnp.float32, -bound, bound)
        return (w, b, jnp.ones((cout,), jnp.float32), jnp.zeros((cout,), jnp.float32))

    keys = jax.random.split(key, 4)
    return {f"l{i + 1}": conv_init(keys[i], cfg[1], cfg[0], 3, 3)
            for i, cfg in enumerate(LAYER_CFG)}


def _reference_forward(x, params, matmul_inputs_bf16=False):
    """Pure-JAX reference (lax.conv, f32).  Optionally rounds the conv operands
    to bf16 to mirror the kernel's MXU operand precision exactly."""
    def layer(x, w, b, g, beta, stride, pad):
        if matmul_inputs_bf16:
            x = x.astype(jnp.bfloat16).astype(jnp.float32)
            w = w.astype(jnp.bfloat16).astype(jnp.float32)
        y = jax.lax.conv_general_dilated(
            x, w, (stride, stride), ((pad, pad), (pad, pad)),
            dimension_numbers=("NCHW", "OIHW", "NCHW"),
            precision=jax.lax.Precision.HIGHEST)
        y = y + b[None, :, None, None]
        mean = y.mean(axis=(0, 2, 3), keepdims=True)
        var = ((y - mean) ** 2).mean(axis=(0, 2, 3), keepdims=True)
        yhat = (y - mean) / jnp.sqrt(var + EPS)
        yhat = yhat * g[None, :, None, None] + beta[None, :, None, None]
        return jnp.where(yhat >= 0, yhat, NEG_SLOPE * yhat)

    for idx, (cin, cout, stride, pad) in enumerate(LAYER_CFG):
        x = layer(x, *params[f"l{idx + 1}"], stride, pad)
    return x.reshape(x.shape[0], -1)


if __name__ == "__main__":
    key = jax.random.PRNGKey(0)
    kp, kx = jax.random.split(key)
    params = init_params(kp)

    # MNIST-like input: (N=2, C=1, H=28, W=28) -> 14 -> 7 -> 4 -> 2 -> flatten 128
    x = jax.random.normal(kx, (2, 1, 28, 28), jnp.float32)

    out = jax.block_until_ready(encoder_forward(x, params))
    assert out.shape == (2, 32 * 2 * 2), out.shape

    # Primary check: reference using the same bf16-rounded conv operands
    # (BN / LeakyReLU in f32, like the kernel).
    ref16 = jax.block_until_ready(_reference_forward(x, params, matmul_inputs_bf16=True))
    err16 = float(jnp.max(jnp.abs(out - ref16)))
    assert err16 < 3e-2, err16

    # Semantics check vs the pure-f32 PyTorch-equivalent forward (bf16 MXU
    # operands are the only intentional deviation).
    ref32 = jax.block_until_ready(_reference_forward(x, params))
    err32 = float(jnp.max(jnp.abs(out - ref32)))
    assert err32 < 1.5e-1, err32

    print("KERNEL_OK")
</pallas_src>

<mosaic_0001>
module attributes {stable_mosaic.version = 11 : i64} {
  func.func @kernel(%arg0: memref<56x128xf32, #tpu.memory_space<vmem>>, %arg1: memref<384x128xbf16, #tpu.memory_space<vmem>>, %arg2: memref<128x8xf32, #tpu.memory_space<vmem>>, %arg3: memref<8x128xf32, #tpu.memory_space<vmem>>, %arg4: memref<2x8xf32, #tpu.memory_space<vmem>>, %arg5: memref<384x128xbf16, #tpu.memory_space<vmem>>, %arg6: memref<128x16xf32, #tpu.memory_space<vmem>>, %arg7: memref<16x128xf32, #tpu.memory_space<vmem>>, %arg8: memref<2x16xf32, #tpu.memory_space<vmem>>, %arg9: memref<384x128xbf16, #tpu.memory_space<vmem>>, %arg10: memref<128x32xf32, #tpu.memory_space<vmem>>, %arg11: memref<32x128xf32, #tpu.memory_space<vmem>>, %arg12: memref<2x32xf32, #tpu.memory_space<vmem>>, %arg13: memref<384x128xbf16, #tpu.memory_space<vmem>>, %arg14: memref<128x32xf32, #tpu.memory_space<vmem>>, %arg15: memref<32x128xf32, #tpu.memory_space<vmem>>, %arg16: memref<2x32xf32, #tpu.memory_space<vmem>>, %arg17: memref<128x128xf32, #tpu.memory_space<vmem>>, %arg18: memref<128x128xf32, #tpu.memory_space<vmem>>, %arg19: memref<2x128xf32, #tpu.memory_space<vmem>>, %arg20: memref<28x384xf32, #tpu.memory_space<vmem>>, %arg21: memref<14x384xf32, #tpu.memory_space<vmem>>, %arg22: memref<8x384xf32, #tpu.memory_space<vmem>>, %arg23: memref<4x384xf32, #tpu.memory_space<vmem>>, %arg24: memref<28x128xf32, #tpu.memory_space<vmem>>, %arg25: memref<14x128xf32, #tpu.memory_space<vmem>>, %arg26: memref<8x128xf32, #tpu.memory_space<vmem>>, %arg27: memref<4x128xf32, #tpu.memory_space<vmem>>) attributes {dimension_semantics = [], scalar_prefetch = 0 : i64, scratch_operands = 8 : i64, tpu.core_type = #tpu.core_type<tc>} {
    %cst = arith.constant 0.000000e+00 : f32
    %0 = vector.broadcast %cst : f32 to vector<28x384xf32>
    %c0 = arith.constant 0 : index
    %c0_0 = arith.constant 0 : index
    %1 = vector.load %arg20[%c0, %c0_0] : memref<28x384xf32, #tpu.memory_space<vmem>>, vector<28x384xf32>
    tpu.vector_store %arg20[%c0, %c0_0], %0 {strides = array<i32>} : memref<28x384xf32, #tpu.memory_space<vmem>>, vector<28x384xf32>,
    %c1 = arith.constant 1 : index
    %c0_1 = arith.constant 0 : index
    %2 = tpu.strided_load %arg0[%c1, %c0_1] {strides = array<i32: 2, 1>} : memref<56x128xf32, #tpu.memory_space<vmem>>, vector<13x128xf32>
    %c1_2 = arith.constant 1 : index
    %c0_3 = arith.constant 0 : index
    %3 = vector.load %arg20[%c1_2, %c0_3] : memref<28x384xf32, #tpu.memory_space<vmem>>, vector<13x128xf32>
    tpu.vector_store %arg20[%c1_2, %c0_3], %2 {strides = array<i32>} : memref<28x384xf32, #tpu.memory_space<vmem>>, vector<13x128xf32>,
    %c29 = arith.constant 29 : index
    %c0_4 = arith.constant 0 : index
    %4 = tpu.strided_load %arg0[%c29, %c0_4] {strides = array<i32: 2, 1>} : memref<56x128xf32, #tpu.memory_space<vmem>>, vector<13x128xf32>
    %c15 = arith.constant 15 : index
    %c0_5 = arith.constant 0 : index
    %5 = vector.load %arg20[%c15, %c0_5] : memref<28x384xf32, #tpu.memory_space<vmem>>, vector<13x128xf32>
    tpu.vector_store %arg20[%c15, %c0_5], %4 {strides = array<i32>} : memref<28x384xf32, #tpu.memory_space<vmem>>, vector<13x128xf32>,
    %c0_6 = arith.constant 0 : index
    %c0_7 = arith.constant 0 : index
    %6 = tpu.strided_load %arg0[%c0_6, %c0_7] {strides = array<i32: 2, 1>} : memref<56x128xf32, #tpu.memory_space<vmem>>, vector<14x128xf32>
    %c0_8 = arith.constant 0 : index
    %c128 = arith.constant 128 : index
    %7 = vector.load %arg20[%c0_8, %c128] : memref<28x384xf32, #tpu.memory_space<vmem>>, vector<14x128xf32>
    tpu.vector_store %arg20[%c0_8, %c128], %6 {strides = array<i32>} : memref<28x384xf32, #tpu.memory_space<vmem>>, vector<14x128xf32>,
    %c28 = arith.constant 28 : index
    %c0_9 = arith.constant 0 : index
    %8 = tpu.strided_load %arg0[%c28, %c0_9] {strides = array<i32: 2, 1>} : memref<56x128xf32, #tpu.memory_space<vmem>>, vector<14x128xf32>
    %c14 = arith.constant 14 : index
    %c128_10 = arith.constant 128 : index
    %9 = vector.load %arg20[%c14, %c128_10] : memref<28x384xf32, #tpu.memory_space<vmem>>, vector<14x128xf32>
    tpu.vector_store %arg20[%c14, %c128_10], %8 {strides = array<i32>} : memref<28x384xf32, #tpu.memory_space<vmem>>, vector<14x128xf32>,
    %c1_11 = arith.constant 1 : index
    %c0_12 = arith.constant 0 : index
    %10 = tpu.strided_load %arg0[%c1_11, %c0_12] {strides = array<i32: 2, 1>} : memref<56x128xf32, #tpu.memory_space<vmem>>, vector<14x128xf32>
    %c0_13 = arith.constant 0 : index
    %c256 = arith.constant 256 : index
    %11 = vector.load %arg20[%c0_13, %c256] : memref<28x384xf32, #tpu.memory_space<vmem>>, vector<14x128xf32>
    tpu.vector_store %arg20[%c0_13, %c256], %10 {strides = array<i32>} : memref<28x384xf32, #tpu.memory_space<vmem>>, vector<14x128xf32>,
    %c29_14 = arith.constant 29 : index
    %c0_15 = arith.constant 0 : index
    %12 = tpu.strided_load %arg0[%c29_14, %c0_15] {strides = array<i32: 2, 1>} : memref<56x128xf32, #tpu.memory_space<vmem>>, vector<14x128xf32>
    %c14_16 = arith.constant 14 : index
    %c256_17 = arith.constant 256 : index
    %13 = vector.load %arg20[%c14_16, %c256_17] : memref<28x384xf32, #tpu.memory_space<vmem>>, vector<14x128xf32>
    tpu.vector_store %arg20[%c14_16, %c256_17], %12 {strides = array<i32>} : memref<28x384xf32, #tpu.memory_space<vmem>>, vector<14x128xf32>,
    %c0_18 = arith.constant 0 : index
    %c0_19 = arith.constant 0 : index
    %14 = vector.load %arg20[%c0_18, %c0_19] : memref<28x384xf32, #tpu.memory_space<vmem>>, vector<28x384xf32>
    %15 = arith.truncf %14 : vector<28x384xf32> to vector<28x384xbf16>
    %c0_20 = arith.constant 0 : index
    %c0_21 = arith.constant 0 : index
    %16 = vector.load %arg1[%c0_20, %c0_21] : memref<384x128xbf16, #tpu.memory_space<vmem>>, vector<384x128xbf16>
    %cst_22 = arith.constant dense<0.000000e+00> : vector<28x128xf32>
    %17 = tpu.matmul %15, %16, %cst_22 {dimension_numbers = #tpu.dot_dimension_numbers<[1], [0], [0], [1], [0, 0, 1, 1], [], []>} : vector<28x384xbf16>, vector<384x128xbf16>, vector<28x128xf32> -> vector<28x128xf32>
    %cst_23 = arith.constant dense<0.000000e+00> : vector<128xf32>
    %18 = vector.multi_reduction <add>, %17, %cst_23 [0] : vector<28x128xf32> to vector<128xf32>
    %19 = vector.shape_cast %18 : vector<128xf32> to vector<1x128xf32>
    %cst_24 = arith.constant 2.800000e+01 : f32
    %20 = vector.broadcast %cst_24 : f32 to vector<1x128xf32>
    %21 = arith.divf %19, %20 : vector<1x128xf32>
    %22 = arith.mulf %17, %17 : vector<28x128xf32>
    %cst_25 = arith.constant dense<0.000000e+00> : vector<128xf32>
    %23 = vector.multi_reduction <add>, %22, %cst_25 [0] : vector<28x128xf32> to vector<128xf32>
    %24 = vector.shape_cast %23 : vector<128xf32> to vector<1x128xf32>
    %cst_26 = arith.constant 2.800000e+01 : f32
    %25 = vector.broadcast %cst_26 : f32 to vector<1x128xf32>
    %26 = arith.divf %24, %25 : vector<1x128xf32>
    %27 = tpu.concatenate %21, %26 in 0 : vector<1x128xf32>, vector<1x128xf32> -> vector<2x128xf32>
    %c0_27 = arith.constant 0 : index
    %c0_28 = arith.constant 0 : index
    %28 = vector.load %arg2[%c0_27, %c0_28] : memref<128x8xf32, #tpu.memory_space<vmem>>, vector<128x8xf32>
    %cst_29 = arith.constant dense<0.000000e+00> : vector<2x8xf32>
    %29 = tpu.matmul %27, %28, %cst_29 {dimension_numbers = #tpu.dot_dimension_numbers<[1], [0], [0], [1], [0, 0, 1, 1], [], []>} : vector<2x128xf32>, vector<128x8xf32>, vector<2x8xf32> -> vector<2x8xf32>
    %30 = vector.extract_strided_slice %29 {offsets = [0, 0], sizes = [1, 8], strides = [1, 1]} : vector<2x8xf32> to vector<1x8xf32>
    %31 = vector.extract_strided_slice %29 {offsets = [1, 0], sizes = [1, 8], strides = [1, 1]} : vector<2x8xf32> to vector<1x8xf32>
    %32 = arith.mulf %30, %30 : vector<1x8xf32>
    %33 = arith.subf %31, %32 : vector<1x8xf32>
    %cst_30 = arith.constant 0.000000e+00 : f32
    %34 = vector.broadcast %cst_30 : f32 to vector<1x8xf32>
    %35 = arith.maximumf %33, %34 : vector<1x8xf32>
    %c0_31 = arith.constant 0 : index
    %c0_32 = arith.constant 0 : index
    %36 = vector.load %arg4[%c0_31, %c0_32] : memref<2x8xf32, #tpu.memory_space<vmem>>, vector<2x8xf32>
    %37 = vector.extract_strided_slice %36 {offsets = [0, 0], sizes = [1, 8], strides = [1, 1]} : vector<2x8xf32> to vector<1x8xf32>
    %cst_33 = arith.constant 9.99999974E-6 : f32
    %38 = vector.broadcast %cst_33 : f32 to vector<1x8xf32>
    %39 = arith.addf %35, %38 : vector<1x8xf32>
    %40 = math.rsqrt %39 : vector<1x8xf32>
    %41 = arith.mulf %37, %40 : vector<1x8xf32>
    %42 = vector.extract_strided_slice %36 {offsets = [1, 0], sizes = [1, 8], strides = [1, 1]} : vector<2x8xf32> to vector<1x8xf32>
    %43 = arith.mulf %30, %41 : vector<1x8xf32>
    %44 = arith.subf %42, %43 : vector<1x8xf32>
    %45 = tpu.concatenate %41, %44 in 0 : vector<1x8xf32>, vector<1x8xf32> -> vector<2x8xf32>
    %c0_34 = arith.constant 0 : index
    %c0_35 = arith.constant 0 : index
    %46 = vector.load %arg3[%c0_34, %c0_35] : memref<8x128xf32, #tpu.memory_space<vmem>>, vector<8x128xf32>
    %cst_36 = arith.constant dense<0.000000e+00> : vector<2x128xf32>
    %47 = tpu.matmul %45, %46, %cst_36 {dimension_numbers = #tpu.dot_dimension_numbers<[1], [0], [0], [1], [0, 0, 1, 1], [], []>} : vector<2x8xf32>, vector<8x128xf32>, vector<2x128xf32> -> vector<2x128xf32>
    %48 = vector.extract_strided_slice %47 {offsets = [0, 0], sizes = [1, 128], strides = [1, 1]} : vector<2x128xf32> to vector<1x128xf32>
    %49 = vector.broadcast %48 : vector<1x128xf32> to vector<28x128xf32>
    %50 = arith.mulf %17, %49 : vector<28x128xf32>
    %51 = vector.extract_strided_slice %47 {offsets = [1, 0], sizes = [1, 128], strides = [1, 1]} : vector<2x128xf32> to vector<1x128xf32>
    %52 = vector.broadcast %51 : vector<1x128xf32> to vector<28x128xf32>
    %53 = arith.addf %50, %52 : vector<28x128xf32>
    %cst_37 = arith.constant 0.000000e+00 : f32
    %54 = vector.broadcast %cst_37 : f32 to vector<28x128xf32>
    %55 = arith.cmpf oge, %53, %54 : vector<28x128xf32>
    %cst_38 = arith.constant 0.00999999977 : f32
    %56 = vector.broadcast %cst_38 : f32 to vector<28x128xf32>
    %57 = arith.mulf %56, %53 : vector<28x128xf32>
    %58 = arith.select %55, %53, %57 : vector<28x128xi1>, vector<28x128xf32>
    %c0_39 = arith.constant 0 : index
    %c0_40 = arith.constant 0 : index
    %59 = vector.load %arg24[%c0_39, %c0_40] : memref<28x128xf32, #tpu.memory_space<vmem>>, vector<28x128xf32>
    tpu.vector_store %arg24[%c0_39, %c0_40], %58 {strides = array<i32>} : memref<28x128xf32, #tpu.memory_space<vmem>>, vector<28x128xf32>,
    %cst_41 = arith.constant 0.000000e+00 : f32
    %60 = vector.broadcast %cst_41 : f32 to vector<14x384xf32>
    %c0_42 = arith.constant 0 : index
    %c0_43 = arith.constant 0 : index
    %61 = vector.load %arg21[%c0_42, %c0_43] : memref<14x384xf32, #tpu.memory_space<vmem>>, vector<14x384xf32>
    tpu.vector_store %arg21[%c0_42, %c0_43], %60 {strides = array<i32>} : memref<14x384xf32, #tpu.memory_space<vmem>>, vector<14x384xf32>,
    %c1_44 = arith.constant 1 : index
    %c0_45 = arith.constant 0 : index
    %62 = tpu.strided_load %arg24[%c1_44, %c0_45] {strides = array<i32: 2, 1>} : memref<28x128xf32, #tpu.memory_space<vmem>>, vector<6x128xf32>
    %c1_46 = arith.constant 1 : index
    %c0_47 = arith.constant 0 : index
    %63 = vector.load %arg21[%c1_46, %c0_47] : memref<14x384xf32, #tpu.memory_space<vmem>>, vector<6x128xf32>
    tpu.vector_store %arg21[%c1_46, %c0_47], %62 {strides = array<i32>} : memref<14x384xf32, #tpu.memory_space<vmem>>, vector<6x128xf32>,
    %c15_48 = arith.constant 15 : index
    %c0_49 = arith.constant 0 : index
    %64 = tpu.strided_load %arg24[%c15_48, %c0_49] {strides = array<i32: 2, 1>} : memref<28x128xf32, #tpu.memory_space<vmem>>, vector<6x128xf32>
    %c8 = arith.constant 8 : index
    %c0_50 = arith.constant 0 : index
    %65 = vector.load %arg21[%c8, %c0_50] : memref<14x384xf32, #tpu.memory_space<vmem>>, vector<6x128xf32>
    tpu.vector_store %arg21[%c8, %c0_50], %64 {strides = array<i32>} : memref<14x384xf32, #tpu.memory_space<vmem>>, vector<6x128xf32>,
    %c0_51 = arith.constant 0 : index
    %c0_52 = arith.constant 0 : index
    %66 = tpu.strided_load %arg24[%c0_51, %c0_52] {strides = array<i32: 2, 1>} : memref<28x128xf32, #tpu.memory_space<vmem>>, vector<7x128xf32>
    %c0_53 = arith.constant 0 : index
    %c128_54 = arith.constant 128 : index
    %67 = vector.load %arg21[%c0_53, %c128_54] : memref<14x384xf32, #tpu.memory_space<vmem>>, vector<7x128xf32>
    tpu.vector_store %arg21[%c0_53, %c128_54], %66 {strides = array<i32>} : memref<14x384xf32, #tpu.memory_space<vmem>>, vector<7x128xf32>,
    %c14_55 = arith.constant 14 : index
    %c0_56 = arith.constant 0 : index
    %68 = tpu.strided_load %arg24[%c14_55, %c0_56] {strides = array<i32: 2, 1>} : memref<28x128xf32, #tpu.memory_space<vmem>>, vector<7x128xf32>
    %c7 = arith.constant 7 : index
    %c128_57 = arith.constant 128 : index
    %69 = vector.load %arg21[%c7, %c128_57] : memref<14x384xf32, #tpu.memory_space<vmem>>, vector<7x128xf32>
    tpu.vector_store %arg21[%c7, %c128_57], %68 {strides = array<i32>} : memref<14x384xf32, #tpu.memory_space<vmem>>, vector<7x128xf32>,
    %c1_58 = arith.constant 1 : index
    %c0_59 = arith.constant 0 : index
    %70 = tpu.strided_load %arg24[%c1_58, %c0_59] {strides = array<i32: 2, 1>} : memref<28x128xf32, #tpu.memory_space<vmem>>, vector<7x128xf32>
    %c0_60 = arith.constant 0 : index
    %c256_61 = arith.constant 256 : index
    %71 = vector.load %arg21[%c0_60, %c256_61] : memref<14x384xf32, #tpu.memory_space<vmem>>, vector<7x128xf32>
    tpu.vector_store %arg21[%c0_60, %c256_61], %70 {strides = array<i32>} : memref<14x384xf32, #tpu.memory_space<vmem>>, vector<7x128xf32>,
    %c15_62 = arith.constant 15 : index
    %c0_63 = arith.constant 0 : index
    %72 = tpu.strided_load %arg24[%c15_62, %c0_63] {strides = array<i32: 2, 1>} : memref<28x128xf32, #tpu.memory_space<vmem>>, vector<7x128xf32>
    %c7_64 = arith.constant 7 : index
    %c256_65 = arith.constant 256 : index
    %73 = vector.load %arg21[%c7_64, %c256_65] : memref<14x384xf32, #tpu.memory_space<vmem>>, vector<7x128xf32>
    tpu.vector_store %arg21[%c7_64, %c256_65], %72 {strides = array<i32>} : memref<14x384xf32, #tpu.memory_space<vmem>>, vector<7x128xf32>,
    %c0_66 = arith.constant 0 : index
    %c0_67 = arith.constant 0 : index
    %74 = vector.load %arg21[%c0_66, %c0_67] : memref<14x384xf32, #tpu.memory_space<vmem>>, vector<14x384xf32>
    %75 = arith.truncf %74 : vector<14x384xf32> to vector<14x384xbf16>
    %c0_68 = arith.constant 0 : index
    %c0_69 = arith.constant 0 : index
    %76 = vector.load %arg5[%c0_68, %c0_69] : memref<384x128xbf16, #tpu.memory_space<vmem>>, vector<384x128xbf16>
    %cst_70 = arith.constant dense<0.000000e+00> : vector<14x128xf32>
    %77 = tpu.matmul %75, %76, %cst_70 {dimension_numbers = #tpu.dot_dimension_numbers<[1], [0], [0], [1], [0, 0, 1, 1], [], []>} : vector<14x384xbf16>, vector<384x128xbf16>, vector<14x128xf32> -> vector<14x128xf32>
    %cst_71 = arith.constant dense<0.000000e+00> : vector<128xf32>
    %78 = vector.multi_reduction <add>, %77, %cst_71 [0] : vector<14x128xf32> to vector<128xf32>
    %79 = vector.shape_cast %78 : vector<128xf32> to vector<1x128xf32>
    %cst_72 = arith.constant 1.400000e+01 : f32
    %80 = vector.broadcast %cst_72 : f32 to vector<1x128xf32>
    %81 = arith.divf %79, %80 : vector<1x128xf32>
    %82 = arith.mulf %77, %77 : vector<14x128xf32>
    %cst_73 = arith.constant dense<0.000000e+00> : vector<128xf32>
    %83 = vector.multi_reduction <add>, %82, %cst_73 [0] : vector<14x128xf32> to vector<128xf32>
    %84 = vector.shape_cast %83 : vector<128xf32> to vector<1x128xf32>
    %cst_74 = arith.constant 1.400000e+01 : f32
    %85 = vector.broadcast %cst_74 : f32 to vector<1x128xf32>
    %86 = arith.divf %84, %85 : vector<1x128xf32>
    %87 = tpu.concatenate %81, %86 in 0 : vector<1x128xf32>, vector<1x128xf32> -> vector<2x128xf32>
    %c0_75 = arith.constant 0 : index
    %c0_76 = arith.constant 0 : index
    %88 = vector.load %arg6[%c0_75, %c0_76] : memref<128x16xf32, #tpu.memory_space<vmem>>, vector<128x16xf32>
    %cst_77 = arith.constant dense<0.000000e+00> : vector<2x16xf32>
    %89 = tpu.matmul %87, %88, %cst_77 {dimension_numbers = #tpu.dot_dimension_numbers<[1], [0], [0], [1], [0, 0, 1, 1], [], []>} : vector<2x128xf32>, vector<128x16xf32>, vector<2x16xf32> -> vector<2x16xf32>
    %90 = vector.extract_strided_slice %89 {offsets = [0, 0], sizes = [1, 16], strides = [1, 1]} : vector<2x16xf32> to vector<1x16xf32>
    %91 = vector.extract_strided_slice %89 {offsets = [1, 0], sizes = [1, 16], strides = [1, 1]} : vector<2x16xf32> to vector<1x16xf32>
    %92 = arith.mulf %90, %90 : vector<1x16xf32>
    %93 = arith.subf %91, %92 : vector<1x16xf32>
    %cst_78 = arith.constant 0.000000e+00 : f32
    %94 = vector.broadcast %cst_78 : f32 to vector<1x16xf32>
    %95 = arith.maximumf %93, %94 : vector<1x16xf32>
    %c0_79 = arith.constant 0 : index
    %c0_80 = arith.constant 0 : index
    %96 = vector.load %arg8[%c0_79, %c0_80] : memref<2x16xf32, #tpu.memory_space<vmem>>, vector<2x16xf32>
    %97 = vector.extract_strided_slice %96 {offsets = [0, 0], sizes = [1, 16], strides = [1, 1]} : vector<2x16xf32> to vector<1x16xf32>
    %cst_81 = arith.constant 9.99999974E-6 : f32
    %98 = vector.broadcast %cst_81 : f32 to vector<1x16xf32>
    %99 = arith.addf %95, %98 : vector<1x16xf32>
    %100 = math.rsqrt %99 : vector<1x16xf32>
    %101 = arith.mulf %97, %100 : vector<1x16xf32>
    %102 = vector.extract_strided_slice %96 {offsets = [1, 0], sizes = [1, 16], strides = [1, 1]} : vector<2x16xf32> to vector<1x16xf32>
    %103 = arith.mulf %90, %101 : vector<1x16xf32>
    %104 = arith.subf %102, %103 : vector<1x16xf32>
    %105 = tpu.concatenate %101, %104 in 0 : vector<1x16xf32>, vector<1x16xf32> -> vector<2x16xf32>
    %c0_82 = arith.constant 0 : index
    %c0_83 = arith.constant 0 : index
    %106 = vector.load %arg7[%c0_82, %c0_83] : memref<16x128xf32, #tpu.memory_space<vmem>>, vector<16x128xf32>
    %cst_84 = arith.constant dense<0.000000e+00> : vector<2x128xf32>
    %107 = tpu.matmul %105, %106, %cst_84 {dimension_numbers = #tpu.dot_dimension_numbers<[1], [0], [0], [1], [0, 0, 1, 1], [], []>} : vector<2x16xf32>, vector<16x128xf32>, vector<2x128xf32> -> vector<2x128xf32>
    %108 = vector.extract_strided_slice %107 {offsets = [0, 0], sizes = [1, 128], strides = [1, 1]} : vector<2x128xf32> to vector<1x128xf32>
    %109 = vector.broadcast %108 : vector<1x128xf32> to vector<14x128xf32>
    %110 = arith.mulf %77, %109 : vector<14x128xf32>
    %111 = vector.extract_strided_slice %107 {offsets = [1, 0], sizes = [1, 128], strides = [1, 1]} : vector<2x128xf32> to vector<1x128xf32>
    %112 = vector.broadcast %111 : vector<1x128xf32> to vector<14x128xf32>
    %113 = arith.addf %110, %112 : vector<14x128xf32>
    %cst_85 = arith.constant 0.000000e+00 : f32
    %114 = vector.broadcast %cst_85 : f32 to vector<14x128xf32>
    %115 = arith.cmpf oge, %113, %114 : vector<14x128xf32>
    %cst_86 = arith.constant 0.00999999977 : f32
    %116 = vector.broadcast %cst_86 : f32 to vector<14x128xf32>
    %117 = arith.mulf %116, %113 : vector<14x128xf32>
    %118 = arith.select %115, %113, %117 : vector<14x128xi1>, vector<14x128xf32>
    %c0_87 = arith.constant 0 : index
    %c0_88 = arith.constant 0 : index
    %119 = vector.load %arg25[%c0_87, %c0_88] : memref<14x128xf32, #tpu.memory_space<vmem>>, vector<14x128xf32>
    tpu.vector_store %arg25[%c0_87, %c0_88], %118 {strides = array<i32>} : memref<14x128xf32, #tpu.memory_space<vmem>>, vector<14x128xf32>,
    %cst_89 = arith.constant 0.000000e+00 : f32
    %120 = vector.broadcast %cst_89 : f32 to vector<8x384xf32>
    %c0_90 = arith.constant 0 : index
    %c0_91 = arith.constant 0 : index
    %121 = vector.load %arg22[%c0_90, %c0_91] : memref<8x384xf32, #tpu.memory_space<vmem>>, vector<8x384xf32>
    tpu.vector_store %arg22[%c0_90, %c0_91], %120 {strides = array<i32>} : memref<8x384xf32, #tpu.memory_space<vmem>>, vector<8x384xf32>,
    %c1_92 = arith.constant 1 : index
    %c0_93 = arith.constant 0 : index
    %122 = tpu.strided_load %arg25[%c1_92, %c0_93] {strides = array<i32: 2, 1>} : memref<14x128xf32, #tpu.memory_space<vmem>>, vector<3x128xf32>
    %c1_94 = arith.constant 1 : index
    %c0_95 = arith.constant 0 : index
    %123 = vector.load %arg22[%c1_94, %c0_95] : memref<8x384xf32, #tpu.memory_space<vmem>>, vector<3x128xf32>
    tpu.vector_store %arg22[%c1_94, %c0_95], %122 {strides = array<i32>} : memref<8x384xf32, #tpu.memory_space<vmem>>, vector<3x128xf32>,
    %c8_96 = arith.constant 8 : index
    %c0_97 = arith.constant 0 : index
    %124 = tpu.strided_load %arg25[%c8_96, %c0_97] {strides = array<i32: 2, 1>} : memref<14x128xf32, #tpu.memory_space<vmem>>, vector<3x128xf32>
    %c5 = arith.constant 5 : index
    %c0_98 = arith.constant 0 : index
    %125 = vector.load %arg22[%c5, %c0_98] : memref<8x384xf32, #tpu.memory_space<vmem>>, vector<3x128xf32>
    tpu.vector_store %arg22[%c5, %c0_98], %124 {strides = array<i32>} : memref<8x384xf32, #tpu.memory_space<vmem>>, vector<3x128xf32>,
    %c0_99 = arith.constant 0 : index
    %c0_100 = arith.constant 0 : index
    %126 = tpu.strided_load %arg25[%c0_99, %c0_100] {strides = array<i32: 2, 1>} : memref<14x128xf32, #tpu.memory_space<vmem>>, vector<4x128xf32>
    %c0_101 = arith.constant 0 : index
    %c128_102 = arith.constant 128 : index
    %127 = vector.load %arg22[%c0_101, %c128_102] : memref<8x384xf32, #tpu.memory_space<vmem>>, vector<4x128xf32>
    tpu.vector_store %arg22[%c0_101, %c128_102], %126 {strides = array<i32>} : memref<8x384xf32, #tpu.memory_space<vmem>>, vector<4x128xf32>,
    %c7_103 = arith.constant 7 : index
    %c0_104 = arith.constant 0 : index
    %128 = tpu.strided_load %arg25[%c7_103, %c0_104] {strides = array<i32: 2, 1>} : memref<14x128xf32, #tpu.memory_space<vmem>>, vector<4x128xf32>
    %c4 = arith.constant 4 : index
    %c128_105 = arith.constant 128 : index
    %129 = vector.load %arg22[%c4, %c128_105] : memref<8x384xf32, #tpu.memory_space<vmem>>, vector<4x128xf32>
    tpu.vector_store %arg22[%c4, %c128_105], %128 {strides = array<i32>} : memref<8x384xf32, #tpu.memory_space<vmem>>, vector<4x128xf32>,
    %c1_106 = arith.constant 1 : index
    %c0_107 = arith.constant 0 : index
    %130 = tpu.strided_load %arg25[%c1_106, %c0_107] {strides = array<i32: 2, 1>} : memref<14x128xf32, #tpu.memory_space<vmem>>, vector<3x128xf32>
    %c0_108 = arith.constant 0 : index
    %c256_109 = arith.constant 256 : index
    %131 = vector.load %arg22[%c0_108, %c256_109] : memref<8x384xf32, #tpu.memory_space<vmem>>, vector<3x128xf32>
    tpu.vector_store %arg22[%c0_108, %c256_109], %130 {strides = array<i32>} : memref<8x384xf32, #tpu.memory_space<vmem>>, vector<3x128xf32>,
    %c8_110 = arith.constant 8 : index
    %c0_111 = arith.constant 0 : index
    %132 = tpu.strided_load %arg25[%c8_110, %c0_111] {strides = array<i32: 2, 1>} : memref<14x128xf32, #tpu.memory_space<vmem>>, vector<3x128xf32>
    %c4_112 = arith.constant 4 : index
    %c256_113 = arith.constant 256 : index
    %133 = vector.load %arg22[%c4_112, %c256_113] : memref<8x384xf32, #tpu.memory_space<vmem>>, vector<3x128xf32>
    tpu.vector_store %arg22[%c4_112, %c256_113], %132 {strides = array<i32>} : memref<8x384xf32, #tpu.memory_space<vmem>>, vector<3x128xf32>,
    %c0_114 = arith.constant 0 : index
    %c0_115 = arith.constant 0 : index
    %134 = vector.load %arg22[%c0_114, %c0_115] : memref<8x384xf32, #tpu.memory_space<vmem>>, vector<8x384xf32>
    %135 = arith.truncf %134 : vector<8x384xf32> to vector<8x384xbf16>
    %c0_116 = arith.constant 0 : index
    %c0_117 = arith.constant 0 : index
    %136 = vector.load %arg9[%c0_116, %c0_117] : memref<384x128xbf16, #tpu.memory_space<vmem>>, vector<384x128xbf16>
    %cst_118 = arith.constant dense<0.000000e+00> : vector<8x128xf32>
    %137 = tpu.matmul %135, %136, %cst_118 {dimension_numbers = #tpu.dot_dimension_numbers<[1], [0], [0], [1], [0, 0, 1, 1], [], []>} : vector<8x384xbf16>, vector<384x128xbf16>, vector<8x128xf32> -> vector<8x128xf32>
    %cst_119 = arith.constant dense<0.000000e+00> : vector<128xf32>
    %138 = vector.multi_reduction <add>, %137, %cst_119 [0] : vector<8x128xf32> to vector<128xf32>
    %139 = vector.shape_cast %138 : vector<128xf32> to vector<1x128xf32>
    %cst_120 = arith.constant 8.000000e+00 : f32
    %140 = vector.broadcast %cst_120 : f32 to vector<1x128xf32>
    %141 = arith.divf %139, %140 : vector<1x128xf32>
    %142 = arith.mulf %137, %137 : vector<8x128xf32>
    %cst_121 = arith.constant dense<0.000000e+00> : vector<128xf32>
    %143 = vector.multi_reduction <add>, %142, %cst_121 [0] : vector<8x128xf32> to vector<128xf32>
    %144 = vector.shape_cast %143 : vector<128xf32> to vector<1x128xf32>
    %cst_122 = arith.constant 8.000000e+00 : f32
    %145 = vector.broadcast %cst_122 : f32 to vector<1x128xf32>
    %146 = arith.divf %144, %145 : vector<1x128xf32>
    %147 = tpu.concatenate %141, %146 in 0 : vector<1x128xf32>, vector<1x128xf32> -> vector<2x128xf32>
    %c0_123 = arith.constant 0 : index
    %c0_124 = arith.constant 0 : index
    %148 = vector.load %arg10[%c0_123, %c0_124] : memref<128x32xf32, #tpu.memory_space<vmem>>, vector<128x32xf32>
    %cst_125 = arith.constant dense<0.000000e+00> : vector<2x32xf32>
    %149 = tpu.matmul %147, %148, %cst_125 {dimension_numbers = #tpu.dot_dimension_numbers<[1], [0], [0], [1], [0, 0, 1, 1], [], []>} : vector<2x128xf32>, vector<128x32xf32>, vector<2x32xf32> -> vector<2x32xf32>
    %150 = vector.extract_strided_slice %149 {offsets = [0, 0], sizes = [1, 32], strides = [1, 1]} : vector<2x32xf32> to vector<1x32xf32>
    %151 = vector.extract_strided_slice %149 {offsets = [1, 0], sizes = [1, 32], strides = [1, 1]} : vector<2x32xf32> to vector<1x32xf32>
    %152 = arith.mulf %150, %150 : vector<1x32xf32>
    %153 = arith.subf %151, %152 : vector<1x32xf32>
    %cst_126 = arith.constant 0.000000e+00 : f32
    %154 = vector.broadcast %cst_126 : f32 to vector<1x32xf32>
    %155 = arith.maximumf %153, %154 : vector<1x32xf32>
    %c0_127 = arith.constant 0 : index
    %c0_128 = arith.constant 0 : index
    %156 = vector.load %arg12[%c0_127, %c0_128] : memref<2x32xf32, #tpu.memory_space<vmem>>, vector<2x32xf32>
    %157 = vector.extract_strided_slice %156 {offsets = [0, 0], sizes = [1, 32], strides = [1, 1]} : vector<2x32xf32> to vector<1x32xf32>
    %cst_129 = arith.constant 9.99999974E-6 : f32
    %158 = vector.broadcast %cst_129 : f32 to vector<1x32xf32>
    %159 = arith.addf %155, %158 : vector<1x32xf32>
    %160 = math.rsqrt %159 : vector<1x32xf32>
    %161 = arith.mulf %157, %160 : vector<1x32xf32>
    %162 = vector.extract_strided_slice %156 {offsets = [1, 0], sizes = [1, 32], strides = [1, 1]} : vector<2x32xf32> to vector<1x32xf32>
    %163 = arith.mulf %150, %161 : vector<1x32xf32>
    %164 = arith.subf %162, %163 : vector<1x32xf32>
    %165 = tpu.concatenate %161, %164 in 0 : vector<1x32xf32>, vector<1x32xf32> -> vector<2x32xf32>
    %c0_130 = arith.constant 0 : index
    %c0_131 = arith.constant 0 : index
    %166 = vector.load %arg11[%c0_130, %c0_131] : memref<32x128xf32, #tpu.memory_space<vmem>>, vector<32x128xf32>
    %cst_132 = arith.constant dense<0.000000e+00> : vector<2x128xf32>
    %167 = tpu.matmul %165, %166, %cst_132 {dimension_numbers = #tpu.dot_dimension_numbers<[1], [0], [0], [1], [0, 0, 1, 1], [], []>} : vector<2x32xf32>, vector<32x128xf32>, vector<2x128xf32> -> vector<2x128xf32>
    %168 = vector.extract_strided_slice %167 {offsets = [0, 0], sizes = [1, 128], strides = [1, 1]} : vector<2x128xf32> to vector<1x128xf32>
    %169 = vector.broadcast %168 : vector<1x128xf32> to vector<8x128xf32>
    %170 = arith.mulf %137, %169 : vector<8x128xf32>
    %171 = vector.extract_strided_slice %167 {offsets = [1, 0], sizes = [1, 128], strides = [1, 1]} : vector<2x128xf32> to vector<1x128xf32>
    %172 = vector.broadcast %171 : vector<1x128xf32> to vector<8x128xf32>
    %173 = arith.addf %170, %172 : vector<8x128xf32>
    %cst_133 = arith.constant 0.000000e+00 : f32
    %174 = vector.broadcast %cst_133 : f32 to vector<8x128xf32>
    %175 = arith.cmpf oge, %173, %174 : vector<8x128xf32>
    %cst_134 = arith.constant 0.00999999977 : f32
    %176 = vector.broadcast %cst_134 : f32 to vector<8x128xf32>
    %177 = arith.mulf %176, %173 : vector<8x128xf32>
    %178 = arith.select %175, %173, %177 : vector<8x128xi1>, vector<8x128xf32>
    %c0_135 = arith.constant 0 : index
    %c0_136 = arith.constant 0 : index
    %179 = vector.load %arg26[%c0_135, %c0_136] : memref<8x128xf32, #tpu.memory_space<vmem>>, vector<8x128xf32>
    tpu.vector_store %arg26[%c0_135, %c0_136], %178 {strides = array<i32>} : memref<8x128xf32, #tpu.memory_space<vmem>>, vector<8x128xf32>,
    %c0_137 = arith.constant 0 : index
    %c0_138 = arith.constant 0 : index
    %180 = vector.load %arg26[%c0_137, %c0_138] : memref<8x128xf32, #tpu.memory_space<vmem>>, vector<2x128xf32>
    %c0_139 = arith.constant 0 : index
    %c0_140 = arith.constant 0 : index
    %181 = vector.load %arg23[%c0_139, %c0_140] : memref<4x384xf32, #tpu.memory_space<vmem>>, vector<2x128xf32>
    tpu.vector_store %arg23[%c0_139, %c0_140], %180 {strides = array<i32>} : memref<4x384xf32, #tpu.memory_space<vmem>>, vector<2x128xf32>,
    %c4_141 = arith.constant 4 : index
    %c0_142 = arith.constant 0 : index
    %182 = vector.load %arg26[%c4_141, %c0_142] : memref<8x128xf32, #tpu.memory_space<vmem>>, vector<2x128xf32>
    %c2 = arith.constant 2 : index
    %c0_143 = arith.constant 0 : index
    %183 = vector.load %arg23[%c2, %c0_143] : memref<4x384xf32, #tpu.memory_space<vmem>>, vector<2x128xf32>
    tpu.vector_store %arg23[%c2, %c0_143], %182 {strides = array<i32>} : memref<4x384xf32, #tpu.memory_space<vmem>>, vector<2x128xf32>,
    %c1_144 = arith.constant 1 : index
    %c0_145 = arith.constant 0 : index
    %184 = vector.load %arg26[%c1_144, %c0_145] : memref<8x128xf32, #tpu.memory_space<vmem>>, vector<2x128xf32>
    %c0_146 = arith.constant 0 : index
    %c128_147 = arith.constant 128 : index
    %185 = vector.load %arg23[%c0_146, %c128_147] : memref<4x384xf32, #tpu.memory_space<vmem>>, vector<2x128xf32>
    tpu.vector_store %arg23[%c0_146, %c128_147], %184 {strides = array<i32>} : memref<4x384xf32, #tpu.memory_space<vmem>>, vector<2x128xf32>,
    %c5_148 = arith.constant 5 : index
    %c0_149 = arith.constant 0 : index
    %186 = vector.load %arg26[%c5_148, %c0_149] : memref<8x128xf32, #tpu.memory_space<vmem>>, vector<2x128xf32>
    %c2_150 = arith.constant 2 : index
    %c128_151 = arith.constant 128 : index
    %187 = vector.load %arg23[%c2_150, %c128_151] : memref<4x384xf32, #tpu.memory_space<vmem>>, vector<2x128xf32>
    tpu.vector_store %arg23[%c2_150, %c128_151], %186 {strides = array<i32>} : memref<4x384xf32, #tpu.memory_space<vmem>>, vector<2x128xf32>,
    %c2_152 = arith.constant 2 : index
    %c0_153 = arith.constant 0 : index
    %188 = vector.load %arg26[%c2_152, %c0_153] : memref<8x128xf32, #tpu.memory_space<vmem>>, vector<2x128xf32>
    %c0_154 = arith.constant 0 : index
    %c256_155 = arith.constant 256 : index
    %189 = vector.load %arg23[%c0_154, %c256_155] : memref<4x384xf32, #tpu.memory_space<vmem>>, vector<2x128xf32>
    tpu.vector_store %arg23[%c0_154, %c256_155], %188 {strides = array<i32>} : memref<4x384xf32, #tpu.memory_space<vmem>>, vector<2x128xf32>,
    %c6 = arith.constant 6 : index
    %c0_156 = arith.constant 0 : index
    %190 = vector.load %arg26[%c6, %c0_156] : memref<8x128xf32, #tpu.memory_space<vmem>>, vector<2x128xf32>
    %c2_157 = arith.constant 2 : index
    %c256_158 = arith.constant 256 : index
    %191 = vector.load %arg23[%c2_157, %c256_158] : memref<4x384xf32, #tpu.memory_space<vmem>>, vector<2x128xf32>
    tpu.vector_store %arg23[%c2_157, %c256_158], %190 {strides = array<i32>} : memref<4x384xf32, #tpu.memory_space<vmem>>, vector<2x128xf32>,
    %c0_159 = arith.constant 0 : index
    %c0_160 = arith.constant 0 : index
    %192 = vector.load %arg23[%c0_159, %c0_160] : memref<4x384xf32, #tpu.memory_space<vmem>>, vector<4x384xf32>
    %193 = arith.truncf %192 : vector<4x384xf32> to vector<4x384xbf16>
    %c0_161 = arith.constant 0 : index
    %c0_162 = arith.constant 0 : index
    %194 = vector.load %arg13[%c0_161, %c0_162] : memref<384x128xbf16, #tpu.memory_space<vmem>>, vector<384x128xbf16>
    %cst_163 = arith.constant dense<0.000000e+00> : vector<4x128xf32>
    %195 = tpu.matmul %193, %194, %cst_163 {dimension_numbers = #tpu.dot_dimension_numbers<[1], [0], [0], [1], [0, 0, 1, 1], [], []>} : vector<4x384xbf16>, vector<384x128xbf16>, vector<4x128xf32> -> vector<4x128xf32>
    %cst_164 = arith.constant dense<0.000000e+00> : vector<128xf32>
    %196 = vector.multi_reduction <add>, %195, %cst_164 [0] : vector<4x128xf32> to vector<128xf32>
    %197 = vector.shape_cast %196 : vector<128xf32> to vector<1x128xf32>
    %cst_165 = arith.constant 4.000000e+00 : f32
    %198 = vector.broadcast %cst_165 : f32 to vector<1x128xf32>
    %199 = arith.divf %197, %198 : vector<1x128xf32>
    %200 = arith.mulf %195, %195 : vector<4x128xf32>
    %cst_166 = arith.constant dense<0.000000e+00> : vector<128xf32>
    %201 = vector.multi_reduction <add>, %200, %cst_166 [0] : vector<4x128xf32> to vector<128xf32>
    %202 = vector.shape_cast %201 : vector<128xf32> to vector<1x128xf32>
    %cst_167 = arith.constant 4.000000e+00 : f32
    %203 = vector.broadcast %cst_167 : f32 to vector<1x128xf32>
    %204 = arith.divf %202, %203 : vector<1x128xf32>
    %205 = tpu.concatenate %199, %204 in 0 : vector<1x128xf32>, vector<1x128xf32> -> vector<2x128xf32>
    %c0_168 = arith.constant 0 : index
    %c0_169 = arith.constant 0 : index
    %206 = vector.load %arg14[%c0_168, %c0_169] : memref<128x32xf32, #tpu.memory_space<vmem>>, vector<128x32xf32>
    %cst_170 = arith.constant dense<0.000000e+00> : vector<2x32xf32>
    %207 = tpu.matmul %205, %206, %cst_170 {dimension_numbers = #tpu.dot_dimension_numbers<[1], [0], [0], [1], [0, 0, 1, 1], [], []>} : vector<2x128xf32>, vector<128x32xf32>, vector<2x32xf32> -> vector<2x32xf32>
    %208 = vector.extract_strided_slice %207 {offsets = [0, 0], sizes = [1, 32], strides = [1, 1]} : vector<2x32xf32> to vector<1x32xf32>
    %209 = vector.extract_strided_slice %207 {offsets = [1, 0], sizes = [1, 32], strides = [1, 1]} : vector<2x32xf32> to vector<1x32xf32>
    %210 = arith.mulf %208, %208 : vector<1x32xf32>
    %211 = arith.subf %209, %210 : vector<1x32xf32>
    %cst_171 = arith.constant 0.000000e+00 : f32
    %212 = vector.broadcast %cst_171 : f32 to vector<1x32xf32>
    %213 = arith.maximumf %211, %212 : vector<1x32xf32>
    %c0_172 = arith.constant 0 : index
    %c0_173 = arith.constant 0 : index
    %214 = vector.load %arg16[%c0_172, %c0_173] : memref<2x32xf32, #tpu.memory_space<vmem>>, vector<2x32xf32>
    %215 = vector.extract_strided_slice %214 {offsets = [0, 0], sizes = [1, 32], strides = [1, 1]} : vector<2x32xf32> to vector<1x32xf32>
    %cst_174 = arith.constant 9.99999974E-6 : f32
    %216 = vector.broadcast %cst_174 : f32 to vector<1x32xf32>
    %217 = arith.addf %213, %216 : vector<1x32xf32>
    %218 = math.rsqrt %217 : vector<1x32xf32>
    %219 = arith.mulf %215, %218 : vector<1x32xf32>
    %220 = vector.extract_strided_slice %214 {offsets = [1, 0], sizes = [1, 32], strides = [1, 1]} : vector<2x32xf32> to vector<1x32xf32>
    %221 = arith.mulf %208, %219 : vector<1x32xf32>
    %222 = arith.subf %220, %221 : vector<1x32xf32>
    %223 = tpu.concatenate %219, %222 in 0 : vector<1x32xf32>, vector<1x32xf32> -> vector<2x32xf32>
    %c0_175 = arith.constant 0 : index
    %c0_176 = arith.constant 0 : index
    %224 = vector.load %arg15[%c0_175, %c0_176] : memref<32x128xf32, #tpu.memory_space<vmem>>, vector<32x128xf32>
    %cst_177 = arith.constant dense<0.000000e+00> : vector<2x128xf32>
    %225 = tpu.matmul %223, %224, %cst_177 {dimension_numbers = #tpu.dot_dimension_numbers<[1], [0], [0], [1], [0, 0, 1, 1], [], []>} : vector<2x32xf32>, vector<32x128xf32>, vector<2x128xf32> -> vector<2x128xf32>
    %226 = vector.extract_strided_slice %225 {offsets = [0, 0], sizes = [1, 128], strides = [1, 1]} : vector<2x128xf32> to vector<1x128xf32>
    %227 = vector.broadcast %226 : vector<1x128xf32> to vector<4x128xf32>
    %228 = arith.mulf %195, %227 : vector<4x128xf32>
    %229 = vector.extract_strided_slice %225 {offsets = [1, 0], sizes = [1, 128], strides = [1, 1]} : vector<2x128xf32> to vector<1x128xf32>
    %230 = vector.broadcast %229 : vector<1x128xf32> to vector<4x128xf32>
    %231 = arith.addf %228, %230 : vector<4x128xf32>
    %cst_178 = arith.constant 0.000000e+00 : f32
    %232 = vector.broadcast %cst_178 : f32 to vector<4x128xf32>
    %233 = arith.cmpf oge, %231, %232 : vector<4x128xf32>
    %cst_179 = arith.constant 0.00999999977 : f32
    %234 = vector.broadcast %cst_179 : f32 to vector<4x128xf32>
    %235 = arith.mulf %234, %231 : vector<4x128xf32>
    %236 = arith.select %233, %231, %235 : vector<4x128xi1>, vector<4x128xf32>
    %c0_180 = arith.constant 0 : index
    %c0_181 = arith.constant 0 : index
    %237 = vector.load %arg27[%c0_180, %c0_181] : memref<4x128xf32, #tpu.memory_space<vmem>>, vector<4x128xf32>
    tpu.vector_store %arg27[%c0_180, %c0_181], %236 {strides = array<i32>} : memref<4x128xf32, #tpu.memory_space<vmem>>, vector<4x128xf32>,
    %c0_182 = arith.constant 0 : index
    %c0_183 = arith.constant 0 : index
    %238 = tpu.strided_load %arg27[%c0_182, %c0_183] {strides = array<i32: 2, 1>} : memref<4x128xf32, #tpu.memory_space<vmem>>, vector<2x128xf32>
    %c0_184 = arith.constant 0 : index
    %c0_185 = arith.constant 0 : index
    %239 = vector.load %arg17[%c0_184, %c0_185] : memref<128x128xf32, #tpu.memory_space<vmem>>, vector<128x128xf32>
    %cst_186 = arith.constant dense<0.000000e+00> : vector<2x128xf32>
    %240 = tpu.matmul %238, %239, %cst_186 {dimension_numbers = #tpu.dot_dimension_numbers<[1], [0], [0], [1], [0, 0, 1, 1], [], []>} : vector<2x128xf32>, vector<128x128xf32>, vector<2x128xf32> -> vector<2x128xf32>
    %c1_187 = arith.constant 1 : index
    %c0_188 = arith.constant 0 : index
    %241 = tpu.strided_load %arg27[%c1_187, %c0_188] {strides = array<i32: 2, 1>} : memref<4x128xf32, #tpu.memory_space<vmem>>, vector<2x128xf32>
    %c0_189 = arith.constant 0 : index
    %c0_190 = arith.constant 0 : index
    %242 = vector.load %arg18[%c0_189, %c0_190] : memref<128x128xf32, #tpu.memory_space<vmem>>, vector<128x128xf32>
    %cst_191 = arith.constant dense<0.000000e+00> : vector<2x128xf32>
    %243 = tpu.matmul %241, %242, %cst_191 {dimension_numbers = #tpu.dot_dimension_numbers<[1], [0], [0], [1], [0, 0, 1, 1], [], []>} : vector<2x128xf32>, vector<128x128xf32>, vector<2x128xf32> -> vector<2x128xf32>
    %244 = arith.addf %240, %243 : vector<2x128xf32>
    %c0_192 = arith.constant 0 : index
    %c0_193 = arith.constant 0 : index
    %245 = vector.load %arg19[%c0_192, %c0_193] : memref<2x128xf32, #tpu.memory_space<vmem>>, vector<2x128xf32>
    tpu.vector_store %arg19[%c0_192, %c0_193], %244 {strides = array<i32>} : memref<2x128xf32, #tpu.memory_space<vmem>>, vector<2x128xf32>,
    return
  }
}

</mosaic_0001>

<llo_original>
// kernel: encoder_forward.1
$region0: #{encoder_forward.1}
  #allocation0 [shape = 'u32[]', space=smem, size = 0x4, offset = 0x4, fixed_abs, tag = 'smem constant byte address 0x4 - core index']
  #allocation1 [shape = 'u32[144,128]{1,0:T(1,128)}', space=vmem, size = 0x12000, scoped, tag = 'internal scratch']
  #allocation2 [shape = 'f32[28,384]{1,0:T(8,128)}', space=vmem, size = 0xc000, scoped, tag = 'scratch operand']
  #allocation3 [shape = 'f32[14,384]{1,0:T(8,128)}', space=vmem, size = 0x6000, scoped, tag = 'scratch operand']
  #allocation4 [shape = 'f32[8,384]{1,0:T(8,128)}', space=vmem, size = 0x3000, scoped, tag = 'scratch operand']
  #allocation5 [shape = 'f32[4,384]{1,0:T(4,128)}', space=vmem, size = 0x1800, scoped, tag = 'scratch operand']
  #allocation6 [shape = 'f32[28,128]{1,0:T(8,128)}', space=vmem, size = 0x4000, scoped, tag = 'scratch operand']
  #allocation7 [shape = 'f32[14,128]{1,0:T(8,128)}', space=vmem, size = 0x2000, scoped, tag = 'scratch operand']
  #allocation8 [shape = 'f32[8,128]{1,0:T(8,128)}', space=vmem, size = 0x1000, scoped, tag = 'scratch operand']
  #allocation9 [shape = 'f32[4,128]{1,0:T(4,128)}', space=vmem, size = 0x800, scoped, tag = 'scratch operand']
  %s0 = inlined_call_operand.vmem [shape: f32[56,128], index: 0, kind: input, shape index: {}]
  %s1 = inlined_call_operand.vmem [shape: bf16[384,128], index: 1, kind: input, shape index: {}]
  %s2 = inlined_call_operand.vmem [shape: f32[128,8], index: 2, kind: input, shape index: {}]
  %s3 = inlined_call_operand.vmem [shape: f32[8,128], index: 3, kind: input, shape index: {}]
  %s4 = inlined_call_operand.vmem [shape: f32[2,8], index: 4, kind: input, shape index: {}]
  %s5 = inlined_call_operand.vmem [shape: bf16[384,128], index: 5, kind: input, shape index: {}]
  %s6 = inlined_call_operand.vmem [shape: f32[128,16], index: 6, kind: input, shape index: {}]
  %s7 = inlined_call_operand.vmem [shape: f32[16,128], index: 7, kind: input, shape index: {}]
  %s8 = inlined_call_operand.vmem [shape: f32[2,16], index: 8, kind: input, shape index: {}]
  %s9 = inlined_call_operand.vmem [shape: bf16[384,128], index: 9, kind: input, shape index: {}]
  %s10 = inlined_call_operand.vmem [shape: f32[128,32], index: 10, kind: input, shape index: {}]
  %s11 = inlined_call_operand.vmem [shape: f32[32,128], index: 11, kind: input, shape index: {}]
  %s12 = inlined_call_operand.vmem [shape: f32[2,32], index: 12, kind: input, shape index: {}]
  %s13 = inlined_call_operand.vmem [shape: bf16[384,128], index: 13, kind: input, shape index: {}]
  %s14 = inlined_call_operand.vmem [shape: f32[128,32], index: 14, kind: input, shape index: {}]
  %s15 = inlined_call_operand.vmem [shape: f32[32,128], index: 15, kind: input, shape index: {}]
  %s16 = inlined_call_operand.vmem [shape: f32[2,32], index: 16, kind: input, shape index: {}]
  %s17 = inlined_call_operand.vmem [shape: f32[128,128], index: 17, kind: input, shape index: {}]
  %s18 = inlined_call_operand.vmem [shape: f32[128,128], index: 18, kind: input, shape index: {}]
  %s19 = inlined_call_operand.hbm [shape: f32[2,128], index: 19, kind: output, shape index: {}]
  %s20 = sld [smem:[#allocation0]]
  $region86: #{encoder_forward.1} parent=0
    _
  %s22 = ssub.s32 1, %s20
  %s23 = scalar_select 0, %s22, %s20
  $region1: #{encoder_forward.1} parent=0
    #allocation10 [shape = 'u8[1024]{0}', space=vmem, size = 0x400, scoped, tag = 'output window, operand 0, single buffered']
    #allocation11 [shape = 's32[1]{0}', space=sflag, size = 0x4, scoped, tag = 'scoped memory for encoder_forward.1']
    %24 = vsyncpa [#allocation11], 0
    // Predicated region
    $region2: #{encoder_forward.1} parent=1 // pred_check
      _
    $region3: #{encoder_forward.1} parent=1 // pred_check_branch
      %26 = sbr.rel (0) target = $region5
    $region4: #{encoder_forward.1} parent=1 // pred_region
      _
    $region5: #{encoder_forward.1} parent=1 // pred_fallthru
      _
    // Predicated region
    $region6: #{encoder_forward.1} parent=1 // pred_check
      _
    $region7: #{encoder_forward.1} parent=1 // pred_check_branch
      %28 = sbr.rel (0) target = $region9
    $region8: #{encoder_forward.1} parent=1 // pred_region
      _
    $region9: #{encoder_forward.1} parent=1 // pred_fallthru
      _
    // Predicated region
    $region10: #{encoder_forward.1} parent=1 // pred_check
      _
    $region11: #{encoder_forward.1} parent=1 // pred_check_branch
      %30 = sbr.rel (0) target = $region13
    $region12: #{encoder_forward.1} parent=1 // pred_region
      _
    $region13: #{encoder_forward.1} parent=1 // pred_fallthru
      _
    // Predicated region
    $region14: #{encoder_forward.1} parent=1 // pred_check
      _
    $region15: #{encoder_forward.1} parent=1 // pred_check_branch
      %32 = sbr.rel (0) target = $region17
    $region16: #{encoder_forward.1} parent=1 // pred_region
      _
    $region17: #{encoder_forward.1} parent=1 // pred_fallthru
      _
    // Predicated region
    $region18: #{encoder_forward.1} parent=1 // pred_check
      _
    $region19: #{encoder_forward.1} parent=1 // pred_check_branch
      %34 = sbr.rel (0) target = $region21
    $region20: #{encoder_forward.1} parent=1 // pred_region
      _
    $region21: #{encoder_forward.1} parent=1 // pred_fallthru
      _
    // Predicated region
    $region22: #{encoder_forward.1} parent=1 // pred_check
      _
    $region23: #{encoder_forward.1} parent=1 // pred_check_branch
      %36 = sbr.rel (0) target = $region25
    $region24: #{encoder_forward.1} parent=1 // pred_region
      _
    $region25: #{encoder_forward.1} parent=1 // pred_fallthru
      _
    // Predicated region
    $region26: #{encoder_forward.1} parent=1 // pred_check
      _
    $region27: #{encoder_forward.1} parent=1 // pred_check_branch
      %38 = sbr.rel (0) target = $region29
    $region28: #{encoder_forward.1} parent=1 // pred_region
      _
    $region29: #{encoder_forward.1} parent=1 // pred_fallthru
      _
    // Predicated region
    $region30: #{encoder_forward.1} parent=1 // pred_check
      _
    $region31: #{encoder_forward.1} parent=1 // pred_check_branch
      %40 = sbr.rel (0) target = $region33
    $region32: #{encoder_forward.1} parent=1 // pred_region
      _
    $region33: #{encoder_forward.1} parent=1 // pred_fallthru
      _
    // Predicated region
    $region34: #{encoder_forward.1} parent=1 // pred_check
      _
    $region35: #{encoder_forward.1} parent=1 // pred_check_branch
      %42 = sbr.rel (0) target = $region37
    $region36: #{encoder_forward.1} parent=1 // pred_region
      _
    $region37: #{encoder_forward.1} parent=1 // pred_fallthru
      _
    // Predicated region
    $region38: #{encoder_forward.1} parent=1 // pred_check
      _
    $region39: #{encoder_forward.1} parent=1 // pred_check_branch
      %44 = sbr.rel (0) target = $region41
    $region40: #{encoder_forward.1} parent=1 // pred_region
      _
    $region41: #{encoder_forward.1} parent=1 // pred_fallthru
      _
    // Predicated region
    $region42: #{encoder_forward.1} parent=1 // pred_check
      _
    $region43: #{encoder_forward.1} parent=1 // pred_check_branch
      %46 = sbr.rel (0) target = $region45
    $region44: #{encoder_forward.1} parent=1 // pred_region
      _
    $region45: #{encoder_forward.1} parent=1 // pred_fallthru
      _
    // Predicated region
    $region46: #{encoder_forward.1} parent=1 // pred_check
      _
    $region47: #{encoder_forward.1} parent=1 // pred_check_branch
      %48 = sbr.rel (0) target = $region49
    $region48: #{encoder_forward.1} parent=1 // pred_region
      _
    $region49: #{encoder_forward.1} parent=1 // pred_fallthru
      _
    // Predicated region
    $region50: #{encoder_forward.1} parent=1 // pred_check
      _
    $region51: #{encoder_forward.1} parent=1 // pred_check_branch
      %50 = sbr.rel (0) target = $region53
    $region52: #{encoder_forward.1} parent=1 // pred_region
      _
    $region53: #{encoder_forward.1} parent=1 // pred_fallthru
      _
    // Predicated region
    $region54: #{encoder_forward.1} parent=1 // pred_check
      _
    $region55: #{encoder_forward.1} parent=1 // pred_check_branch
      %52 = sbr.rel (0) target = $region57
    $region56: #{encoder_forward.1} parent=1 // pred_region
      _
    $region57: #{encoder_forward.1} parent=1 // pred_fallthru
      _
    // Predicated region
    $region58: #{encoder_forward.1} parent=1 // pred_check
      _
    $region59: #{encoder_forward.1} parent=1 // pred_check_branch
      %54 = sbr.rel (0) target = $region61
    $region60: #{encoder_forward.1} parent=1 // pred_region
      _
    $region61: #{encoder_forward.1} parent=1 // pred_fallthru
      _
    // Predicated region
    $region62: #{encoder_forward.1} parent=1 // pred_check
      _
    $region63: #{encoder_forward.1} parent=1 // pred_check_branch
      %56 = sbr.rel (0) target = $region65
    $region64: #{encoder_forward.1} parent=1 // pred_region
      _
    $region65: #{encoder_forward.1} parent=1 // pred_fallthru
      _
    // Predicated region
    $region66: #{encoder_forward.1} parent=1 // pred_check
      _
    $region67: #{encoder_forward.1} parent=1 // pred_check_branch
      %58 = sbr.rel (0) target = $region69
    $region68: #{encoder_forward.1} parent=1 // pred_region
      _
    $region69: #{encoder_forward.1} parent=1 // pred_fallthru
      _
    // Predicated region
    $region70: #{encoder_forward.1} parent=1 // pred_check
      _
    $region71: #{encoder_forward.1} parent=1 // pred_check_branch
      %60 = sbr.rel (0) target = $region73
    $region72: #{encoder_forward.1} parent=1 // pred_region
      _
    $region73: #{encoder_forward.1} parent=1 // pred_fallthru
      _
    // Predicated region
    $region74: #{encoder_forward.1} parent=1 // pred_check
      _
    $region75: #{encoder_forward.1} parent=1 // pred_check_branch
      %62 = sbr.rel (0) target = $region77
    $region76: #{encoder_forward.1} parent=1 // pred_region
      _
    $region77: #{encoder_forward.1} parent=1 // pred_fallthru
      _
    %64 = vst [vmem:[#allocation2] sm:$0xff] 0.0
    %65 = vst [vmem:[#allocation2 + $0x8] sm:$0xff] 0.0
    %66 = vst [vmem:[#allocation2 + $0x10] sm:$0xff] 0.0
    %67 = vst [vmem:[#allocation2 + $0x18] sm:$0xff] 0.0
    %68 = vst [vmem:[#allocation2 + $0x20] sm:$0xff] 0.0
    %69 = vst [vmem:[#allocation2 + $0x28] sm:$0xff] 0.0
    %70 = vst [vmem:[#allocation2 + $0x30] sm:$0xff] 0.0
    %71 = vst [vmem:[#allocation2 + $0x38] sm:$0xff] 0.0
    %72 = vst [vmem:[#allocation2 + $0x40] sm:$0xff] 0.0
    %73 = vst [vmem:[#allocation2 + $0x48] sm:$0xf] 0.0
    %74 = vst [vmem:[#allocation2 + $0x50] sm:$0xf] 0.0
    %75 = vst [vmem:[#allocation2 + $0x58] sm:$0xf] 0.0
    %s76 = scalar_lea.vmem %s0, 1
    %v77 = vld [vmem:[%s76] ss:$2 sm:$0xff]
    %s78 = scalar_lea.vmem %s0, 17
    %v79 = vld [vmem:[%s78] ss:$2 sm:$0x1f]
    %vm82 = vcmask 1040384
    %v83 = vrot.slane %v77, 7
    %v84 = vrot.slane %v79, 7
    %v85 = vsel %vm82, %v83, %v84
    %88 = vst [vmem:[#allocation2] sm:$0xfe] %v83
    %89 = vst [vmem:[#allocation2 + $0x18] sm:$0x3f] %v85
    %s90 = scalar_lea.vmem %s0, 29
    %v91 = vld [vmem:[%s90] ss:$2 sm:$0xff]
    %s92 = scalar_lea.vmem %s0, 45
    %v93 = vld [vmem:[%s92] ss:$2 sm:$0x1f]
    %vm96 = vcmask 1046528
    %v97 = vrot.slane %v91, 1
    %v98 = vrot.slane %v93, 1
    %v99 = vsel %vm96, %v97, %v98
    %103 = vst [vmem:[#allocation2 + $0x18] sm:$0x80] %v97
    %104 = vst [vmem:[#allocation2 + $0x30] sm:$0xff] %v99
    %105 = vst [vmem:[#allocation2 + $0x48] sm:$0xf] %v98
    %v106 = vld [vmem:[%s0] ss:$2 sm:$0xff]
    %s107 = scalar_lea.vmem %s0, 16
    %v108 = vld [vmem:[%s107] ss:$2 sm:$0x3f]
    %109 = vst [vmem:[#allocation2 + $0x8] sm:$0xff] %v106
    %110 = vst [vmem:[#allocation2 + $0x20] sm:$0x3f] %v108
    %s111 = scalar_lea.vmem %s0, 28
    %v112 = vld [vmem:[%s111] ss:$2 sm:$0xff]
    %s113 = scalar_lea.vmem %s0, 44
    %v114 = vld [vmem:[%s113] ss:$2 sm:$0x3f]
    %vm117 = vcmask 1045504
    %v118 = vrot.slane %v112, 2
    %v119 = vrot.slane %v114, 2
    %v120 = vsel %vm117, %v118, %v119
    %124 = vst [vmem:[#allocation2 + $0x20] sm:$0xc0] %v118
    %125 = vst [vmem:[#allocation2 + $0x38] sm:$0xff] %v120
    %126 = vst [vmem:[#allocation2 + $0x50] sm:$0xf] %v119
    %v127 = vld [vmem:[%s76] ss:$2 sm:$0xff]
    %v128 = vld [vmem:[%s78] ss:$2 sm:$0x3f]
    %129 = vst [vmem:[#allocation2 + $0x10] sm:$0xff] %v127
    %130 = vst [vmem:[#allocation2 + $0x28] sm:$0x3f] %v128
    %v131 = vld [vmem:[%s90] ss:$2 sm:$0xff]
    %v132 = vld [vmem:[%s92] ss:$2 sm:$0x3f]
    %v135 = vrot.slane %v131, 2
    %v136 = vrot.slane %v132, 2
    %v137 = vsel %vm117, %v135, %v136
    %141 = vst [vmem:[#allocation2 + $0x28] sm:$0xc0] %v135
    %142 = vst [vmem:[#allocation2 + $0x40] sm:$0xff] %v137
    %143 = vst [vmem:[#allocation2 + $0x58] sm:$0xf] %v136
    %v144 = vld [vmem:[#allocation2] sm:$0xff]
    %v145 = vld [vmem:[#allocation2 + $0x8] sm:$0xff]
    %v146 = vld [vmem:[#allocation2 + $0x10] sm:$0xff]
    %v147 = vld [vmem:[#allocation2 + $0x18] sm:$0xff]
    %v148 = vld [vmem:[#allocation2 + $0x20] sm:$0xff]
    %v149 = vld [vmem:[#allocation2 + $0x28] sm:$0xff]
    %v150 = vld [vmem:[#allocation2 + $0x30] sm:$0xff]
    %v151 = vld [vmem:[#allocation2 + $0x38] sm:$0xff]
    %v152 = vld [vmem:[#allocation2 + $0x40] sm:$0xff]
    %v153 = vld [vmem:[#allocation2 + $0x48] sm:$0xf]
    %v154 = vld [vmem:[#allocation2 + $0x50] sm:$0xf]
    %v155 = vld [vmem:[#allocation2 + $0x58] sm:$0xf]
    %v156 = vpack.c.bf16 %v147, %v144
    %v157 = vpack.c.bf16 %v148, %v145
    %v158 = vpack.c.bf16 %v149, %v146
    %v159 = vpack.c.bf16 %v153, %v150
    %v160 = vpack.c.bf16 %v154, %v151
    %v161 = vpack.c.bf16 %v155, %v152
    %v162 = vld [vmem:[%s1] sm:$0xf]
    %v163 = vld [vmem:[%s1 + $0x4] sm:$0xf]
    %v164 = vld [vmem:[%s1 + $0x8] sm:$0xf]
    %v165 = vld [vmem:[%s1 + $0xc] sm:$0xf]
    %v166 = vld [vmem:[%s1 + $0x10] sm:$0xf]
    %v167 = vld [vmem:[%s1 + $0x14] sm:$0xf]
    %v168 = vld [vmem:[%s1 + $0x18] sm:$0xf]
    %v169 = vld [vmem:[%s1 + $0x1c] sm:$0xf]
    %v170 = vld [vmem:[%s1 + $0x20] sm:$0xf]
    %v171 = vld [vmem:[%s1 + $0x24] sm:$0xf]
    %v172 = vld [vmem:[%s1 + $0x28] sm:$0xf]
    %v173 = vld [vmem:[%s1 + $0x2c] sm:$0xf]
    %v174 = vld [vmem:[%s1 + $0x30] sm:$0xf]
    %v175 = vld [vmem:[%s1 + $0x34] sm:$0xf]
    %v176 = vld [vmem:[%s1 + $0x38] sm:$0xf]
    %v177 = vld [vmem:[%s1 + $0x3c] sm:$0xf]
    %v178 = vld [vmem:[%s1 + $0x40] sm:$0xf]
    %v179 = vld [vmem:[%s1 + $0x44] sm:$0xf]
    %v180 = vld [vmem:[%s1 + $0x48] sm:$0xf]
    %v181 = vld [vmem:[%s1 + $0x4c] sm:$0xf]
    %v182 = vld [vmem:[%s1 + $0x50] sm:$0xf]
    %v183 = vld [vmem:[%s1 + $0x54] sm:$0xf]
    %v184 = vld [vmem:[%s1 + $0x58] sm:$0xf]
    %v185 = vld [vmem:[%s1 + $0x5c] sm:$0xf]
    %v186 = vld [vmem:[%s1 + $0x60] sm:$0xf]
    %v187 = vld [vmem:[%s1 + $0x64] sm:$0xf]
    %v188 = vld [vmem:[%s1 + $0x68] sm:$0xf]
    %v189 = vld [vmem:[%s1 + $0x6c] sm:$0xf]
    %v190 = vld [vmem:[%s1 + $0x70] sm:$0xf]
    %v191 = vld [vmem:[%s1 + $0x74] sm:$0xf]
    %v192 = vld [vmem:[%s1 + $0x78] sm:$0xf]
    %v193 = vld [vmem:[%s1 + $0x7c] sm:$0xf]
    %v194 = vld [vmem:[%s1 + $0x80] sm:$0xf]
    %v195 = vld [vmem:[%s1 + $0x84] sm:$0xf]
    %v196 = vld [vmem:[%s1 + $0x88] sm:$0xf]
    %v197 = vld [vmem:[%s1 + $0x8c] sm:$0xf]
    %v198 = vld [vmem:[%s1 + $0x90] sm:$0xf]
    %v199 = vld [vmem:[%s1 + $0x94] sm:$0xf]
    %v200 = vld [vmem:[%s1 + $0x98] sm:$0xf]
    %v201 = vld [vmem:[%s1 + $0x9c] sm:$0xf]
    %v202 = vld [vmem:[%s1 + $0xa0] sm:$0xf]
    %v203 = vld [vmem:[%s1 + $0xa4] sm:$0xf]
    %v204 = vld [vmem:[%s1 + $0xa8] sm:$0xf]
    %v205 = vld [vmem:[%s1 + $0xac] sm:$0xf]
    %v206 = vld [vmem:[%s1 + $0xb0] sm:$0xf]
    %v207 = vld [vmem:[%s1 + $0xb4] sm:$0xf]
    %v208 = vld [vmem:[%s1 + $0xb8] sm:$0xf]
    %v209 = vld [vmem:[%s1 + $0xbc] sm:$0xf]
    %v258 = vunpack.c.l.b16 %v162
    %v259 = vunpack.c.l.b16 %v163
    %v260 = vunpack.c.l.b16 %v164
    %v261 = vunpack.c.l.b16 %v165
    %v262 = vunpack.c.l.b16 %v166
    %v263 = vunpack.c.l.b16 %v167
    %v264 = vunpack.c.l.b16 %v168
    %v265 = vunpack.c.l.b16 %v169
    %v266 = vunpack.c.l.b16 %v170
    %v267 = vunpack.c.l.b16 %v171
    %v268 = vunpack.c.l.b16 %v172
    %v269 = vunpack.c.l.b16 %v173
    %v270 = vunpack.c.l.b16 %v174
    %v271 = vunpack.c.l.b16 %v175
    %v272 = vunpack.c.l.b16 %v176
    %v273 = vunpack.c.l.b16 %v177
    %v274 = vunpack.c.l.b16 %v178
    %v275 = vunpack.c.l.b16 %v179
    %v276 = vunpack.c.l.b16 %v180
    %v277 = vunpack.c.l.b16 %v181
    %v278 = vunpack.c.l.b16 %v182
    %v279 = vunpack.c.l.b16 %v183
    %v280 = vunpack.c.l.b16 %v184
    %v281 = vunpack.c.l.b16 %v185
    %v282 = vunpack.c.l.b16 %v186
    %v283 = vunpack.c.l.b16 %v187
    %v284 = vunpack.c.l.b16 %v188
    %v285 = vunpack.c.l.b16 %v189
    %v286 = vunpack.c.l.b16 %v190
    %v287 = vunpack.c.l.b16 %v191
    %v288 = vunpack.c.l.b16 %v192
    %v289 = vunpack.c.l.b16 %v193
    %v290 = vunpack.c.l.b16 %v194
    %v291 = vunpack.c.l.b16 %v195
    %v292 = vunpack.c.l.b16 %v196
    %v293 = vunpack.c.l.b16 %v197
    %v294 = vunpack.c.l.b16 %v198
    %v295 = vunpack.c.l.b16 %v199
    %v296 = vunpack.c.l.b16 %v200
    %v297 = vunpack.c.l.b16 %v201
    %v298 = vunpack.c.l.b16 %v202
    %v299 = vunpack.c.l.b16 %v203
    %v300 = vunpack.c.l.b16 %v204
    %v301 = vunpack.c.l.b16 %v205
    %v302 = vunpack.c.l.b16 %v206
    %v303 = vunpack.c.l.b16 %v207
    %v304 = vunpack.c.l.b16 %v208
    %v305 = vunpack.c.l.b16 %v209
    %v306 = vpack.c.b16 %v259, %v258
    %v307 = vpack.c.b16 %v261, %v260
    %v308 = vpack.c.b16 %v263, %v262
    %v309 = vpack.c.b16 %v265, %v264
    %v310 = vpack.c.b16 %v267, %v266
    %v311 = vpack.c.b16 %v269, %v268
    %v312 = vpack.c.b16 %v271, %v270
    %v313 = vpack.c.b16 %v273, %v272
    %v314 = vpack.c.b16 %v275, %v274
    %v315 = vpack.c.b16 %v277, %v276
    %v316 = vpack.c.b16 %v279, %v278
    %v317 = vpack.c.b16 %v281, %v280
    %v318 = vpack.c.b16 %v283, %v282
    %v319 = vpack.c.b16 %v285, %v284
    %v320 = vpack.c.b16 %v287, %v286
    %v321 = vpack.c.b16 %v289, %v288
    %v322 = vpack.c.b16 %v291, %v290
    %v323 = vpack.c.b16 %v293, %v292
    %v324 = vpack.c.b16 %v295, %v294
    %v325 = vpack.c.b16 %v297, %v296
    %v326 = vpack.c.b16 %v299, %v298
    %v327 = vpack.c.b16 %v301, %v300
    %v328 = vpack.c.b16 %v303, %v302
    %v329 = vpack.c.b16 %v305, %v304
    %354 = vmatprep.subr.bf16.mxu0 0
    %355 = vmatpush1.bf16.msra.mxu0 %v313
    %356 = vmatprep.subr.bf16.mxu0 0
    %357 = vmatpush1.bf16.msra.mxu0 %v312
    %358 = vmatprep.subr.bf16.mxu0 0
    %359 = vmatpush1.bf16.msra.mxu0 %v311
    %360 = vmatprep.subr.bf16.mxu0 0
    %361 = vmatpush1.bf16.msra.mxu0 %v310
    %362 = vmatprep.subr.bf16.mxu0 0
    %363 = vmatpush1.bf16.msra.mxu0 %v309
    %364 = vmatprep.subr.bf16.mxu0 0
    %365 = vmatpush1.bf16.msra.mxu0 %v308
    %366 = vmatprep.subr.bf16.mxu0 0
    %367 = vmatpush1.bf16.msra.mxu0 %v307
    %368 = vmatprep.subr.bf16.mxu0 0
    %369 = vmatpush1.bf16.msra.mxu0 %v306
    %370 = vmatprep.subr.bf16.mxu0 0
    %371 = vmatpush2.bf16.msra.mxu0 %v321
    %372 = vmatprep.subr.bf16.mxu0 0
    %373 = vmatpush2.bf16.msra.mxu0 %v320
    %374 = vmatprep.subr.bf16.mxu0 0
    %375 = vmatpush2.bf16.msra.mxu0 %v319
    %376 = vmatprep.subr.bf16.mxu0 0
    %377 = vmatpush2.bf16.msra.mxu0 %v318
    %378 = vmatprep.subr.bf16.mxu0 0
    %379 = vmatpush2.bf16.msra.mxu0 %v317
    %380 = vmatprep.subr.bf16.mxu0 0
    %381 = vmatpush2.bf16.msra.mxu0 %v316
    %382 = vmatprep.subr.bf16.mxu0 0
    %383 = vmatpush2.bf16.msra.mxu0 %v315
    %384 = vmatprep.subr.bf16.mxu0 0
    %385 = vmatpush2.bf16.msra.mxu0 %v314
    %386 = vmatprep.mubr.bf16.mxu0 %v157
    %387 = vmatmul.mubr.bf16.gmra.mxu0 %v156
    %v388 = vpop.f32.mrf.mxu0
    %v389 = vadd.f32 0.0, %v388
    %v390 = vpop.f32.mrf.mxu0
    %v391 = vpop.f32.mrf.mxu0
    %v392 = vadd.f32 0.0, %v391
    %v393 = vpop.f32.mrf.mxu0
    %394 = vmatprep.mubr.bf16.mxu0 %v160
    %395 = vmatmul.mubr.bf16.gmra.mxu0 %v159
    %v396 = vpop.f32.mrf.mxu0
    %v397 = vadd.f32 0.0, %v396
    %v398 = vpop.f32.mrf.mxu0
    %v399 = vpop.f32.mrf.mxu0
    %v400 = vadd.f32 0.0, %v399
    %v401 = vpop.f32.mrf.mxu0
    %402 = vdwg.mxu0
    %403 = vmatprep.subr.bf16.mxu0 0
    %404 = vmatpush1.bf16.msra.mxu0 %v329
    %405 = vmatprep.subr.bf16.mxu0 0
    %406 = vmatpush1.bf16.msra.mxu0 %v328
    %407 = vmatprep.subr.bf16.mxu0 0
    %408 = vmatpush1.bf16.msra.mxu0 %v327
    %409 = vmatprep.subr.bf16.mxu0 0
    %410 = vmatpush1.bf16.msra.mxu0 %v326
    %411 = vmatprep.subr.bf16.mxu0 0
    %412 = vmatpush1.bf16.msra.mxu0 %v325
    %413 = vmatprep.subr.bf16.mxu0 0
    %414 = vmatpush1.bf16.msra.mxu0 %v324
    %415 = vmatprep.subr.bf16.mxu0 0
    %416 = vmatpush1.bf16.msra.mxu0 %v323
    %417 = vmatprep.subr.bf16.mxu0 0
    %418 = vmatpush1.bf16.msra.mxu0 %v322
    %419 = vmatprep.subr.bf16.mxu0 0
    %420 = vmatpush2.bf16.msra.mxu0 0
    %421 = vmatprep.subr.bf16.mxu0 0
    %422 = vmatpush2.bf16.msra.mxu0 0
    %423 = vmatprep.subr.bf16.mxu0 0
    %424 = vmatpush2.bf16.msra.mxu0 0
    %425 = vmatprep.subr.bf16.mxu0 0
    %426 = vmatpush2.bf16.msra.mxu0 0
    %427 = vmatprep.subr.bf16.mxu0 0
    %428 = vmatpush2.bf16.msra.mxu0 0
    %429 = vmatprep.subr.bf16.mxu0 0
    %430 = vmatpush2.bf16.msra.mxu0 0
    %431 = vmatprep.subr.bf16.mxu0 0
    %432 = vmatpush2.bf16.msra.mxu0 0
    %433 = vmatprep.subr.bf16.mxu0 0
    %434 = vmatpush2.bf16.msra.mxu0 0
    %435 = vmatprep.mubr.bf16.mxu0 0
    %436 = vmatmul.mubr.bf16.gmra.mxu0 %v158
    %v437 = vpop.f32.mrf.mxu0
    %v438 = vadd.f32 %v389, %v437
    %v439 = vpop.f32.mrf.mxu0
    %v440 = vpop.f32.mrf.mxu0
    %v441 = vadd.f32 %v392, %v440
    %v442 = vpop.f32.mrf.mxu0
    %443 = vmatprep.mubr.bf16.mxu0 0
    %444 = vmatmul.mubr.bf16.gmra.mxu0 %v161
    %v445 = vpop.f32.mrf.mxu0
    %v446 = vadd.f32 %v397, %v445
    %v447 = vpop.f32.mrf.mxu0
    %v448 = vpop.f32.mrf.mxu0
    %v449 = vadd.f32 %v400, %v448
    %v450 = vpop.f32.mrf.mxu0
    %451 = vdwg.mxu0
    %v452 = vadd.f32 %v438, %v441
    %v453 = vadd.f32 %v452, %v446
    %vm454 = vcmask 1043456
    %v455 = vsel %vm454, %v449, 0.0
    %v456 = vadd.f32 %v453, %v455
    %v457 = vrot.slane %v456, 4
    %v458 = vadd.f32 %v456, %v457
    %v459 = vrot.slane %v458, 2
    %v460 = vadd.f32 %v458, %v459
    %v461 = vrot.slane %v460, 1
    %v462 = vadd.f32 %v460, %v461
    %v463 = vrcp.pop 28.0
    %v464 = vmul.f32 %v462, %v463
    %v465 = vmul.f32 %v438, %v438
    %v466 = vmul.f32 %v441, %v441
    %v467 = vmul.f32 %v446, %v446
    %v468 = vmul.f32 %v449, %v449
    %v469 = vadd.f32 %v465, %v466
    %v470 = vadd.f32 %v469, %v467
    %v471 = vsel %vm454, %v468, 0.0
    %v472 = vadd.f32 %v470, %v471
    %v473 = vrot.slane %v472, 4
    %v474 = vadd.f32 %v472, %v473
    %v475 = vrot.slane %v474, 2
    %v476 = vadd.f32 %v474, %v475
    %v477 = vrot.slane %v476, 1
    %v478 = vadd.f32 %v476, %v477
    %v479 = vmul.f32 %v478, %v463
    %v480 = vsel %vm82, %v464, %v479
    %v481 = vld [vmem:[%s2] sm:$0xff]
    %v482 = vld [vmem:[%s2 + $0x8] sm:$0xff]
    %v483 = vld [vmem:[%s2 + $0x10] sm:$0xff]
    %v484 = vld [vmem:[%s2 + $0x18] sm:$0xff]
    %v485 = vld [vmem:[%s2 + $0x20] sm:$0xff]
    %v486 = vld [vmem:[%s2 + $0x28] sm:$0xff]
    %v487 = vld [vmem:[%s2 + $0x30] sm:$0xff]
    %v488 = vld [vmem:[%s2 + $0x38] sm:$0xff]
    %v489 = vld [vmem:[%s2 + $0x40] sm:$0xff]
    %v490 = vld [vmem:[%s2 + $0x48] sm:$0xff]
    %v491 = vld [vmem:[%s2 + $0x50] sm:$0xff]
    %v492 = vld [vmem:[%s2 + $0x58] sm:$0xff]
    %v493 = vld [vmem:[%s2 + $0x60] sm:$0xff]
    %v494 = vld [vmem:[%s2 + $0x68] sm:$0xff]
    %v495 = vld [vmem:[%s2 + $0x70] sm:$0xff]
    %v496 = vld [vmem:[%s2 + $0x78] sm:$0xff]
    %497 = vmatprep.subr.mxu0 0.0
    %498 = vmatpush1.msra.mxu0 %v496
    %499 = vmatprep.subr.mxu0 0.0
    %500 = vmatpush1.msra.mxu0 %v495
    %501 = vmatprep.subr.mxu0 0.0
    %502 = vmatpush1.msra.mxu0 %v494
    %503 = vmatprep.subr.mxu0 0.0
    %504 = vmatpush1.msra.mxu0 %v493
    %505 = vmatprep.subr.mxu0 0.0
    %506 = vmatpush1.msra.mxu0 %v492
    %507 = vmatprep.subr.mxu0 0.0
    %508 = vmatpush1.msra.mxu0 %v491
    %509 = vmatprep.subr.mxu0 0.0
    %510 = vmatpush1.msra.mxu0 %v490
    %511 = vmatprep.subr.mxu0 0.0
    %512 = vmatpush1.msra.mxu0 %v489
    %513 = vmatprep.subr.mxu0 0.0
    %514 = vmatpush1.msra.mxu0 %v488
    %515 = vmatprep.subr.mxu0 0.0
    %516 = vmatpush1.msra.mxu0 %v487
    %517 = vmatprep.subr.mxu0 0.0
    %518 = vmatpush1.msra.mxu0 %v486
    %519 = vmatprep.subr.mxu0 0.0
    %520 = vmatpush1.msra.mxu0 %v485
    %521 = vmatprep.subr.mxu0 0.0
    %522 = vmatpush1.msra.mxu0 %v484
    %523 = vmatprep.subr.mxu0 0.0
    %524 = vmatpush1.msra.mxu0 %v483
    %525 = vmatprep.subr.mxu0 0.0
    %526 = vmatpush1.msra.mxu0 %v482
    %527 = vmatprep.subr.mxu0 0.0
    %528 = vmatpush1.msra.mxu0 %v481
    %529 = vmatprep.subr.mxu0 0.0
    %530 = vmatpush2.msra.mxu0 0.0
    %531 = vmatprep.subr.mxu0 0.0
    %532 = vmatpush2.msra.mxu0 0.0
    %533 = vmatprep.subr.mxu0 0.0
    %534 = vmatpush2.msra.mxu0 0.0
    %535 = vmatprep.subr.mxu0 0.0
    %536 = vmatpush2.msra.mxu0 0.0
    %537 = vmatprep.subr.mxu0 0.0
    %538 = vmatpush2.msra.mxu0 0.0
    %539 = vmatprep.subr.mxu0 0.0
    %540 = vmatpush2.msra.mxu0 0.0
    %541 = vmatprep.subr.mxu0 0.0
    %542 = vmatpush2.msra.mxu0 0.0
    %543 = vmatprep.subr.mxu0 0.0
    %544 = vmatpush2.msra.mxu0 0.0
    %545 = vmatprep.subr.mxu0 0.0
    %546 = vmatpush2.msra.mxu0 0.0
    %547 = vmatprep.subr.mxu0 0.0
    %548 = vmatpush2.msra.mxu0 0.0
    %549 = vmatprep.subr.mxu0 0.0
    %550 = vmatpush2.msra.mxu0 0.0
    %551 = vmatprep.subr.mxu0 0.0
    %552 = vmatpush2.msra.mxu0 0.0
    %553 = vmatprep.subr.mxu0 0.0
    %554 = vmatpush2.msra.mxu0 0.0
    %555 = vmatprep.subr.mxu0 0.0
    %556 = vmatpush2.msra.mxu0 0.0
    %557 = vmatprep.subr.mxu0 0.0
    %558 = vmatpush2.msra.mxu0 0.0
    %559 = vmatprep.subr.mxu0 0.0
    %560 = vmatpush2.msra.mxu0 0.0
    %561 = vmatprep.mubr.f32.mxu0 0.0
    %562 = vmatmul.mubr.f32.gmra.mxu0 %v480
    %v563 = vpop.f32.mrf.mxu0
    %v564 = vadd.f32 0.0, %v563
    %v565 = vpop.f32.mrf.mxu0
    %566 = vdwg.mxu0
    %v567 = vmul.f32 %v564, %v564
    %v569 = vrot.slane %v567, 7
    %v571 = vsub.f32 %v564, %v569
    %v572 = vmax.f32 %v571, 0.0
    %v573 = vld [vmem:[%s4] sm:$0x3]
    %v574 = vadd.f32 %v572, 1e-05
    %v575 = vrsqrt.pop %v574
    %v577 = vrot.slane %v575, 1
    %v579 = vmul.f32 %v573, %v577
    %v580 = vmul.f32 %v564, %v579
    %v582 = vrot.slane %v580, 7
    %v584 = vsub.f32 %v573, %v582
    %v585 = vsel %vm82, %v579, %v584
    %v586 = vld [vmem:[%s3] sm:$0xff]
    %vm587 = vcmask 64512
    %v589 = vsel %vm587, %v585, 0
    %591 = vmatprep.subr.mxu0 0.0
    %592 = vmatpush1.msra.mxu0 0.0
    %593 = vmatprep.subr.mxu0 0.0
    %594 = vmatpush1.msra.mxu0 0.0
    %595 = vmatprep.subr.mxu0 0.0
    %596 = vmatpush1.msra.mxu0 0.0
    %597 = vmatprep.subr.mxu0 0.0
    %598 = vmatpush1.msra.mxu0 0.0
    %599 = vmatprep.subr.mxu0 0.0
    %600 = vmatpush1.msra.mxu0 0.0
    %601 = vmatprep.subr.mxu0 0.0
    %602 = vmatpush1.msra.mxu0 0.0
    %603 = vmatprep.subr.mxu0 0.0
    %604 = vmatpush1.msra.mxu0 0.0
    %605 = vmatprep.subr.mxu0 0.0
    %606 = vmatpush1.msra.mxu0 0.0
    %607 = vmatprep.subr.mxu0 0.0
    %608 = vmatpush1.msra.mxu0 0.0
    %609 = vmatprep.subr.mxu0 0.0
    %610 = vmatpush1.msra.mxu0 0.0
    %611 = vmatprep.subr.mxu0 0.0
    %612 = vmatpush1.msra.mxu0 0.0
    %613 = vmatprep.subr.mxu0 0.0
    %614 = vmatpush1.msra.mxu0 0.0
    %615 = vmatprep.subr.mxu0 0.0
    %616 = vmatpush1.msra.mxu0 0.0
    %617 = vmatprep.subr.mxu0 0.0
    %618 = vmatpush1.msra.mxu0 0.0
    %619 = vmatprep.subr.mxu0 0.0
    %620 = vmatpush1.msra.mxu0 0.0
    %621 = vmatprep.subr.mxu0 0.0
    %622 = vmatpush1.msra.mxu0 %v586
    %623 = vmatprep.subr.mxu0 0.0
    %624 = vmatpush2.msra.mxu0 0.0
    %625 = vmatprep.subr.mxu0 0.0
    %626 = vmatpush2.msra.mxu0 0.0
    %627 = vmatprep.subr.mxu0 0.0
    %628 = vmatpush2.msra.mxu0 0.0
    %629 = vmatprep.subr.mxu0 0.0
    %630 = vmatpush2.msra.mxu0 0.0
    %631 = vmatprep.subr.mxu0 0.0
    %632 = vmatpush2.msra.mxu0 0.0
    %633 = vmatprep.subr.mxu0 0.0
    %634 = vmatpush2.msra.mxu0 0.0
    %635 = vmatprep.subr.mxu0 0.0
    %636 = vmatpush2.msra.mxu0 0.0
    %637 = vmatprep.subr.mxu0 0.0
    %638 = vmatpush2.msra.mxu0 0.0
    %639 = vmatprep.subr.mxu0 0.0
    %640 = vmatpush2.msra.mxu0 0.0
    %641 = vmatprep.subr.mxu0 0.0
    %642 = vmatpush2.msra.mxu0 0.0
    %643 = vmatprep.subr.mxu0 0.0
    %644 = vmatpush2.msra.mxu0 0.0
    %645 = vmatprep.subr.mxu0 0.0
    %646 = vmatpush2.msra.mxu0 0.0
    %647 = vmatprep.subr.mxu0 0.0
    %648 = vmatpush2.msra.mxu0 0.0
    %649 = vmatprep.subr.mxu0 0.0
    %650 = vmatpush2.msra.mxu0 0.0
    %651 = vmatprep.subr.mxu0 0.0
    %652 = vmatpush2.msra.mxu0 0.0
    %653 = vmatprep.subr.mxu0 0.0
    %654 = vmatpush2.msra.mxu0 0.0
    %655 = vmatprep.mubr.f32.mxu0 0.0
    %656 = vmatmul.mubr.f32.gmra.mxu0 %v589
    %v657 = vpop.f32.mrf.mxu0
    %v658 = vadd.f32 0.0, %v657
    %v659 = vpop.f32.mrf.mxu0
    %660 = vdwg.mxu0
    %v661 = vlaneseq
    %v662 = vshrl.u32 %v661, 7
    %v663 = vsub.s32 0, %v662
    %v664 = vrot.slane %v658, %v663
    %v665 = vmul.f32 %v438, %v664
    %v666 = vmul.f32 %v441, %v664
    %v667 = vmul.f32 %v446, %v664
    %v668 = vmul.f32 %v449, %v664
    %v669 = vlaneseq
    %v670 = vshrl.u32 %v669, 7
    %v671 = vsub.s32 1, %v670
    %v672 = vrot.slane %v658, %v671
    %v673 = vadd.f32 %v665, %v672
    %v674 = vadd.f32 %v666, %v672
    %v675 = vadd.f32 %v667, %v672
    %v676 = vadd.f32 %v668, %v672
    %vm677 = vcmp.ge.f32.partialorder %v673, 0.0
    %vm678 = vcmp.ge.f32.partialorder %v674, 0.0
    %vm679 = vcmp.ge.f32.partialorder %v675, 0.0
    %vm680 = vcmp.ge.f32.partialorder %v676, 0.0
    %v681 = vmul.f32 %v673, 0.01
    %v682 = vmul.f32 %v674, 0.01
    %v683 = vmul.f32 %v675, 0.01
    %v684 = vmul.f32 %v676, 0.01
    %v685 = vsel %vm677, %v673, %v681
    %v686 = vsel %vm678, %v674, %v682
    %v687 = vsel %vm679, %v675, %v683
    %v688 = vsel %vm680, %v676, %v684
    %689 = vst [vmem:[#allocation6] sm:$0xff] %v685
    %690 = vst [vmem:[#allocation6 + $0x8] sm:$0xff] %v686
    %691 = vst [vmem:[#allocation6 + $0x10] sm:$0xff] %v687
    %692 = vst [vmem:[#allocation6 + $0x18] sm:$0xf] %v688
    %693 = vst [vmem:[#allocation3] sm:$0xff] 0.0
    %694 = vst [vmem:[#allocation3 + $0x8] sm:$0xff] 0.0
    %695 = vst [vmem:[#allocation3 + $0x10] sm:$0xff] 0.0
    %696 = vst [vmem:[#allocation3 + $0x18] sm:$0x3f] 0.0
    %697 = vst [vmem:[#allocation3 + $0x20] sm:$0x3f] 0.0
    %698 = vst [vmem:[#allocation3 + $0x28] sm:$0x3f] 0.0
    %s699 = scalar_lea.vmem [#allocation6], 1
    %v700 = vld [vmem:[%s699] ss:$2 sm:$0x3f]
    %v702 = vrot.slane %v700, 7
    %704 = vst [vmem:[#allocation3] sm:$0x7e] %v702
    %s705 = scalar_lea.vmem [#allocation6], 15
    %v706 = vld [vmem:[%s705] ss:$2 sm:$0x3f]
    %707 = vst [vmem:[#allocation3 + $0x18] sm:$0x3f] %v706
    %v708 = vld [vmem:[#allocation6] ss:$2 sm:$0x7f]
    %709 = vst [vmem:[#allocation3 + $0x8] sm:$0x7f] %v708
    %s710 = scalar_lea.vmem [#allocation6], 14
    %v711 = vld [vmem:[%s710] ss:$2 sm:$0x7f]
    %v713 = vrot.slane %v711, 1
    %715 = vst [vmem:[#allocation3 + $0x8] sm:$0x80] %v713
    %716 = vst [vmem:[#allocation3 + $0x20] sm:$0x3f] %v713
    %v717 = vld [vmem:[%s699] ss:$2 sm:$0x7f]
    %718 = vst [vmem:[#allocation3 + $0x10] sm:$0x7f] %v717
    %v719 = vld [vmem:[%s705] ss:$2 sm:$0x7f]
    %v721 = vrot.slane %v719, 1
    %723 = vst [vmem:[#allocation3 + $0x10] sm:$0x80] %v721
    %724 = vst [vmem:[#allocation3 + $0x28] sm:$0x3f] %v721
    %v725 = vld [vmem:[#allocation3] sm:$0xff]
    %v726 = vld [vmem:[#allocation3 + $0x8] sm:$0xff]
    %v727 = vld [vmem:[#allocation3 + $0x10] sm:$0xff]
    %v728 = vld [vmem:[#allocation3 + $0x18] sm:$0x3f]
    %v729 = vld [vmem:[#allocation3 + $0x20] sm:$0x3f]
    %v730 = vld [vmem:[#allocation3 + $0x28] sm:$0x3f]
    %v731 = vpack.c.bf16 %v728, %v725
    %v732 = vpack.c.bf16 %v729, %v726
    %v733 = vpack.c.bf16 %v730, %v727
    %v734 = vld [vmem:[%s5] sm:$0xf]
    %v735 = vld [vmem:[%s5 + $0x4] sm:$0xf]
    %v736 = vld [vmem:[%s5 + $0x8] sm:$0xf]
    %v737 = vld [vmem:[%s5 + $0xc] sm:$0xf]
    %v738 = vld [vmem:[%s5 + $0x10] sm:$0xf]
    %v739 = vld [vmem:[%s5 + $0x14] sm:$0xf]
    %v740 = vld [vmem:[%s5 + $0x18] sm:$0xf]
    %v741 = vld [vmem:[%s5 + $0x1c] sm:$0xf]
    %v742 = vld [vmem:[%s5 + $0x20] sm:$0xf]
    %v743 = vld [vmem:[%s5 + $0x24] sm:$0xf]
    %v744 = vld [vmem:[%s5 + $0x28] sm:$0xf]
    %v745 = vld [vmem:[%s5 + $0x2c] sm:$0xf]
    %v746 = vld [vmem:[%s5 + $0x30] sm:$0xf]
    %v747 = vld [vmem:[%s5 + $0x34] sm:$0xf]
    %v748 = vld [vmem:[%s5 + $0x38] sm:$0xf]
    %v749 = vld [vmem:[%s5 + $0x3c] sm:$0xf]
    %v750 = vld [vmem:[%s5 + $0x40] sm:$0xf]
    %v751 = vld [vmem:[%s5 + $0x44] sm:$0xf]
    %v752 = vld [vmem:[%s5 + $0x48] sm:$0xf]
    %v753 = vld [vmem:[%s5 + $0x4c] sm:$0xf]
    %v754 = vld [vmem:[%s5 + $0x50] sm:$0xf]
    %v755 = vld [vmem:[%s5 + $0x54] sm:$0xf]
    %v756 = vld [vmem:[%s5 + $0x58] sm:$0xf]
    %v757 = vld [vmem:[%s5 + $0x5c] sm:$0xf]
    %v758 = vld [vmem:[%s5 + $0x60] sm:$0xf]
    %v759 = vld [vmem:[%s5 + $0x64] sm:$0xf]
    %v760 = vld [vmem:[%s5 + $0x68] sm:$0xf]
    %v761 = vld [vmem:[%s5 + $0x6c] sm:$0xf]
    %v762 = vld [vmem:[%s5 + $0x70] sm:$0xf]
    %v763 = vld [vmem:[%s5 + $0x74] sm:$0xf]
    %v764 = vld [vmem:[%s5 + $0x78] sm:$0xf]
    %v765 = vld [vmem:[%s5 + $0x7c] sm:$0xf]
    %v766 = vld [vmem:[%s5 + $0x80] sm:$0xf]
    %v767 = vld [vmem:[%s5 + $0x84] sm:$0xf]
    %v768 = vld [vmem:[%s5 + $0x88] sm:$0xf]
    %v769 = vld [vmem:[%s5 + $0x8c] sm:$0xf]
    %v770 = vld [vmem:[%s5 + $0x90] sm:$0xf]
    %v771 = vld [vmem:[%s5 + $0x94] sm:$0xf]
    %v772 = vld [vmem:[%s5 + $0x98] sm:$0xf]
    %v773 = vld [vmem:[%s5 + $0x9c] sm:$0xf]
    %v774 = vld [vmem:[%s5 + $0xa0] sm:$0xf]
    %v775 = vld [vmem:[%s5 + $0xa4] sm:$0xf]
    %v776 = vld [vmem:[%s5 + $0xa8] sm:$0xf]
    %v777 = vld [vmem:[%s5 + $0xac] sm:$0xf]
    %v778 = vld [vmem:[%s5 + $0xb0] sm:$0xf]
    %v779 = vld [vmem:[%s5 + $0xb4] sm:$0xf]
    %v780 = vld [vmem:[%s5 + $0xb8] sm:$0xf]
    %v781 = vld [vmem:[%s5 + $0xbc] sm:$0xf]
    %v830 = vunpack.c.l.b16 %v734
    %v831 = vunpack.c.l.b16 %v735
    %v832 = vunpack.c.l.b16 %v736
    %v833 = vunpack.c.l.b16 %v737
    %v834 = vunpack.c.l.b16 %v738
    %v835 = vunpack.c.l.b16 %v739
    %v836 = vunpack.c.l.b16 %v740
    %v837 = vunpack.c.l.b16 %v741
    %v838 = vunpack.c.l.b16 %v742
    %v839 = vunpack.c.l.b16 %v743
    %v840 = vunpack.c.l.b16 %v744
    %v841 = vunpack.c.l.b16 %v745
    %v842 = vunpack.c.l.b16 %v746
    %v843 = vunpack.c.l.b16 %v747
    %v844 = vunpack.c.l.b16 %v748
    %v845 = vunpack.c.l.b16 %v749
    %v846 = vunpack.c.l.b16 %v750
    %v847 = vunpack.c.l.b16 %v751
    %v848 = vunpack.c.l.b16 %v752
    %v849 = vunpack.c.l.b16 %v753
    %v850 = vunpack.c.l.b16 %v754
    %v851 = vunpack.c.l.b16 %v755
    %v852 = vunpack.c.l.b16 %v756
    %v853 = vunpack.c.l.b16 %v757
    %v854 = vunpack.c.l.b16 %v758
    %v855 = vunpack.c.l.b16 %v759
    %v856 = vunpack.c.l.b16 %v760
    %v857 = vunpack.c.l.b16 %v761
    %v858 = vunpack.c.l.b16 %v762
    %v859 = vunpack.c.l.b16 %v763
    %v860 = vunpack.c.l.b16 %v764
    %v861 = vunpack.c.l.b16 %v765
    %v862 = vunpack.c.l.b16 %v766
    %v863 = vunpack.c.l.b16 %v767
    %v864 = vunpack.c.l.b16 %v768
    %v865 = vunpack.c.l.b16 %v769
    %v866 = vunpack.c.l.b16 %v770
    %v867 = vunpack.c.l.b16 %v771
    %v868 = vunpack.c.l.b16 %v772
    %v869 = vunpack.c.l.b16 %v773
    %v870 = vunpack.c.l.b16 %v774
    %v871 = vunpack.c.l.b16 %v775
    %v872 = vunpack.c.l.b16 %v776
    %v873 = vunpack.c.l.b16 %v777
    %v874 = vunpack.c.l.b16 %v778
    %v875 = vunpack.c.l.b16 %v779
    %v876 = vunpack.c.l.b16 %v780
    %v877 = vunpack.c.l.b16 %v781
    %v878 = vpack.c.b16 %v831, %v830
    %v879 = vpack.c.b16 %v833, %v832
    %v880 = vpack.c.b16 %v835, %v834
    %v881 = vpack.c.b16 %v837, %v836
    %v882 = vpack.c.b16 %v839, %v838
    %v883 = vpack.c.b16 %v841, %v840
    %v884 = vpack.c.b16 %v843, %v842
    %v885 = vpack.c.b16 %v845, %v844
    %v886 = vpack.c.b16 %v847, %v846
    %v887 = vpack.c.b16 %v849, %v848
    %v888 = vpack.c.b16 %v851, %v850
    %v889 = vpack.c.b16 %v853, %v852
    %v890 = vpack.c.b16 %v855, %v854
    %v891 = vpack.c.b16 %v857, %v856
    %v892 = vpack.c.b16 %v859, %v858
    %v893 = vpack.c.b16 %v861, %v860
    %v894 = vpack.c.b16 %v863, %v862
    %v895 = vpack.c.b16 %v865, %v864
    %v896 = vpack.c.b16 %v867, %v866
    %v897 = vpack.c.b16 %v869, %v868
    %v898 = vpack.c.b16 %v871, %v870
    %v899 = vpack.c.b16 %v873, %v872
    %v900 = vpack.c.b16 %v875, %v874
    %v901 = vpack.c.b16 %v877, %v876
    %926 = vmatprep.subr.bf16.mxu0 0
    %927 = vmatpush1.bf16.msra.mxu0 %v885
    %928 = vmatprep.subr.bf16.mxu0 0
    %929 = vmatpush1.bf16.msra.mxu0 %v884
    %930 = vmatprep.subr.bf16.mxu0 0
    %931 = vmatpush1.bf16.msra.mxu0 %v883
    %932 = vmatprep.subr.bf16.mxu0 0
    %933 = vmatpush1.bf16.msra.mxu0 %v882
    %934 = vmatprep.subr.bf16.mxu0 0
    %935 = vmatpush1.bf16.msra.mxu0 %v881
    %936 = vmatprep.subr.bf16.mxu0 0
    %937 = vmatpush1.bf16.msra.mxu0 %v880
    %938 = vmatprep.subr.bf16.mxu0 0
    %939 = vmatpush1.bf16.msra.mxu0 %v879
    %940 = vmatprep.subr.bf16.mxu0 0
    %941 = vmatpush1.bf16.msra.mxu0 %v878
    %942 = vmatprep.subr.bf16.mxu0 0
    %943 = vmatpush2.bf16.msra.mxu0 %v893
    %944 = vmatprep.subr.bf16.mxu0 0
    %945 = vmatpush2.bf16.msra.mxu0 %v892
    %946 = vmatprep.subr.bf16.mxu0 0
    %947 = vmatpush2.bf16.msra.mxu0 %v891
    %948 = vmatprep.subr.bf16.mxu0 0
    %949 = vmatpush2.bf16.msra.mxu0 %v890
    %950 = vmatprep.subr.bf16.mxu0 0
    %951 = vmatpush2.bf16.msra.mxu0 %v889
    %952 = vmatprep.subr.bf16.mxu0 0
    %953 = vmatpush2.bf16.msra.mxu0 %v888
    %954 = vmatprep.subr.bf16.mxu0 0
    %955 = vmatpush2.bf16.msra.mxu0 %v887
    %956 = vmatprep.subr.bf16.mxu0 0
    %957 = vmatpush2.bf16.msra.mxu0 %v886
    %958 = vmatprep.mubr.bf16.mxu0 %v732
    %959 = vmatmul.mubr.bf16.gmra.mxu0 %v731
    %v960 = vpop.f32.mrf.mxu0
    %v961 = vadd.f32 0.0, %v960
    %v962 = vpop.f32.mrf.mxu0
    %v963 = vpop.f32.mrf.mxu0
    %v964 = vadd.f32 0.0, %v963
    %v965 = vpop.f32.mrf.mxu0
    %966 = vdwg.mxu0
    %967 = vmatprep.subr.bf16.mxu0 0
    %968 = vmatpush1.bf16.msra.mxu0 %v901
    %969 = vmatprep.subr.bf16.mxu0 0
    %970 = vmatpush1.bf16.msra.mxu0 %v900
    %971 = vmatprep.subr.bf16.mxu0 0
    %972 = vmatpush1.bf16.msra.mxu0 %v899
    %973 = vmatprep.subr.bf16.mxu0 0
    %974 = vmatpush1.bf16.msra.mxu0 %v898
    %975 = vmatprep.subr.bf16.mxu0 0
    %976 = vmatpush1.bf16.msra.mxu0 %v897
    %977 = vmatprep.subr.bf16.mxu0 0
    %978 = vmatpush1.bf16.msra.mxu0 %v896
    %979 = vmatprep.subr.bf16.mxu0 0
    %980 = vmatpush1.bf16.msra.mxu0 %v895
    %981 = vmatprep.subr.bf16.mxu0 0
    %982 = vmatpush1.bf16.msra.mxu0 %v894
    %983 = vmatprep.subr.bf16.mxu0 0
    %984 = vmatpush2.bf16.msra.mxu0 0
    %985 = vmatprep.subr.bf16.mxu0 0
    %986 = vmatpush2.bf16.msra.mxu0 0
    %987 = vmatprep.subr.bf16.mxu0 0
    %988 = vmatpush2.bf16.msra.mxu0 0
    %989 = vmatprep.subr.bf16.mxu0 0
    %990 = vmatpush2.bf16.msra.mxu0 0
    %991 = vmatprep.subr.bf16.mxu0 0
    %992 = vmatpush2.bf16.msra.mxu0 0
    %993 = vmatprep.subr.bf16.mxu0 0
    %994 = vmatpush2.bf16.msra.mxu0 0
    %995 = vmatprep.subr.bf16.mxu0 0
    %996 = vmatpush2.bf16.msra.mxu0 0
    %997 = vmatprep.subr.bf16.mxu0 0
    %998 = vmatpush2.bf16.msra.mxu0 0
    %999 = vmatprep.mubr.bf16.mxu0 0
    %1000 = vmatmul.mubr.bf16.gmra.mxu0 %v733
    %v1001 = vpop.f32.mrf.mxu0
    %v1002 = vadd.f32 %v961, %v1001
    %v1003 = vpop.f32.mrf.mxu0
    %v1004 = vpop.f32.mrf.mxu0
    %v1005 = vadd.f32 %v964, %v1004
    %v1006 = vpop.f32.mrf.mxu0
    %1007 = vdwg.mxu0
    %v1008 = vsel %vm117, %v1005, 0.0
    %v1009 = vadd.f32 %v1002, %v1008
    %v1010 = vrot.slane %v1009, 4
    %v1011 = vadd.f32 %v1009, %v1010
    %v1012 = vrot.slane %v1011, 2
    %v1013 = vadd.f32 %v1011, %v1012
    %v1014 = vrot.slane %v1013, 1
    %v1015 = vadd.f32 %v1013, %v1014
    %v1016 = vrcp.pop 14.0
    %v1017 = vmul.f32 %v1015, %v1016
    %v1018 = vmul.f32 %v1002, %v1002
    %v1019 = vmul.f32 %v1005, %v1005
    %v1020 = vsel %vm117, %v1019, 0.0
    %v1021 = vadd.f32 %v1018, %v1020
    %v1022 = vrot.slane %v1021, 4
    %v1023 = vadd.f32 %v1021, %v1022
    %v1024 = vrot.slane %v1023, 2
    %v1025 = vadd.f32 %v1023, %v1024
    %v1026 = vrot.slane %v1025, 1
    %v1027 = vadd.f32 %v1025, %v1026
    %v1028 = vmul.f32 %v1027, %v1016
    %v1029 = vsel %vm82, %v1017, %v1028
    %v1030 = vld [vmem:[%s6] sm:$0xff]
    %v1031 = vld [vmem:[%s6 + $0x8] sm:$0xff]
    %v1032 = vld [vmem:[%s6 + $0x10] sm:$0xff]
    %v1033 = vld [vmem:[%s6 + $0x18] sm:$0xff]
    %v1034 = vld [vmem:[%s6 + $0x20] sm:$0xff]
    %v1035 = vld [vmem:[%s6 + $0x28] sm:$0xff]
    %v1036 = vld [vmem:[%s6 + $0x30] sm:$0xff]
    %v1037 = vld [vmem:[%s6 + $0x38] sm:$0xff]
    %v1038 = vld [vmem:[%s6 + $0x40] sm:$0xff]
    %v1039 = vld [vmem:[%s6 + $0x48] sm:$0xff]
    %v1040 = vld [vmem:[%s6 + $0x50] sm:$0xff]
    %v1041 = vld [vmem:[%s6 + $0x58] sm:$0xff]
    %v1042 = vld [vmem:[%s6 + $0x60] sm:$0xff]
    %v1043 = vld [vmem:[%s6 + $0x68] sm:$0xff]
    %v1044 = vld [vmem:[%s6 + $0x70] sm:$0xff]
    %v1045 = vld [vmem:[%s6 + $0x78] sm:$0xff]
    %1046 = vmatprep.subr.mxu0 0.0
    %1047 = vmatpush1.msra.mxu0 %v1045
    %1048 = vmatprep.subr.mxu0 0.0
    %1049 = vmatpush1.msra.mxu0 %v1044
    %1050 = vmatprep.subr.mxu0 0.0
    %1051 = vmatpush1.msra.mxu0 %v1043
    %1052 = vmatprep.subr.mxu0 0.0
    %1053 = vmatpush1.msra.mxu0 %v1042
    %1054 = vmatprep.subr.mxu0 0.0
    %1055 = vmatpush1.msra.mxu0 %v1041
    %1056 = vmatprep.subr.mxu0 0.0
    %1057 = vmatpush1.msra.mxu0 %v1040
    %1058 = vmatprep.subr.mxu0 0.0
    %1059 = vmatpush1.msra.mxu0 %v1039
    %1060 = vmatprep.subr.mxu0 0.0
    %1061 = vmatpush1.msra.mxu0 %v1038
    %1062 = vmatprep.subr.mxu0 0.0
    %1063 = vmatpush1.msra.mxu0 %v1037
    %1064 = vmatprep.subr.mxu0 0.0
    %1065 = vmatpush1.msra.mxu0 %v1036
    %1066 = vmatprep.subr.mxu0 0.0
    %1067 = vmatpush1.msra.mxu0 %v1035
    %1068 = vmatprep.subr.mxu0 0.0
    %1069 = vmatpush1.msra.mxu0 %v1034
    %1070 = vmatprep.subr.mxu0 0.0
    %1071 = vmatpush1.msra.mxu0 %v1033
    %1072 = vmatprep.subr.mxu0 0.0
    %1073 = vmatpush1.msra.mxu0 %v1032
    %1074 = vmatprep.subr.mxu0 0.0
    %1075 = vmatpush1.msra.mxu0 %v1031
    %1076 = vmatprep.subr.mxu0 0.0
    %1077 = vmatpush1.msra.mxu0 %v1030
    %1078 = vmatprep.subr.mxu0 0.0
    %1079 = vmatpush2.msra.mxu0 0.0
    %1080 = vmatprep.subr.mxu0 0.0
    %1081 = vmatpush2.msra.mxu0 0.0
    %1082 = vmatprep.subr.mxu0 0.0
    %1083 = vmatpush2.msra.mxu0 0.0
    %1084 = vmatprep.subr.mxu0 0.0
    %1085 = vmatpush2.msra.mxu0 0.0
    %1086 = vmatprep.subr.mxu0 0.0
    %1087 = vmatpush2.msra.mxu0 0.0
    %1088 = vmatprep.subr.mxu0 0.0
    %1089 = vmatpush2.msra.mxu0 0.0
    %1090 = vmatprep.subr.mxu0 0.0
    %1091 = vmatpush2.msra.mxu0 0.0
    %1092 = vmatprep.subr.mxu0 0.0
    %1093 = vmatpush2.msra.mxu0 0.0
    %1094 = vmatprep.subr.mxu0 0.0
    %1095 = vmatpush2.msra.mxu0 0.0
    %1096 = vmatprep.subr.mxu0 0.0
    %1097 = vmatpush2.msra.mxu0 0.0
    %1098 = vmatprep.subr.mxu0 0.0
    %1099 = vmatpush2.msra.mxu0 0.0
    %1100 = vmatprep.subr.mxu0 0.0
    %1101 = vmatpush2.msra.mxu0 0.0
    %1102 = vmatprep.subr.mxu0 0.0
    %1103 = vmatpush2.msra.mxu0 0.0
    %1104 = vmatprep.subr.mxu0 0.0
    %1105 = vmatpush2.msra.mxu0 0.0
    %1106 = vmatprep.subr.mxu0 0.0
    %1107 = vmatpush2.msra.mxu0 0.0
    %1108 = vmatprep.subr.mxu0 0.0
    %1109 = vmatpush2.msra.mxu0 0.0
    %1110 = vmatprep.mubr.f32.mxu0 0.0
    %1111 = vmatmul.mubr.f32.gmra.mxu0 %v1029
    %v1112 = vpop.f32.mrf.mxu0
    %v1113 = vadd.f32 0.0, %v1112
    %v1114 = vpop.f32.mrf.mxu0
    %1115 = vdwg.mxu0
    %v1116 = vmul.f32 %v1113, %v1113
    %v1118 = vrot.slane %v1116, 7
    %v1120 = vsub.f32 %v1113, %v1118
    %v1121 = vmax.f32 %v1120, 0.0
    %v1122 = vld [vmem:[%s8] sm:$0x3]
    %v1123 = vadd.f32 %v1121, 1e-05
    %v1124 = vrsqrt.pop %v1123
    %v1126 = vrot.slane %v1124, 1
    %v1128 = vmul.f32 %v1122, %v1126
    %v1129 = vmul.f32 %v1113, %v1128
    %v1131 = vrot.slane %v1129, 7
    %v1133 = vsub.f32 %v1122, %v1131
    %v1134 = vsel %vm82, %v1128, %v1133
    %v1135 = vld [vmem:[%s7] sm:$0xff]
    %v1136 = vld [vmem:[%s7 + $0x8] sm:$0xff]
    %vm1137 = vcmask 130048
    %v1139 = vsel %vm1137, %v1134, 0
    %1141 = vmatprep.subr.mxu0 0.0
    %1142 = vmatpush1.msra.mxu0 0.0
    %1143 = vmatprep.subr.mxu0 0.0
    %1144 = vmatpush1.msra.mxu0 0.0
    %1145 = vmatprep.subr.mxu0 0.0
    %1146 = vmatpush1.msra.mxu0 0.0
    %1147 = vmatprep.subr.mxu0 0.0
    %1148 = vmatpush1.msra.mxu0 0.0
    %1149 = vmatprep.subr.mxu0 0.0
    %1150 = vmatpush1.msra.mxu0 0.0
    %1151 = vmatprep.subr.mxu0 0.0
    %1152 = vmatpush1.msra.mxu0 0.0
    %1153 = vmatprep.subr.mxu0 0.0
    %1154 = vmatpush1.msra.mxu0 0.0
    %1155 = vmatprep.subr.mxu0 0.0
    %1156 = vmatpush1.msra.mxu0 0.0
    %1157 = vmatprep.subr.mxu0 0.0
    %1158 = vmatpush1.msra.mxu0 0.0
    %1159 = vmatprep.subr.mxu0 0.0
    %1160 = vmatpush1.msra.mxu0 0.0
    %1161 = vmatprep.subr.mxu0 0.0
    %1162 = vmatpush1.msra.mxu0 0.0
    %1163 = vmatprep.subr.mxu0 0.0
    %1164 = vmatpush1.msra.mxu0 0.0
    %1165 = vmatprep.subr.mxu0 0.0
    %1166 = vmatpush1.msra.mxu0 0.0
    %1167 = vmatprep.subr.mxu0 0.0
    %1168 = vmatpush1.msra.mxu0 0.0
    %1169 = vmatprep.subr.mxu0 0.0
    %1170 = vmatpush1.msra.mxu0 %v1136
    %1171 = vmatprep.subr.mxu0 0.0
    %1172 = vmatpush1.msra.mxu0 %v1135
    %1173 = vmatprep.subr.mxu0 0.0
    %1174 = vmatpush2.msra.mxu0 0.0
    %1175 = vmatprep.subr.mxu0 0.0
    %1176 = vmatpush2.msra.mxu0 0.0
    %1177 = vmatprep.subr.mxu0 0.0
    %1178 = vmatpush2.msra.mxu0 0.0
    %1179 = vmatprep.subr.mxu0 0.0
    %1180 = vmatpush2.msra.mxu0 0.0
    %1181 = vmatprep.subr.mxu0 0.0
    %1182 = vmatpush2.msra.mxu0 0.0
    %1183 = vmatprep.subr.mxu0 0.0
    %1184 = vmatpush2.msra.mxu0 0.0
    %1185 = vmatprep.subr.mxu0 0.0
    %1186 = vmatpush2.msra.mxu0 0.0
    %1187 = vmatprep.subr.mxu0 0.0
    %1188 = vmatpush2.msra.mxu0 0.0
    %1189 = vmatprep.subr.mxu0 0.0
    %1190 = vmatpush2.msra.mxu0 0.0
    %1191 = vmatprep.subr.mxu0 0.0
    %1192 = vmatpush2.msra.mxu0 0.0
    %1193 = vmatprep.subr.mxu0 0.0
    %1194 = vmatpush2.msra.mxu0 0.0
    %1195 = vmatprep.subr.mxu0 0.0
    %1196 = vmatpush2.msra.mxu0 0.0
    %1197 = vmatprep.subr.mxu0 0.0
    %1198 = vmatpush2.msra.mxu0 0.0
    %1199 = vmatprep.subr.mxu0 0.0
    %1200 = vmatpush2.msra.mxu0 0.0
    %1201 = vmatprep.subr.mxu0 0.0
    %1202 = vmatpush2.msra.mxu0 0.0
    %1203 = vmatprep.subr.mxu0 0.0
    %1204 = vmatpush2.msra.mxu0 0.0
    %1205 = vmatprep.mubr.f32.mxu0 0.0
    %1206 = vmatmul.mubr.f32.gmra.mxu0 %v1139
    %v1207 = vpop.f32.mrf.mxu0
    %v1208 = vadd.f32 0.0, %v1207
    %v1209 = vpop.f32.mrf.mxu0
    %1210 = vdwg.mxu0
    %v1211 = vlaneseq
    %v1212 = vshrl.u32 %v1211, 7
    %v1213 = vsub.s32 0, %v1212
    %v1214 = vrot.slane %v1208, %v1213
    %v1215 = vmul.f32 %v1002, %v1214
    %v1216 = vmul.f32 %v1005, %v1214
    %v1217 = vlaneseq
    %v1218 = vshrl.u32 %v1217, 7
    %v1219 = vsub.s32 1, %v1218
    %v1220 = vrot.slane %v1208, %v1219
    %v1221 = vadd.f32 %v1215, %v1220
    %v1222 = vadd.f32 %v1216, %v1220
    %vm1223 = vcmp.ge.f32.partialorder %v1221, 0.0
    %vm1224 = vcmp.ge.f32.partialorder %v1222, 0.0
    %v1225 = vmul.f32 %v1221, 0.01
    %v1226 = vmul.f32 %v1222, 0.01
    %v1227 = vsel %vm1223, %v1221, %v1225
    %v1228 = vsel %vm1224, %v1222, %v1226
    %1229 = vst [vmem:[#allocation7] sm:$0xff] %v1227
    %1230 = vst [vmem:[#allocation7 + $0x8] sm:$0x3f] %v1228
    %1231 = vst [vmem:[#allocation4] sm:$0xff] 0.0
    %1232 = vst [vmem:[#allocation4 + $0x8] sm:$0xff] 0.0
    %1233 = vst [vmem:[#allocation4 + $0x10] sm:$0xff] 0.0
    %s1234 = scalar_lea.vmem [#allocation7], 1
    %v1235 = vld [vmem:[%s1234] ss:$2 sm:$0x7]
    %v1237 = vrot.slane %v1235, 7
    %1239 = vst [vmem:[#allocation4] sm:$0xe] %v1237
    %s1240 = scalar_lea.vmem [#allocation7], 8
    %v1241 = vld [vmem:[%s1240] ss:$2 sm:$0x7]
    %v1243 = vrot.slane %v1241, 3
    %1245 = vst [vmem:[#allocation4] sm:$0xe0] %v1243
    %v1246 = vld [vmem:[#allocation7] ss:$2 sm:$0xf]
    %1247 = vst [vmem:[#allocation4 + $0x8] sm:$0xf] %v1246
    %s1248 = scalar_lea.vmem [#allocation7], 7
    %v1249 = vld [vmem:[%s1248] ss:$2 sm:$0xf]
    %v1251 = vrot.slane %v1249, 4
    %1253 = vst [vmem:[#allocation4 + $0x8] sm:$0xf0] %v1251
    %v1254 = vld [vmem:[%s1234] ss:$2 sm:$0x7]
    %1255 = vst [vmem:[#allocation4 + $0x10] sm:$0x7] %v1254
    %v1256 = vld [vmem:[%s1240] ss:$2 sm:$0x7]
    %v1258 = vrot.slane %v1256, 4
    %1260 = vst [vmem:[#allocation4 + $0x10] sm:$0x70] %v1258
    %v1261 = vld [vmem:[#allocation4] sm:$0xff]
    %v1262 = vld [vmem:[#allocation4 + $0x8] sm:$0xff]
    %v1263 = vld [vmem:[#allocation4 + $0x10] sm:$0xff]
    %v1264 = vpack.c.bf16 %v1261, %v1261
    %v1265 = vpack.c.bf16 %v1262, %v1262
    %v1266 = vpack.c.bf16 %v1263, %v1263
    %v1267 = vld [vmem:[%s9] sm:$0xf]
    %v1268 = vld [vmem:[%s9 + $0x4] sm:$0xf]
    %v1269 = vld [vmem:[%s9 + $0x8] sm:$0xf]
    %v1270 = vld [vmem:[%s9 + $0xc] sm:$0xf]
    %v1271 = vld [vmem:[%s9 + $0x10] sm:$0xf]
    %v1272 = vld [vmem:[%s9 + $0x14] sm:$0xf]
    %v1273 = vld [vmem:[%s9 + $0x18] sm:$0xf]
    %v1274 = vld [vmem:[%s9 + $0x1c] sm:$0xf]
    %v1275 = vld [vmem:[%s9 + $0x20] sm:$0xf]
    %v1276 = vld [vmem:[%s9 + $0x24] sm:$0xf]
    %v1277 = vld [vmem:[%s9 + $0x28] sm:$0xf]
    %v1278 = vld [vmem:[%s9 + $0x2c] sm:$0xf]
    %v1279 = vld [vmem:[%s9 + $0x30] sm:$0xf]
    %v1280 = vld [vmem:[%s9 + $0x34] sm:$0xf]
    %v1281 = vld [vmem:[%s9 + $0x38] sm:$0xf]
    %v1282 = vld [vmem:[%s9 + $0x3c] sm:$0xf]
    %v1283 = vld [vmem:[%s9 + $0x40] sm:$0xf]
    %v1284 = vld [vmem:[%s9 + $0x44] sm:$0xf]
    %v1285 = vld [vmem:[%s9 + $0x48] sm:$0xf]
    %v1286 = vld [vmem:[%s9 + $0x4c] sm:$0xf]
    %v1287 = vld [vmem:[%s9 + $0x50] sm:$0xf]
    %v1288 = vld [vmem:[%s9 + $0x54] sm:$0xf]
    %v1289 = vld [vmem:[%s9 + $0x58] sm:$0xf]
    %v1290 = vld [vmem:[%s9 + $0x5c] sm:$0xf]
    %v1291 = vld [vmem:[%s9 + $0x60] sm:$0xf]
    %v1292 = vld [vmem:[%s9 + $0x64] sm:$0xf]
    %v1293 = vld [vmem:[%s9 + $0x68] sm:$0xf]
    %v1294 = vld [vmem:[%s9 + $0x6c] sm:$0xf]
    %v1295 = vld [vmem:[%s9 + $0x70] sm:$0xf]
    %v1296 = vld [vmem:[%s9 + $0x74] sm:$0xf]
    %v1297 = vld [vmem:[%s9 + $0x78] sm:$0xf]
    %v1298 = vld [vmem:[%s9 + $0x7c] sm:$0xf]
    %v1299 = vld [vmem:[%s9 + $0x80] sm:$0xf]
    %v1300 = vld [vmem:[%s9 + $0x84] sm:$0xf]
    %v1301 = vld [vmem:[%s9 + $0x88] sm:$0xf]
    %v1302 = vld [vmem:[%s9 + $0x8c] sm:$0xf]
    %v1303 = vld [vmem:[%s9 + $0x90] sm:$0xf]
    %v1304 = vld [vmem:[%s9 + $0x94] sm:$0xf]
    %v1305 = vld [vmem:[%s9 + $0x98] sm:$0xf]
    %v1306 = vld [vmem:[%s9 + $0x9c] sm:$0xf]
    %v1307 = vld [vmem:[%s9 + $0xa0] sm:$0xf]
    %v1308 = vld [vmem:[%s9 + $0xa4] sm:$0xf]
    %v1309 = vld [vmem:[%s9 + $0xa8] sm:$0xf]
    %v1310 = vld [vmem:[%s9 + $0xac] sm:$0xf]
    %v1311 = vld [vmem:[%s9 + $0xb0] sm:$0xf]
    %v1312 = vld [vmem:[%s9 + $0xb4] sm:$0xf]
    %v1313 = vld [vmem:[%s9 + $0xb8] sm:$0xf]
    %v1314 = vld [vmem:[%s9 + $0xbc] sm:$0xf]
    %v1363 = vunpack.c.l.b16 %v1267
    %v1364 = vunpack.c.l.b16 %v1268
    %v1365 = vunpack.c.l.b16 %v1269
    %v1366 = vunpack.c.l.b16 %v1270
    %v1367 = vunpack.c.l.b16 %v1271
    %v1368 = vunpack.c.l.b16 %v1272
    %v1369 = vunpack.c.l.b16 %v1273
    %v1370 = vunpack.c.l.b16 %v1274
    %v1371 = vunpack.c.l.b16 %v1275
    %v1372 = vunpack.c.l.b16 %v1276
    %v1373 = vunpack.c.l.b16 %v1277
    %v1374 = vunpack.c.l.b16 %v1278
    %v1375 = vunpack.c.l.b16 %v1279
    %v1376 = vunpack.c.l.b16 %v1280
    %v1377 = vunpack.c.l.b16 %v1281
    %v1378 = vunpack.c.l.b16 %v1282
    %v1379 = vunpack.c.l.b16 %v1283
    %v1380 = vunpack.c.l.b16 %v1284
    %v1381 = vunpack.c.l.b16 %v1285
    %v1382 = vunpack.c.l.b16 %v1286
    %v1383 = vunpack.c.l.b16 %v1287
    %v1384 = vunpack.c.l.b16 %v1288
    %v1385 = vunpack.c.l.b16 %v1289
    %v1386 = vunpack.c.l.b16 %v1290
    %v1387 = vunpack.c.l.b16 %v1291
    %v1388 = vunpack.c.l.b16 %v1292
    %v1389 = vunpack.c.l.b16 %v1293
    %v1390 = vunpack.c.l.b16 %v1294
    %v1391 = vunpack.c.l.b16 %v1295
    %v1392 = vunpack.c.l.b16 %v1296
    %v1393 = vunpack.c.l.b16 %v1297
    %v1394 = vunpack.c.l.b16 %v1298
    %v1395 = vunpack.c.l.b16 %v1299
    %v1396 = vunpack.c.l.b16 %v1300
    %v1397 = vunpack.c.l.b16 %v1301
    %v1398 = vunpack.c.l.b16 %v1302
    %v1399 = vunpack.c.l.b16 %v1303
    %v1400 = vunpack.c.l.b16 %v1304
    %v1401 = vunpack.c.l.b16 %v1305
    %v1402 = vunpack.c.l.b16 %v1306
    %v1403 = vunpack.c.l.b16 %v1307
    %v1404 = vunpack.c.l.b16 %v1308
    %v1405 = vunpack.c.l.b16 %v1309
    %v1406 = vunpack.c.l.b16 %v1310
    %v1407 = vunpack.c.l.b16 %v1311
    %v1408 = vunpack.c.l.b16 %v1312
    %v1409 = vunpack.c.l.b16 %v1313
    %v1410 = vunpack.c.l.b16 %v1314
    %v1411 = vpack.c.b16 %v1364, %v1363
    %v1412 = vpack.c.b16 %v1366, %v1365
    %v1413 = vpack.c.b16 %v1368, %v1367
    %v1414 = vpack.c.b16 %v1370, %v1369
    %v1415 = vpack.c.b16 %v1372, %v1371
    %v1416 = vpack.c.b16 %v1374, %v1373
    %v1417 = vpack.c.b16 %v1376, %v1375
    %v1418 = vpack.c.b16 %v1378, %v1377
    %v1419 = vpack.c.b16 %v1380, %v1379
    %v1420 = vpack.c.b16 %v1382, %v1381
    %v1421 = vpack.c.b16 %v1384, %v1383
    %v1422 = vpack.c.b16 %v1386, %v1385
    %v1423 = vpack.c.b16 %v1388, %v1387
    %v1424 = vpack.c.b16 %v1390, %v1389
    %v1425 = vpack.c.b16 %v1392, %v1391
    %v1426 = vpack.c.b16 %v1394, %v1393
    %v1427 = vpack.c.b16 %v1396, %v1395
    %v1428 = vpack.c.b16 %v1398, %v1397
    %v1429 = vpack.c.b16 %v1400, %v1399
    %v1430 = vpack.c.b16 %v1402, %v1401
    %v1431 = vpack.c.b16 %v1404, %v1403
    %v1432 = vpack.c.b16 %v1406, %v1405
    %v1433 = vpack.c.b16 %v1408, %v1407
    %v1434 = vpack.c.b16 %v1410, %v1409
    %1459 = vmatprep.subr.bf16.mxu0 0
    %1460 = vmatpush1.bf16.msra.mxu0 %v1418
    %1461 = vmatprep.subr.bf16.mxu0 0
    %1462 = vmatpush1.bf16.msra.mxu0 %v1417
    %1463 = vmatprep.subr.bf16.mxu0 0
    %1464 = vmatpush1.bf16.msra.mxu0 %v1416
    %1465 = vmatprep.subr.bf16.mxu0 0
    %1466 = vmatpush1.bf16.msra.mxu0 %v1415
    %1467 = vmatprep.subr.bf16.mxu0 0
    %1468 = vmatpush1.bf16.msra.mxu0 %v1414
    %1469 = vmatprep.subr.bf16.mxu0 0
    %1470 = vmatpush1.bf16.msra.mxu0 %v1413
    %1471 = vmatprep.subr.bf16.mxu0 0
    %1472 = vmatpush1.bf16.msra.mxu0 %v1412
    %1473 = vmatprep.subr.bf16.mxu0 0
    %1474 = vmatpush1.bf16.msra.mxu0 %v1411
    %1475 = vmatprep.subr.bf16.mxu0 0
    %1476 = vmatpush2.bf16.msra.mxu0 %v1426
    %1477 = vmatprep.subr.bf16.mxu0 0
    %1478 = vmatpush2.bf16.msra.mxu0 %v1425
    %1479 = vmatprep.subr.bf16.mxu0 0
    %1480 = vmatpush2.bf16.msra.mxu0 %v1424
    %1481 = vmatprep.subr.bf16.mxu0 0
    %1482 = vmatpush2.bf16.msra.mxu0 %v1423
    %1483 = vmatprep.subr.bf16.mxu0 0
    %1484 = vmatpush2.bf16.msra.mxu0 %v1422
    %1485 = vmatprep.subr.bf16.mxu0 0
    %1486 = vmatpush2.bf16.msra.mxu0 %v1421
    %1487 = vmatprep.subr.bf16.mxu0 0
    %1488 = vmatpush2.bf16.msra.mxu0 %v1420
    %1489 = vmatprep.subr.bf16.mxu0 0
    %1490 = vmatpush2.bf16.msra.mxu0 %v1419
    %1491 = vmatprep.mubr.bf16.mxu0 %v1265
    %1492 = vmatmul.mubr.bf16.gmra.mxu0 %v1264
    %v1493 = vpop.f32.mrf.mxu0
    %v1494 = vadd.f32 0.0, %v1493
    %v1495 = vpop.f32.mrf.mxu0
    %v1496 = vpop.f32.mrf.mxu0
    %v1497 = vpop.f32.mrf.mxu0
    %1498 = vdwg.mxu0
    %1499 = vmatprep.subr.bf16.mxu0 0
    %1500 = vmatpush1.bf16.msra.mxu0 %v1434
    %1501 = vmatprep.subr.bf16.mxu0 0
    %1502 = vmatpush1.bf16.msra.mxu0 %v1433
    %1503 = vmatprep.subr.bf16.mxu0 0
    %1504 = vmatpush1.bf16.msra.mxu0 %v1432
    %1505 = vmatprep.subr.bf16.mxu0 0
    %1506 = vmatpush1.bf16.msra.mxu0 %v1431
    %1507 = vmatprep.subr.bf16.mxu0 0
    %1508 = vmatpush1.bf16.msra.mxu0 %v1430
    %1509 = vmatprep.subr.bf16.mxu0 0
    %1510 = vmatpush1.bf16.msra.mxu0 %v1429
    %1511 = vmatprep.subr.bf16.mxu0 0
    %1512 = vmatpush1.bf16.msra.mxu0 %v1428
    %1513 = vmatprep.subr.bf16.mxu0 0
    %1514 = vmatpush1.bf16.msra.mxu0 %v1427
    %1515 = vmatprep.subr.bf16.mxu0 0
    %1516 = vmatpush2.bf16.msra.mxu0 0
    %1517 = vmatprep.subr.bf16.mxu0 0
    %1518 = vmatpush2.bf16.msra.mxu0 0
    %1519 = vmatprep.subr.bf16.mxu0 0
    %1520 = vmatpush2.bf16.msra.mxu0 0
    %1521 = vmatprep.subr.bf16.mxu0 0
    %1522 = vmatpush2.bf16.msra.mxu0 0
    %1523 = vmatprep.subr.bf16.mxu0 0
    %1524 = vmatpush2.bf16.msra.mxu0 0
    %1525 = vmatprep.subr.bf16.mxu0 0
    %1526 = vmatpush2.bf16.msra.mxu0 0
    %1527 = vmatprep.subr.bf16.mxu0 0
    %1528 = vmatpush2.bf16.msra.mxu0 0
    %1529 = vmatprep.subr.bf16.mxu0 0
    %1530 = vmatpush2.bf16.msra.mxu0 0
    %1531 = vmatprep.mubr.bf16.mxu0 0
    %1532 = vmatmul.mubr.bf16.gmra.mxu0 %v1266
    %v1533 = vpop.f32.mrf.mxu0
    %v1534 = vadd.f32 %v1494, %v1533
    %v1535 = vpop.f32.mrf.mxu0
    %v1536 = vpop.f32.mrf.mxu0
    %v1537 = vpop.f32.mrf.mxu0
    %1538 = vdwg.mxu0
    %v1539 = vrot.slane %v1534, 4
    %v1540 = vadd.f32 %v1534, %v1539
    %v1541 = vrot.slane %v1540, 2
    %v1542 = vadd.f32 %v1540, %v1541
    %v1543 = vrot.slane %v1542, 1
    %v1544 = vadd.f32 %v1542, %v1543
    %v1545 = vrcp.pop 8.0
    %v1546 = vmul.f32 %v1544, %v1545
    %v1547 = vmul.f32 %v1534, %v1534
    %v1548 = vrot.slane %v1547, 4
    %v1549 = vadd.f32 %v1547, %v1548
    %v1550 = vrot.slane %v1549, 2
    %v1551 = vadd.f32 %v1549, %v1550
    %v1552 = vrot.slane %v1551, 1
    %v1553 = vadd.f32 %v1551, %v1552
    %v1554 = vmul.f32 %v1553, %v1545
    %v1555 = vsel %vm82, %v1546, %v1554
    %v1556 = vld [vmem:[%s10] sm:$0xff]
    %v1557 = vld [vmem:[%s10 + $0x8] sm:$0xff]
    %v1558 = vld [vmem:[%s10 + $0x10] sm:$0xff]
    %v1559 = vld [vmem:[%s10 + $0x18] sm:$0xff]
    %v1560 = vld [vmem:[%s10 + $0x20] sm:$0xff]
    %v1561 = vld [vmem:[%s10 + $0x28] sm:$0xff]
    %v1562 = vld [vmem:[%s10 + $0x30] sm:$0xff]
    %v1563 = vld [vmem:[%s10 + $0x38] sm:$0xff]
    %v1564 = vld [vmem:[%s10 + $0x40] sm:$0xff]
    %v1565 = vld [vmem:[%s10 + $0x48] sm:$0xff]
    %v1566 = vld [vmem:[%s10 + $0x50] sm:$0xff]
    %v1567 = vld [vmem:[%s10 + $0x58] sm:$0xff]
    %v1568 = vld [vmem:[%s10 + $0x60] sm:$0xff]
    %v1569 = vld [vmem:[%s10 + $0x68] sm:$0xff]
    %v1570 = vld [vmem:[%s10 + $0x70] sm:$0xff]
    %v1571 = vld [vmem:[%s10 + $0x78] sm:$0xff]
    %1572 = vmatprep.subr.mxu0 0.0
    %1573 = vmatpush1.msra.mxu0 %v1571
    %1574 = vmatprep.subr.mxu0 0.0
    %1575 = vmatpush1.msra.mxu0 %v1570
    %1576 = vmatprep.subr.mxu0 0.0
    %1577 = vmatpush1.msra.mxu0 %v1569
    %1578 = vmatprep.subr.mxu0 0.0
    %1579 = vmatpush1.msra.mxu0 %v1568
    %1580 = vmatprep.subr.mxu0 0.0
    %1581 = vmatpush1.msra.mxu0 %v1567
    %1582 = vmatprep.subr.mxu0 0.0
    %1583 = vmatpush1.msra.mxu0 %v1566
    %1584 = vmatprep.subr.mxu0 0.0
    %1585 = vmatpush1.msra.mxu0 %v1565
    %1586 = vmatprep.subr.mxu0 0.0
    %1587 = vmatpush1.msra.mxu0 %v1564
    %1588 = vmatprep.subr.mxu0 0.0
    %1589 = vmatpush1.msra.mxu0 %v1563
    %1590 = vmatprep.subr.mxu0 0.0
    %1591 = vmatpush1.msra.mxu0 %v1562
    %1592 = vmatprep.subr.mxu0 0.0
    %1593 = vmatpush1.msra.mxu0 %v1561
    %1594 = vmatprep.subr.mxu0 0.0
    %1595 = vmatpush1.msra.mxu0 %v1560
    %1596 = vmatprep.subr.mxu0 0.0
    %1597 = vmatpush1.msra.mxu0 %v1559
    %1598 = vmatprep.subr.mxu0 0.0
    %1599 = vmatpush1.msra.mxu0 %v1558
    %1600 = vmatprep.subr.mxu0 0.0
    %1601 = vmatpush1.msra.mxu0 %v1557
    %1602 = vmatprep.subr.mxu0 0.0
    %1603 = vmatpush1.msra.mxu0 %v1556
    %1604 = vmatprep.subr.mxu0 0.0
    %1605 = vmatpush2.msra.mxu0 0.0
    %1606 = vmatprep.subr.mxu0 0.0
    %1607 = vmatpush2.msra.mxu0 0.0
    %1608 = vmatprep.subr.mxu0 0.0
    %1609 = vmatpush2.msra.mxu0 0.0
    %1610 = vmatprep.subr.mxu0 0.0
    %1611 = vmatpush2.msra.mxu0 0.0
    %1612 = vmatprep.subr.mxu0 0.0
    %1613 = vmatpush2.msra.mxu0 0.0
    %1614 = vmatprep.subr.mxu0 0.0
    %1615 = vmatpush2.msra.mxu0 0.0
    %1616 = vmatprep.subr.mxu0 0.0
    %1617 = vmatpush2.msra.mxu0 0.0
    %1618 = vmatprep.subr.mxu0 0.0
    %1619 = vmatpush2.msra.mxu0 0.0
    %1620 = vmatprep.subr.mxu0 0.0
    %1621 = vmatpush2.msra.mxu0 0.0
    %1622 = vmatprep.subr.mxu0 0.0
    %1623 = vmatpush2.msra.mxu0 0.0
    %1624 = vmatprep.subr.mxu0 0.0
    %1625 = vmatpush2.msra.mxu0 0.0
    %1626 = vmatprep.subr.mxu0 0.0
    %1627 = vmatpush2.msra.mxu0 0.0
    %1628 = vmatprep.subr.mxu0 0.0
    %1629 = vmatpush2.msra.mxu0 0.0
    %1630 = vmatprep.subr.mxu0 0.0
    %1631 = vmatpush2.msra.mxu0 0.0
    %1632 = vmatprep.subr.mxu0 0.0
    %1633 = vmatpush2.msra.mxu0 0.0
    %1634 = vmatprep.subr.mxu0 0.0
    %1635 = vmatpush2.msra.mxu0 0.0
    %1636 = vmatprep.mubr.f32.mxu0 0.0
    %1637 = vmatmul.mubr.f32.gmra.mxu0 %v1555
    %v1638 = vpop.f32.mrf.mxu0
    %v1639 = vadd.f32 0.0, %v1638
    %v1640 = vpop.f32.mrf.mxu0
    %1641 = vdwg.mxu0
    %v1642 = vmul.f32 %v1639, %v1639
    %v1644 = vrot.slane %v1642, 7
    %v1646 = vsub.f32 %v1639, %v1644
    %v1647 = vmax.f32 %v1646, 0.0
    %v1648 = vld [vmem:[%s12] sm:$0x3]
    %v1649 = vadd.f32 %v1647, 1e-05
    %v1650 = vrsqrt.pop %v1649
    %v1652 = vrot.slane %v1650, 1
    %v1654 = vmul.f32 %v1648, %v1652
    %v1655 = vmul.f32 %v1639, %v1654
    %v1657 = vrot.slane %v1655, 7
    %v1659 = vsub.f32 %v1648, %v1657
    %v1660 = vsel %vm82, %v1654, %v1659
    %v1661 = vld [vmem:[%s11] sm:$0xff]
    %v1662 = vld [vmem:[%s11 + $0x8] sm:$0xff]
    %v1663 = vld [vmem:[%s11 + $0x10] sm:$0xff]
    %v1664 = vld [vmem:[%s11 + $0x18] sm:$0xff]
    %vm1665 = vcmask 261120
    %v1667 = vsel %vm1665, %v1660, 0
    %1669 = vmatprep.subr.mxu0 0.0
    %1670 = vmatpush1.msra.mxu0 0.0
    %1671 = vmatprep.subr.mxu0 0.0
    %1672 = vmatpush1.msra.mxu0 0.0
    %1673 = vmatprep.subr.mxu0 0.0
    %1674 = vmatpush1.msra.mxu0 0.0
    %1675 = vmatprep.subr.mxu0 0.0
    %1676 = vmatpush1.msra.mxu0 0.0
    %1677 = vmatprep.subr.mxu0 0.0
    %1678 = vmatpush1.msra.mxu0 0.0
    %1679 = vmatprep.subr.mxu0 0.0
    %1680 = vmatpush1.msra.mxu0 0.0
    %1681 = vmatprep.subr.mxu0 0.0
    %1682 = vmatpush1.msra.mxu0 0.0
    %1683 = vmatprep.subr.mxu0 0.0
    %1684 = vmatpush1.msra.mxu0 0.0
    %1685 = vmatprep.subr.mxu0 0.0
    %1686 = vmatpush1.msra.mxu0 0.0
    %1687 = vmatprep.subr.mxu0 0.0
    %1688 = vmatpush1.msra.mxu0 0.0
    %1689 = vmatprep.subr.mxu0 0.0
    %1690 = vmatpush1.msra.mxu0 0.0
    %1691 = vmatprep.subr.mxu0 0.0
    %1692 = vmatpush1.msra.mxu0 0.0
    %1693 = vmatprep.subr.mxu0 0.0
    %1694 = vmatpush1.msra.mxu0 %v1664
    %1695 = vmatprep.subr.mxu0 0.0
    %1696 = vmatpush1.msra.mxu0 %v1663
    %1697 = vmatprep.subr.mxu0 0.0
    %1698 = vmatpush1.msra.mxu0 %v1662
    %1699 = vmatprep.subr.mxu0 0.0
    %1700 = vmatpush1.msra.mxu0 %v1661
    %1701 = vmatprep.subr.mxu0 0.0
    %1702 = vmatpush2.msra.mxu0 0.0
    %1703 = vmatprep.subr.mxu0 0.0
    %1704 = vmatpush2.msra.mxu0 0.0
    %1705 = vmatprep.subr.mxu0 0.0
    %1706 = vmatpush2.msra.mxu0 0.0
    %1707 = vmatprep.subr.mxu0 0.0
    %1708 = vmatpush2.msra.mxu0 0.0
    %1709 = vmatprep.subr.mxu0 0.0
    %1710 = vmatpush2.msra.mxu0 0.0
    %1711 = vmatprep.subr.mxu0 0.0
    %1712 = vmatpush2.msra.mxu0 0.0
    %1713 = vmatprep.subr.mxu0 0.0
    %1714 = vmatpush2.msra.mxu0 0.0
    %1715 = vmatprep.subr.mxu0 0.0
    %1716 = vmatpush2.msra.mxu0 0.0
    %1717 = vmatprep.subr.mxu0 0.0
    %1718 = vmatpush2.msra.mxu0 0.0
    %1719 = vmatprep.subr.mxu0 0.0
    %1720 = vmatpush2.msra.mxu0 0.0
    %1721 = vmatprep.subr.mxu0 0.0
    %1722 = vmatpush2.msra.mxu0 0.0
    %1723 = vmatprep.subr.mxu0 0.0
    %1724 = vmatpush2.msra.mxu0 0.0
    %1725 = vmatprep.subr.mxu0 0.0
    %1726 = vmatpush2.msra.mxu0 0.0
    %1727 = vmatprep.subr.mxu0 0.0
    %1728 = vmatpush2.msra.mxu0 0.0
    %1729 = vmatprep.subr.mxu0 0.0
    %1730 = vmatpush2.msra.mxu0 0.0
    %1731 = vmatprep.subr.mxu0 0.0
    %1732 = vmatpush2.msra.mxu0 0.0
    %1733 = vmatprep.mubr.f32.mxu0 0.0
    %1734 = vmatmul.mubr.f32.gmra.mxu0 %v1667
    %v1735 = vpop.f32.mrf.mxu0
    %v1736 = vadd.f32 0.0, %v1735
    %v1737 = vpop.f32.mrf.mxu0
    %1738 = vdwg.mxu0
    %v1739 = vlaneseq
    %v1740 = vshrl.u32 %v1739, 7
    %v1741 = vsub.s32 0, %v1740
    %v1742 = vrot.slane %v1736, %v1741
    %v1743 = vmul.f32 %v1534, %v1742
    %v1744 = vlaneseq
    %v1745 = vshrl.u32 %v1744, 7
    %v1746 = vsub.s32 1, %v1745
    %v1747 = vrot.slane %v1736, %v1746
    %v1748 = vadd.f32 %v1743, %v1747
    %vm1749 = vcmp.ge.f32.partialorder %v1748, 0.0
    %v1750 = vmul.f32 %v1748, 0.01
    %v1751 = vsel %vm1749, %v1748, %v1750
    %1752 = vst [vmem:[#allocation8] sm:$0xff] %v1751
    %v1753 = vld [vmem:[#allocation8] sm:$0x3]
    %1754 = vst [vmem:[#allocation5] sm:$0x3] %v1753
    %v1755 = vld [vmem:[#allocation8 + $0x4] sm:$0x3]
    %v1757 = vrot.slane %v1755, 6
    %1759 = vst [vmem:[#allocation5] sm:$0xc] %v1757
    %v1760 = vld [vmem:[#allocation8 + $0x1] sm:$0x3]
    %1761 = vst [vmem:[#allocation5 + $0x4] sm:$0x3] %v1760
    %v1762 = vld [vmem:[#allocation8 + $0x5] sm:$0x3]
    %v1764 = vrot.slane %v1762, 6
    %1766 = vst [vmem:[#allocation5 + $0x4] sm:$0xc] %v1764
    %v1767 = vld [vmem:[#allocation8 + $0x2] sm:$0x3]
    %1768 = vst [vmem:[#allocation5 + $0x8] sm:$0x3] %v1767
    %v1769 = vld [vmem:[#allocation8 + $0x6] sm:$0x3]
    %v1771 = vrot.slane %v1769, 6
    %1773 = vst [vmem:[#allocation5 + $0x8] sm:$0xc] %v1771
    %v1774 = vld [vmem:[#allocation5] sm:$0xff]
    %v1775 = vld [vmem:[#allocation5 + $0x8] sm:$0xf]
    %v1777 = vcombine.high %v1774, %v1774
    %v1779 = vpack.c.bf16 %v1774, %v1774
    %v1780 = vpack.c.bf16 %v1777, %v1777
    %v1781 = vpack.c.bf16 %v1775, %v1775
    %v1782 = vld [vmem:[%s13] sm:$0xf]
    %v1783 = vld [vmem:[%s13 + $0x4] sm:$0xf]
    %v1784 = vld [vmem:[%s13 + $0x8] sm:$0xf]
    %v1785 = vld [vmem:[%s13 + $0xc] sm:$0xf]
    %v1786 = vld [vmem:[%s13 + $0x10] sm:$0xf]
    %v1787 = vld [vmem:[%s13 + $0x14] sm:$0xf]
    %v1788 = vld [vmem:[%s13 + $0x18] sm:$0xf]
    %v1789 = vld [vmem:[%s13 + $0x1c] sm:$0xf]
    %v1790 = vld [vmem:[%s13 + $0x20] sm:$0xf]
    %v1791 = vld [vmem:[%s13 + $0x24] sm:$0xf]
    %v1792 = vld [vmem:[%s13 + $0x28] sm:$0xf]
    %v1793 = vld [vmem:[%s13 + $0x2c] sm:$0xf]
    %v1794 = vld [vmem:[%s13 + $0x30] sm:$0xf]
    %v1795 = vld [vmem:[%s13 + $0x34] sm:$0xf]
    %v1796 = vld [vmem:[%s13 + $0x38] sm:$0xf]
    %v1797 = vld [vmem:[%s13 + $0x3c] sm:$0xf]
    %v1798 = vld [vmem:[%s13 + $0x40] sm:$0xf]
    %v1799 = vld [vmem:[%s13 + $0x44] sm:$0xf]
    %v1800 = vld [vmem:[%s13 + $0x48] sm:$0xf]
    %v1801 = vld [vmem:[%s13 + $0x4c] sm:$0xf]
    %v1802 = vld [vmem:[%s13 + $0x50] sm:$0xf]
    %v1803 = vld [vmem:[%s13 + $0x54] sm:$0xf]
    %v1804 = vld [vmem:[%s13 + $0x58] sm:$0xf]
    %v1805 = vld [vmem:[%s13 + $0x5c] sm:$0xf]
    %v1806 = vld [vmem:[%s13 + $0x60] sm:$0xf]
    %v1807 = vld [vmem:[%s13 + $0x64] sm:$0xf]
    %v1808 = vld [vmem:[%s13 + $0x68] sm:$0xf]
    %v1809 = vld [vmem:[%s13 + $0x6c] sm:$0xf]
    %v1810 = vld [vmem:[%s13 + $0x70] sm:$0xf]
    %v1811 = vld [vmem:[%s13 + $0x74] sm:$0xf]
    %v1812 = vld [vmem:[%s13 + $0x78] sm:$0xf]
    %v1813 = vld [vmem:[%s13 + $0x7c] sm:$0xf]
    %v1814 = vld [vmem:[%s13 + $0x80] sm:$0xf]
    %v1815 = vld [vmem:[%s13 + $0x84] sm:$0xf]
    %v1816 = vld [vmem:[%s13 + $0x88] sm:$0xf]
    %v1817 = vld [vmem:[%s13 + $0x8c] sm:$0xf]
    %v1818 = vld [vmem:[%s13 + $0x90] sm:$0xf]
    %v1819 = vld [vmem:[%s13 + $0x94] sm:$0xf]
    %v1820 = vld [vmem:[%s13 + $0x98] sm:$0xf]
    %v1821 = vld [vmem:[%s13 + $0x9c] sm:$0xf]
    %v1822 = vld [vmem:[%s13 + $0xa0] sm:$0xf]
    %v1823 = vld [vmem:[%s13 + $0xa4] sm:$0xf]
    %v1824 = vld [vmem:[%s13 + $0xa8] sm:$0xf]
    %v1825 = vld [vmem:[%s13 + $0xac] sm:$0xf]
    %v1826 = vld [vmem:[%s13 + $0xb0] sm:$0xf]
    %v1827 = vld [vmem:[%s13 + $0xb4] sm:$0xf]
    %v1828 = vld [vmem:[%s13 + $0xb8] sm:$0xf]
    %v1829 = vld [vmem:[%s13 + $0xbc] sm:$0xf]
    %v1878 = vunpack.c.l.b16 %v1782
    %v1879 = vunpack.c.l.b16 %v1783
    %v1880 = vunpack.c.l.b16 %v1784
    %v1881 = vunpack.c.l.b16 %v1785
    %v1882 = vunpack.c.l.b16 %v1786
    %v1883 = vunpack.c.l.b16 %v1787
    %v1884 = vunpack.c.l.b16 %v1788
    %v1885 = vunpack.c.l.b16 %v1789
    %v1886 = vunpack.c.l.b16 %v1790
    %v1887 = vunpack.c.l.b16 %v1791
    %v1888 = vunpack.c.l.b16 %v1792
    %v1889 = vunpack.c.l.b16 %v1793
    %v1890 = vunpack.c.l.b16 %v1794
    %v1891 = vunpack.c.l.b16 %v1795
    %v1892 = vunpack.c.l.b16 %v1796
    %v1893 = vunpack.c.l.b16 %v1797
    %v1894 = vunpack.c.l.b16 %v1798
    %v1895 = vunpack.c.l.b16 %v1799
    %v1896 = vunpack.c.l.b16 %v1800
    %v1897 = vunpack.c.l.b16 %v1801
    %v1898 = vunpack.c.l.b16 %v1802
    %v1899 = vunpack.c.l.b16 %v1803
    %v1900 = vunpack.c.l.b16 %v1804
    %v1901 = vunpack.c.l.b16 %v1805
    %v1902 = vunpack.c.l.b16 %v1806
    %v1903 = vunpack.c.l.b16 %v1807
    %v1904 = vunpack.c.l.b16 %v1808
    %v1905 = vunpack.c.l.b16 %v1809
    %v1906 = vunpack.c.l.b16 %v1810
    %v1907 = vunpack.c.l.b16 %v1811
    %v1908 = vunpack.c.l.b16 %v1812
    %v1909 = vunpack.c.l.b16 %v1813
    %v1910 = vunpack.c.l.b16 %v1814
    %v1911 = vunpack.c.l.b16 %v1815
    %v1912 = vunpack.c.l.b16 %v1816
    %v1913 = vunpack.c.l.b16 %v1817
    %v1914 = vunpack.c.l.b16 %v1818
    %v1915 = vunpack.c.l.b16 %v1819
    %v1916 = vunpack.c.l.b16 %v1820
    %v1917 = vunpack.c.l.b16 %v1821
    %v1918 = vunpack.c.l.b16 %v1822
    %v1919 = vunpack.c.l.b16 %v1823
    %v1920 = vunpack.c.l.b16 %v1824
    %v1921 = vunpack.c.l.b16 %v1825
    %v1922 = vunpack.c.l.b16 %v1826
    %v1923 = vunpack.c.l.b16 %v1827
    %v1924 = vunpack.c.l.b16 %v1828
    %v1925 = vunpack.c.l.b16 %v1829
    %v1926 = vpack.c.b16 %v1879, %v1878
    %v1927 = vpack.c.b16 %v1881, %v1880
    %v1928 = vpack.c.b16 %v1883, %v1882
    %v1929 = vpack.c.b16 %v1885, %v1884
    %v1930 = vpack.c.b16 %v1887, %v1886
    %v1931 = vpack.c.b16 %v1889, %v1888
    %v1932 = vpack.c.b16 %v1891, %v1890
    %v1933 = vpack.c.b16 %v1893, %v1892
    %v1934 = vpack.c.b16 %v1895, %v1894
    %v1935 = vpack.c.b16 %v1897, %v1896
    %v1936 = vpack.c.b16 %v1899, %v1898
    %v1937 = vpack.c.b16 %v1901, %v1900
    %v1938 = vpack.c.b16 %v1903, %v1902
    %v1939 = vpack.c.b16 %v1905, %v1904
    %v1940 = vpack.c.b16 %v1907, %v1906
    %v1941 = vpack.c.b16 %v1909, %v1908
    %v1942 = vpack.c.b16 %v1911, %v1910
    %v1943 = vpack.c.b16 %v1913, %v1912
    %v1944 = vpack.c.b16 %v1915, %v1914
    %v1945 = vpack.c.b16 %v1917, %v1916
    %v1946 = vpack.c.b16 %v1919, %v1918
    %v1947 = vpack.c.b16 %v1921, %v1920
    %v1948 = vpack.c.b16 %v1923, %v1922
    %v1949 = vpack.c.b16 %v1925, %v1924
    %1974 = vmatprep.subr.bf16.mxu0 0
    %1975 = vmatpush1.bf16.msra.mxu0 %v1933
    %1976 = vmatprep.subr.bf16.mxu0 0
    %1977 = vmatpush1.bf16.msra.mxu0 %v1932
    %1978 = vmatprep.subr.bf16.mxu0 0
    %1979 = vmatpush1.bf16.msra.mxu0 %v1931
    %1980 = vmatprep.subr.bf16.mxu0 0
    %1981 = vmatpush1.bf16.msra.mxu0 %v1930
    %1982 = vmatprep.subr.bf16.mxu0 0
    %1983 = vmatpush1.bf16.msra.mxu0 %v1929
    %1984 = vmatprep.subr.bf16.mxu0 0
    %1985 = vmatpush1.bf16.msra.mxu0 %v1928
    %1986 = vmatprep.subr.bf16.mxu0 0
    %1987 = vmatpush1.bf16.msra.mxu0 %v1927
    %1988 = vmatprep.subr.bf16.mxu0 0
    %1989 = vmatpush1.bf16.msra.mxu0 %v1926
    %1990 = vmatprep.subr.bf16.mxu0 0
    %1991 = vmatpush2.bf16.msra.mxu0 %v1941
    %1992 = vmatprep.subr.bf16.mxu0 0
    %1993 = vmatpush2.bf16.msra.mxu0 %v1940
    %1994 = vmatprep.subr.bf16.mxu0 0
    %1995 = vmatpush2.bf16.msra.mxu0 %v1939
    %1996 = vmatprep.subr.bf16.mxu0 0
    %1997 = vmatpush2.bf16.msra.mxu0 %v1938
    %1998 = vmatprep.subr.bf16.mxu0 0
    %1999 = vmatpush2.bf16.msra.mxu0 %v1937
    %2000 = vmatprep.subr.bf16.mxu0 0
    %2001 = vmatpush2.bf16.msra.mxu0 %v1936
    %2002 = vmatprep.subr.bf16.mxu0 0
    %2003 = vmatpush2.bf16.msra.mxu0 %v1935
    %2004 = vmatprep.subr.bf16.mxu0 0
    %2005 = vmatpush2.bf16.msra.mxu0 %v1934
    %2006 = vmatprep.mubr.bf16.mxu0 %v1780
    %2007 = vmatmul.mubr.bf16.gmra.mxu0 %v1779
    %v2008 = vpop.f32.mrf.mxu0
    %v2009 = vadd.f32 0.0, %v2008
    %v2010 = vpop.f32.mrf.mxu0
    %v2011 = vpop.f32.mrf.mxu0
    %v2012 = vpop.f32.mrf.mxu0
    %2013 = vdwg.mxu0
    %2014 = vmatprep.subr.bf16.mxu0 0
    %2015 = vmatpush1.bf16.msra.mxu0 %v1949
    %2016 = vmatprep.subr.bf16.mxu0 0
    %2017 = vmatpush1.bf16.msra.mxu0 %v1948
    %2018 = vmatprep.subr.bf16.mxu0 0
    %2019 = vmatpush1.bf16.msra.mxu0 %v1947
    %2020 = vmatprep.subr.bf16.mxu0 0
    %2021 = vmatpush1.bf16.msra.mxu0 %v1946
    %2022 = vmatprep.subr.bf16.mxu0 0
    %2023 = vmatpush1.bf16.msra.mxu0 %v1945
    %2024 = vmatprep.subr.bf16.mxu0 0
    %2025 = vmatpush1.bf16.msra.mxu0 %v1944
    %2026 = vmatprep.subr.bf16.mxu0 0
    %2027 = vmatpush1.bf16.msra.mxu0 %v1943
    %2028 = vmatprep.subr.bf16.mxu0 0
    %2029 = vmatpush1.bf16.msra.mxu0 %v1942
    %2030 = vmatprep.subr.bf16.mxu0 0
    %2031 = vmatpush2.bf16.msra.mxu0 0
    %2032 = vmatprep.subr.bf16.mxu0 0
    %2033 = vmatpush2.bf16.msra.mxu0 0
    %2034 = vmatprep.subr.bf16.mxu0 0
    %2035 = vmatpush2.bf16.msra.mxu0 0
    %2036 = vmatprep.subr.bf16.mxu0 0
    %2037 = vmatpush2.bf16.msra.mxu0 0
    %2038 = vmatprep.subr.bf16.mxu0 0
    %2039 = vmatpush2.bf16.msra.mxu0 0
    %2040 = vmatprep.subr.bf16.mxu0 0
    %2041 = vmatpush2.bf16.msra.mxu0 0
    %2042 = vmatprep.subr.bf16.mxu0 0
    %2043 = vmatpush2.bf16.msra.mxu0 0
    %2044 = vmatprep.subr.bf16.mxu0 0
    %2045 = vmatpush2.bf16.msra.mxu0 0
    %2046 = vmatprep.mubr.bf16.mxu0 0
    %2047 = vmatmul.mubr.bf16.gmra.mxu0 %v1781
    %v2048 = vpop.f32.mrf.mxu0
    %v2049 = vadd.f32 %v2009, %v2048
    %v2050 = vpop.f32.mrf.mxu0
    %v2051 = vpop.f32.mrf.mxu0
    %v2052 = vpop.f32.mrf.mxu0
    %2053 = vdwg.mxu0
    %v2054 = vsel %vm454, %v2049, 0.0
    %v2055 = vrot.slane %v2054, 4
    %v2056 = vadd.f32 %v2054, %v2055
    %v2057 = vrot.slane %v2056, 2
    %v2058 = vadd.f32 %v2056, %v2057
    %v2059 = vrot.slane %v2058, 1
    %v2060 = vadd.f32 %v2058, %v2059
    %v2061 = vrcp.pop 4.0
    %v2062 = vmul.f32 %v2060, %v2061
    %v2063 = vmul.f32 %v2049, %v2049
    %v2064 = vsel %vm454, %v2063, 0.0
    %v2065 = vrot.slane %v2064, 4
    %v2066 = vadd.f32 %v2064, %v2065
    %v2067 = vrot.slane %v2066, 2
    %v2068 = vadd.f32 %v2066, %v2067
    %v2069 = vrot.slane %v2068, 1
    %v2070 = vadd.f32 %v2068, %v2069
    %v2071 = vmul.f32 %v2070, %v2061
    %v2072 = vsel %vm82, %v2062, %v2071
    %v2073 = vld [vmem:[%s14] sm:$0xff]
    %v2074 = vld [vmem:[%s14 + $0x8] sm:$0xff]
    %v2075 = vld [vmem:[%s14 + $0x10] sm:$0xff]
    %v2076 = vld [vmem:[%s14 + $0x18] sm:$0xff]
    %v2077 = vld [vmem:[%s14 + $0x20] sm:$0xff]
    %v2078 = vld [vmem:[%s14 + $0x28] sm:$0xff]
    %v2079 = vld [vmem:[%s14 + $0x30] sm:$0xff]
    %v2080 = vld [vmem:[%s14 + $0x38] sm:$0xff]
    %v2081 = vld [vmem:[%s14 + $0x40] sm:$0xff]
    %v2082 = vld [vmem:[%s14 + $0x48] sm:$0xff]
    %v2083 = vld [vmem:[%s14 + $0x50] sm:$0xff]
    %v2084 = vld [vmem:[%s14 + $0x58] sm:$0xff]
    %v2085 = vld [vmem:[%s14 + $0x60] sm:$0xff]
    %v2086 = vld [vmem:[%s14 + $0x68] sm:$0xff]
    %v2087 = vld [vmem:[%s14 + $0x70] sm:$0xff]
    %v2088 = vld [vmem:[%s14 + $0x78] sm:$0xff]
    %2089 = vmatprep.subr.mxu0 0.0
    %2090 = vmatpush1.msra.mxu0 %v2088
    %2091 = vmatprep.subr.mxu0 0.0
    %2092 = vmatpush1.msra.mxu0 %v2087
    %2093 = vmatprep.subr.mxu0 0.0
    %2094 = vmatpush1.msra.mxu0 %v2086
    %2095 = vmatprep.subr.mxu0 0.0
    %2096 = vmatpush1.msra.mxu0 %v2085
    %2097 = vmatprep.subr.mxu0 0.0
    %2098 = vmatpush1.msra.mxu0 %v2084
    %2099 = vmatprep.subr.mxu0 0.0
    %2100 = vmatpush1.msra.mxu0 %v2083
    %2101 = vmatprep.subr.mxu0 0.0
    %2102 = vmatpush1.msra.mxu0 %v2082
    %2103 = vmatprep.subr.mxu0 0.0
    %2104 = vmatpush1.msra.mxu0 %v2081
    %2105 = vmatprep.subr.mxu0 0.0
    %2106 = vmatpush1.msra.mxu0 %v2080
    %2107 = vmatprep.subr.mxu0 0.0
    %2108 = vmatpush1.msra.mxu0 %v2079
    %2109 = vmatprep.subr.mxu0 0.0
    %2110 = vmatpush1.msra.mxu0 %v2078
    %2111 = vmatprep.subr.mxu0 0.0
    %2112 = vmatpush1.msra.mxu0 %v2077
    %2113 = vmatprep.subr.mxu0 0.0
    %2114 = vmatpush1.msra.mxu0 %v2076
    %2115 = vmatprep.subr.mxu0 0.0
    %2116 = vmatpush1.msra.mxu0 %v2075
    %2117 = vmatprep.subr.mxu0 0.0
    %2118 = vmatpush1.msra.mxu0 %v2074
    %2119 = vmatprep.subr.mxu0 0.0
    %2120 = vmatpush1.msra.mxu0 %v2073
    %2121 = vmatprep.subr.mxu0 0.0
    %2122 = vmatpush2.msra.mxu0 0.0
    %2123 = vmatprep.subr.mxu0 0.0
    %2124 = vmatpush2.msra.mxu0 0.0
    %2125 = vmatprep.subr.mxu0 0.0
    %2126 = vmatpush2.msra.mxu0 0.0
    %2127 = vmatprep.subr.mxu0 0.0
    %2128 = vmatpush2.msra.mxu0 0.0
    %2129 = vmatprep.subr.mxu0 0.0
    %2130 = vmatpush2.msra.mxu0 0.0
    %2131 = vmatprep.subr.mxu0 0.0
    %2132 = vmatpush2.msra.mxu0 0.0
    %2133 = vmatprep.subr.mxu0 0.0
    %2134 = vmatpush2.msra.mxu0 0.0
    %2135 = vmatprep.subr.mxu0 0.0
    %2136 = vmatpush2.msra.mxu0 0.0
    %2137 = vmatprep.subr.mxu0 0.0
    %2138 = vmatpush2.msra.mxu0 0.0
    %2139 = vmatprep.subr.mxu0 0.0
    %2140 = vmatpush2.msra.mxu0 0.0
    %2141 = vmatprep.subr.mxu0 0.0
    %2142 = vmatpush2.msra.mxu0 0.0
    %2143 = vmatprep.subr.mxu0 0.0
    %2144 = vmatpush2.msra.mxu0 0.0
    %2145 = vmatprep.subr.mxu0 0.0
    %2146 = vmatpush2.msra.mxu0 0.0
    %2147 = vmatprep.subr.mxu0 0.0
    %2148 = vmatpush2.msra.mxu0 0.0
    %2149 = vmatprep.subr.mxu0 0.0
    %2150 = vmatpush2.msra.mxu0 0.0
    %2151 = vmatprep.subr.mxu0 0.0
    %2152 = vmatpush2.msra.mxu0 0.0
    %2153 = vmatprep.mubr.f32.mxu0 0.0
    %2154 = vmatmul.mubr.f32.gmra.mxu0 %v2072
    %v2155 = vpop.f32.mrf.mxu0
    %v2156 = vadd.f32 0.0, %v2155
    %v2157 = vpop.f32.mrf.mxu0
    %2158 = vdwg.mxu0
    %v2159 = vmul.f32 %v2156, %v2156
    %v2161 = vrot.slane %v2159, 7
    %v2163 = vsub.f32 %v2156, %v2161
    %v2164 = vmax.f32 %v2163, 0.0
    %v2165 = vld [vmem:[%s16] sm:$0x3]
    %v2166 = vadd.f32 %v2164, 1e-05
    %v2167 = vrsqrt.pop %v2166
    %v2169 = vrot.slane %v2167, 1
    %v2171 = vmul.f32 %v2165, %v2169
    %v2172 = vmul.f32 %v2156, %v2171
    %v2174 = vrot.slane %v2172, 7
    %v2176 = vsub.f32 %v2165, %v2174
    %v2177 = vsel %vm82, %v2171, %v2176
    %v2178 = vld [vmem:[%s15] sm:$0xff]
    %v2179 = vld [vmem:[%s15 + $0x8] sm:$0xff]
    %v2180 = vld [vmem:[%s15 + $0x10] sm:$0xff]
    %v2181 = vld [vmem:[%s15 + $0x18] sm:$0xff]
    %v2183 = vsel %vm1665, %v2177, 0
    %2185 = vmatprep.subr.mxu0 0.0
    %2186 = vmatpush1.msra.mxu0 0.0
    %2187 = vmatprep.subr.mxu0 0.0
    %2188 = vmatpush1.msra.mxu0 0.0
    %2189 = vmatprep.subr.mxu0 0.0
    %2190 = vmatpush1.msra.mxu0 0.0
    %2191 = vmatprep.subr.mxu0 0.0
    %2192 = vmatpush1.msra.mxu0 0.0
    %2193 = vmatprep.subr.mxu0 0.0
    %2194 = vmatpush1.msra.mxu0 0.0
    %2195 = vmatprep.subr.mxu0 0.0
    %2196 = vmatpush1.msra.mxu0 0.0
    %2197 = vmatprep.subr.mxu0 0.0
    %2198 = vmatpush1.msra.mxu0 0.0
    %2199 = vmatprep.subr.mxu0 0.0
    %2200 = vmatpush1.msra.mxu0 0.0
    %2201 = vmatprep.subr.mxu0 0.0
    %2202 = vmatpush1.msra.mxu0 0.0
    %2203 = vmatprep.subr.mxu0 0.0
    %2204 = vmatpush1.msra.mxu0 0.0
    %2205 = vmatprep.subr.mxu0 0.0
    %2206 = vmatpush1.msra.mxu0 0.0
    %2207 = vmatprep.subr.mxu0 0.0
    %2208 = vmatpush1.msra.mxu0 0.0
    %2209 = vmatprep.subr.mxu0 0.0
    %2210 = vmatpush1.msra.mxu0 %v2181
    %2211 = vmatprep.subr.mxu0 0.0
    %2212 = vmatpush1.msra.mxu0 %v2180
    %2213 = vmatprep.subr.mxu0 0.0
    %2214 = vmatpush1.msra.mxu0 %v2179
    %2215 = vmatprep.subr.mxu0 0.0
    %2216 = vmatpush1.msra.mxu0 %v2178
    %2217 = vmatprep.subr.mxu0 0.0
    %2218 = vmatpush2.msra.mxu0 0.0
    %2219 = vmatprep.subr.mxu0 0.0
    %2220 = vmatpush2.msra.mxu0 0.0
    %2221 = vmatprep.subr.mxu0 0.0
    %2222 = vmatpush2.msra.mxu0 0.0
    %2223 = vmatprep.subr.mxu0 0.0
    %2224 = vmatpush2.msra.mxu0 0.0
    %2225 = vmatprep.subr.mxu0 0.0
    %2226 = vmatpush2.msra.mxu0 0.0
    %2227 = vmatprep.subr.mxu0 0.0
    %2228 = vmatpush2.msra.mxu0 0.0
    %2229 = vmatprep.subr.mxu0 0.0
    %2230 = vmatpush2.msra.mxu0 0.0
    %2231 = vmatprep.subr.mxu0 0.0
    %2232 = vmatpush2.msra.mxu0 0.0
    %2233 = vmatprep.subr.mxu0 0.0
    %2234 = vmatpush2.msra.mxu0 0.0
    %2235 = vmatprep.subr.mxu0 0.0
    %2236 = vmatpush2.msra.mxu0 0.0
    %2237 = vmatprep.subr.mxu0 0.0
    %2238 = vmatpush2.msra.mxu0 0.0
    %2239 = vmatprep.subr.mxu0 0.0
    %2240 = vmatpush2.msra.mxu0 0.0
    %2241 = vmatprep.subr.mxu0 0.0
    %2242 = vmatpush2.msra.mxu0 0.0
    %2243 = vmatprep.subr.mxu0 0.0
    %2244 = vmatpush2.msra.mxu0 0.0
    %2245 = vmatprep.subr.mxu0 0.0
    %2246 = vmatpush2.msra.mxu0 0.0
    %2247 = vmatprep.subr.mxu0 0.0
    %2248 = vmatpush2.msra.mxu0 0.0
    %2249 = vmatprep.mubr.f32.mxu0 0.0
    %2250 = vmatmul.mubr.f32.gmra.mxu0 %v2183
    %v2251 = vpop.f32.mrf.mxu0
    %v2252 = vadd.f32 0.0, %v2251
    %v2253 = vpop.f32.mrf.mxu0
    %2254 = vdwg.mxu0
    %v2255 = vlaneseq
    %v2256 = vshrl.u32 %v2255, 7
    %v2257 = vsub.s32 0, %v2256
    %v2258 = vrot.slane %v2252, %v2257
    %v2259 = vmul.f32 %v2049, %v2258
    %v2260 = vlaneseq
    %v2261 = vshrl.u32 %v2260, 7
    %v2262 = vsub.s32 1, %v2261
    %v2263 = vrot.slane %v2252, %v2262
    %v2264 = vadd.f32 %v2259, %v2263
    %vm2265 = vcmp.ge.f32.partialorder %v2264, 0.0
    %v2266 = vmul.f32 %v2264, 0.01
    %v2267 = vsel %vm2265, %v2264, %v2266
    %2268 = vst [vmem:[#allocation9] sm:$0xf] %v2267
    %v2269 = vld [vmem:[#allocation9] ss:$2 sm:$0x3]
    %v2270 = vld [vmem:[%s17] sm:$0xff]
    %v2271 = vld [vmem:[%s17 + $0x8] sm:$0xff]
    %v2272 = vld [vmem:[%s17 + $0x10] sm:$0xff]
    %v2273 = vld [vmem:[%s17 + $0x18] sm:$0xff]
    %v2274 = vld [vmem:[%s17 + $0x20] sm:$0xff]
    %v2275 = vld [vmem:[%s17 + $0x28] sm:$0xff]
    %v2276 = vld [vmem:[%s17 + $0x30] sm:$0xff]
    %v2277 = vld [vmem:[%s17 + $0x38] sm:$0xff]
    %v2278 = vld [vmem:[%s17 + $0x40] sm:$0xff]
    %v2279 = vld [vmem:[%s17 + $0x48] sm:$0xff]
    %v2280 = vld [vmem:[%s17 + $0x50] sm:$0xff]
    %v2281 = vld [vmem:[%s17 + $0x58] sm:$0xff]
    %v2282 = vld [vmem:[%s17 + $0x60] sm:$0xff]
    %v2283 = vld [vmem:[%s17 + $0x68] sm:$0xff]
    %v2284 = vld [vmem:[%s17 + $0x70] sm:$0xff]
    %v2285 = vld [vmem:[%s17 + $0x78] sm:$0xff]
    %s2286 = scalar_lea.vmem [#allocation9], 1
    %v2287 = vld [vmem:[%s2286] ss:$2 sm:$0x3]
    %v2288 = vld [vmem:[%s18] sm:$0xff]
    %v2289 = vld [vmem:[%s18 + $0x8] sm:$0xff]
    %v2290 = vld [vmem:[%s18 + $0x10] sm:$0xff]
    %v2291 = vld [vmem:[%s18 + $0x18] sm:$0xff]
    %v2292 = vld [vmem:[%s18 + $0x20] sm:$0xff]
    %v2293 = vld [vmem:[%s18 + $0x28] sm:$0xff]
    %v2294 = vld [vmem:[%s18 + $0x30] sm:$0xff]
    %v2295 = vld [vmem:[%s18 + $0x38] sm:$0xff]
    %v2296 = vld [vmem:[%s18 + $0x40] sm:$0xff]
    %v2297 = vld [vmem:[%s18 + $0x48] sm:$0xff]
    %v2298 = vld [vmem:[%s18 + $0x50] sm:$0xff]
    %v2299 = vld [vmem:[%s18 + $0x58] sm:$0xff]
    %v2300 = vld [vmem:[%s18 + $0x60] sm:$0xff]
    %v2301 = vld [vmem:[%s18 + $0x68] sm:$0xff]
    %v2302 = vld [vmem:[%s18 + $0x70] sm:$0xff]
    %v2303 = vld [vmem:[%s18 + $0x78] sm:$0xff]
    %2304 = vmatprep.subr.mxu0 0.0
    %2305 = vmatpush1.msra.mxu0 %v2303
    %2306 = vmatprep.subr.mxu0 0.0
    %2307 = vmatpush1.msra.mxu0 %v2302
    %2308 = vmatprep.subr.mxu0 0.0
    %2309 = vmatpush1.msra.mxu0 %v2301
    %2310 = vmatprep.subr.mxu0 0.0
    %2311 = vmatpush1.msra.mxu0 %v2300
    %2312 = vmatprep.subr.mxu0 0.0
    %2313 = vmatpush1.msra.mxu0 %v2299
    %2314 = vmatprep.subr.mxu0 0.0
    %2315 = vmatpush1.msra.mxu0 %v2298
    %2316 = vmatprep.subr.mxu0 0.0
    %2317 = vmatpush1.msra.mxu0 %v2297
    %2318 = vmatprep.subr.mxu0 0.0
    %2319 = vmatpush1.msra.mxu0 %v2296
    %2320 = vmatprep.subr.mxu0 0.0
    %2321 = vmatpush1.msra.mxu0 %v2295
    %2322 = vmatprep.subr.mxu0 0.0
    %2323 = vmatpush1.msra.mxu0 %v2294
    %2324 = vmatprep.subr.mxu0 0.0
    %2325 = vmatpush1.msra.mxu0 %v2293
    %2326 = vmatprep.subr.mxu0 0.0
    %2327 = vmatpush1.msra.mxu0 %v2292
    %2328 = vmatprep.subr.mxu0 0.0
    %2329 = vmatpush1.msra.mxu0 %v2291
    %2330 = vmatprep.subr.mxu0 0.0
    %2331 = vmatpush1.msra.mxu0 %v2290
    %2332 = vmatprep.subr.mxu0 0.0
    %2333 = vmatpush1.msra.mxu0 %v2289
    %2334 = vmatprep.subr.mxu0 0.0
    %2335 = vmatpush1.msra.mxu0 %v2288
    %2336 = vmatprep.subr.mxu0 0.0
    %2337 = vmatpush2.msra.mxu0 0.0
    %2338 = vmatprep.subr.mxu0 0.0
    %2339 = vmatpush2.msra.mxu0 0.0
    %2340 = vmatprep.subr.mxu0 0.0
    %2341 = vmatpush2.msra.mxu0 0.0
    %2342 = vmatprep.subr.mxu0 0.0
    %2343 = vmatpush2.msra.mxu0 0.0
    %2344 = vmatprep.subr.mxu0 0.0
    %2345 = vmatpush2.msra.mxu0 0.0
    %2346 = vmatprep.subr.mxu0 0.0
    %2347 = vmatpush2.msra.mxu0 0.0
    %2348 = vmatprep.subr.mxu0 0.0
    %2349 = vmatpush2.msra.mxu0 0.0
    %2350 = vmatprep.subr.mxu0 0.0
    %2351 = vmatpush2.msra.mxu0 0.0
    %2352 = vmatprep.subr.mxu0 0.0
    %2353 = vmatpush2.msra.mxu0 0.0
    %2354 = vmatprep.subr.mxu0 0.0
    %2355 = vmatpush2.msra.mxu0 0.0
    %2356 = vmatprep.subr.mxu0 0.0
    %2357 = vmatpush2.msra.mxu0 0.0
    %2358 = vmatprep.subr.mxu0 0.0
    %2359 = vmatpush2.msra.mxu0 0.0
    %2360 = vmatprep.subr.mxu0 0.0
    %2361 = vmatpush2.msra.mxu0 0.0
    %2362 = vmatprep.subr.mxu0 0.0
    %2363 = vmatpush2.msra.mxu0 0.0
    %2364 = vmatprep.subr.mxu0 0.0
    %2365 = vmatpush2.msra.mxu0 0.0
    %2366 = vmatprep.subr.mxu0 0.0
    %2367 = vmatpush2.msra.mxu0 0.0
    %2368 = vmatprep.mubr.f32.mxu0 0.0
    %2369 = vmatmul.mubr.f32.gmra.mxu0 %v2287
    %v2370 = vpop.f32.mrf.mxu0
    %v2371 = vadd.f32 0.0, %v2370
    %v2372 = vpop.f32.mrf.mxu0
    %2373 = vdwg.mxu0
    %2374 = vmatprep.subr.mxu0 0.0
    %2375 = vmatpush1.msra.mxu0 %v2285
    %2376 = vmatprep.subr.mxu0 0.0
    %2377 = vmatpush1.msra.mxu0 %v2284
    %2378 = vmatprep.subr.mxu0 0.0
    %2379 = vmatpush1.msra.mxu0 %v2283
    %2380 = vmatprep.subr.mxu0 0.0
    %2381 = vmatpush1.msra.mxu0 %v2282
    %2382 = vmatprep.subr.mxu0 0.0
    %2383 = vmatpush1.msra.mxu0 %v2281
    %2384 = vmatprep.subr.mxu0 0.0
    %2385 = vmatpush1.msra.mxu0 %v2280
    %2386 = vmatprep.subr.mxu0 0.0
    %2387 = vmatpush1.msra.mxu0 %v2279
    %2388 = vmatprep.subr.mxu0 0.0
    %2389 = vmatpush1.msra.mxu0 %v2278
    %2390 = vmatprep.subr.mxu0 0.0
    %2391 = vmatpush1.msra.mxu0 %v2277
    %2392 = vmatprep.subr.mxu0 0.0
    %2393 = vmatpush1.msra.mxu0 %v2276
    %2394 = vmatprep.subr.mxu0 0.0
    %2395 = vmatpush1.msra.mxu0 %v2275
    %2396 = vmatprep.subr.mxu0 0.0
    %2397 = vmatpush1.msra.mxu0 %v2274
    %2398 = vmatprep.subr.mxu0 0.0
    %2399 = vmatpush1.msra.mxu0 %v2273
    %2400 = vmatprep.subr.mxu0 0.0
    %2401 = vmatpush1.msra.mxu0 %v2272
    %2402 = vmatprep.subr.mxu0 0.0
    %2403 = vmatpush1.msra.mxu0 %v2271
    %2404 = vmatprep.subr.mxu0 0.0
    %2405 = vmatpush1.msra.mxu0 %v2270
    %2406 = vmatprep.subr.mxu0 0.0
    %2407 = vmatpush2.msra.mxu0 0.0
    %2408 = vmatprep.subr.mxu0 0.0
    %2409 = vmatpush2.msra.mxu0 0.0
    %2410 = vmatprep.subr.mxu0 0.0
    %2411 = vmatpush2.msra.mxu0 0.0
    %2412 = vmatprep.subr.mxu0 0.0
    %2413 = vmatpush2.msra.mxu0 0.0
    %2414 = vmatprep.subr.mxu0 0.0
    %2415 = vmatpush2.msra.mxu0 0.0
    %2416 = vmatprep.subr.mxu0 0.0
    %2417 = vmatpush2.msra.mxu0 0.0
    %2418 = vmatprep.subr.mxu0 0.0
    %2419 = vmatpush2.msra.mxu0 0.0
    %2420 = vmatprep.subr.mxu0 0.0
    %2421 = vmatpush2.msra.mxu0 0.0
    %2422 = vmatprep.subr.mxu0 0.0
    %2423 = vmatpush2.msra.mxu0 0.0
    %2424 = vmatprep.subr.mxu0 0.0
    %2425 = vmatpush2.msra.mxu0 0.0
    %2426 = vmatprep.subr.mxu0 0.0
    %2427 = vmatpush2.msra.mxu0 0.0
    %2428 = vmatprep.subr.mxu0 0.0
    %2429 = vmatpush2.msra.mxu0 0.0
    %2430 = vmatprep.subr.mxu0 0.0
    %2431 = vmatpush2.msra.mxu0 0.0
    %2432 = vmatprep.subr.mxu0 0.0
    %2433 = vmatpush2.msra.mxu0 0.0
    %2434 = vmatprep.subr.mxu0 0.0
    %2435 = vmatpush2.msra.mxu0 0.0
    %2436 = vmatprep.subr.mxu0 0.0
    %2437 = vmatpush2.msra.mxu0 0.0
    %2438 = vmatprep.mubr.f32.mxu0 0.0
    %2439 = vmatmul.mubr.f32.gmra.mxu0 %v2269
    %v2440 = vpop.f32.mrf.mxu0
    %v2441 = vadd.f32 %v2371, %v2440
    %v2442 = vpop.f32.mrf.mxu0
    %2443 = vdwg.mxu0
    %2444 = vst [vmem:[#allocation10] sm:$0x3] %v2441
    // Predicated region
    $region78: #{encoder_forward.1} parent=1 // pred_check
      _
    $region79: #{encoder_forward.1} parent=1 // pred_check_branch
      %2446 = sbr.rel (0) target = $region81
    $region80: #{encoder_forward.1} parent=1 // pred_region
      %s2448 = ssub.s32 32, 32
      %2449 = vsyncadd [#allocation11], %s2448
      %s2451 = sshll.u32 [#allocation10], 4
      %s2452 = int_to_ptr.vmem [resolvable:$true] %s2451
      %2454 = dma.vmem_to_hbm [thread:$0]  %s2452, 32, %s19, [#allocation11]
    $region81: #{encoder_forward.1} parent=1 // pred_fallthru
      _
    // Predicated region
    $region82: #{encoder_forward.1} parent=1 // pred_check
      _
    $region83: #{encoder_forward.1} parent=1 // pred_check_branch
      %2456 = sbr.rel (0) target = $region85
    $region84: #{encoder_forward.1} parent=1 // pred_region
      %2457 = dma.done [#allocation11], 32
    $region85: #{encoder_forward.1} parent=1 // pred_fallthru
      _
    %2458 = vsyncpa [#allocation11], 1

</llo_original>
